<compile_context>
chip_gen: v7x
topology: tpu7x:2x2x1
jax: 0.10.0
libtpu: 0.0.40
codegen_flags: <defaults>
</compile_context>

<pallas_src>
import jax
import jax.numpy as jnp
from jax.experimental import pallas as pl
from jax.experimental.pallas import tpu as pltpu

# ----------------------------- configuration ------------------------------
D_MODEL = 32
DFF = 64
NHEADS = 4
NBLOCKS = 2
D_LATENT = 16
NBITS = 8
VOCAB = 2 ** NBITS
BATCH = 2
SEQ = 8
LN_EPS = 1e-5


def _layernorm(x, g, b):
    # E[x^2] - mean^2 form: the two reductions are independent (no dependent
    # second pass over (x - mu)); rsqrt runs on the EUP.
    mu = jnp.mean(x, axis=-1, keepdims=True)
    ex2 = jnp.mean(x * x, axis=-1, keepdims=True)
    var = ex2 - mu * mu
    return (x - mu) * jax.lax.rsqrt(var + LN_EPS) * g + b


# ------------------------------- kernel -----------------------------------
def encoder_kernel(
    ids_ref, emb_ref, pe_ref,
    wq_ref, bq_ref, wk_ref, bk_ref, wv_ref, bv_ref,
    wo_ref, bo_ref, ln1g_ref, ln1b_ref,
    w1_ref, b1_ref, w2_ref, b2_ref, ln2g_ref, ln2b_ref,
    whead_ref, bhead_ref, out_ref,
):
    S, D = pe_ref.shape
    V = emb_ref.shape[0]
    BS = ids_ref.shape[0]
    B = BS // S
    dh = D // NHEADS

    # ---- fused embedding gather (exact one-hot MXU matmul) + positional add
    onehot = (jax.lax.broadcasted_iota(jnp.int32, (BS, V), 1)
              == ids_ref[...]).astype(jnp.float32)                 # (BS, V)
    te = jnp.dot(onehot, emb_ref[...],
                 preferred_element_type=jnp.float32)               # (BS, D)
    x = (te.reshape(B, S, D) + pe_ref[...][None, :, :]).reshape(BS, D)

    for blk in range(NBLOCKS):                       # statically unrolled
        wq = wq_ref[blk]; wk = wk_ref[blk]; wv = wv_ref[blk]; wo = wo_ref[blk]
        w1 = w1_ref[blk]; w2 = w2_ref[blk]
        bq = bq_ref[blk:blk + 1, :]; bk = bk_ref[blk:blk + 1, :]
        bv = bv_ref[blk:blk + 1, :]; bo = bo_ref[blk:blk + 1, :]
        b1 = b1_ref[blk:blk + 1, :]; b2 = b2_ref[blk:blk + 1, :]
        ln1g = ln1g_ref[blk:blk + 1, :]; ln1b = ln1b_ref[blk:blk + 1, :]
        ln2g = ln2g_ref[blk:blk + 1, :]; ln2b = ln2b_ref[blk:blk + 1, :]

        # ---- QKV: three lane-aligned bf16 dots (softmax scale pre-folded
        # into wq/bq at prepare time; no 96-wide fused-qkv lane slicing).
        xb = x.astype(jnp.bfloat16)
        q = (jnp.dot(xb, wq, preferred_element_type=jnp.float32) + bq
             ).astype(jnp.bfloat16)
        k = (jnp.dot(xb, wk, preferred_element_type=jnp.float32) + bk
             ).astype(jnp.bfloat16)
        v = (jnp.dot(xb, wv, preferred_element_type=jnp.float32) + bv
             ).astype(jnp.bfloat16)

        # ---- multi-head self attention (head concat folded into W_O) ----
        attn = None
        for h in range(NHEADS):                      # statically unrolled
            lo, hi = h * dh, (h + 1) * dh
            qh = q[:, lo:hi].reshape(B, S, dh)
            kh = k[:, lo:hi].reshape(B, S, dh)
            vh = v[:, lo:hi].reshape(B, S, dh)
            s = jnp.einsum("bqd,bkd->bqk", qh, kh,
                           preferred_element_type=jnp.float32)     # (B,S,S)
            s = s - jnp.max(s, axis=-1, keepdims=True)
            p = jnp.exp(s)
            p = p * pl.reciprocal(jnp.sum(p, axis=-1, keepdims=True),
                                  approx=True)
            oh = jnp.einsum("bqk,bkd->bqd", p.astype(jnp.bfloat16), vh,
                            preferred_element_type=jnp.float32)    # (B,S,dh)
            contrib = jnp.dot(oh.reshape(BS, dh).astype(jnp.bfloat16),
                              wo[lo:hi, :],
                              preferred_element_type=jnp.float32)
            attn = contrib if attn is None else attn + contrib
        attn = attn + bo

        x = _layernorm(x + attn, ln1g, ln1b)

        # ---- position-wise feed forward ----
        h1 = jnp.maximum(
            jnp.dot(x.astype(jnp.bfloat16), w1,
                    preferred_element_type=jnp.float32) + b1, 0.0)
        h2 = jnp.dot(h1.astype(jnp.bfloat16), w2,
                     preferred_element_type=jnp.float32) + b2

        x = _layernorm(x + h2, ln2g, ln2b)

    # ---- mean pool over sequence, fused (mean|logstd) latent heads ----
    pooled = jnp.mean(x.reshape(B, S, D), axis=1)                  # (B, D)
    out_ref[...] = (jnp.dot(pooled, whead_ref[...],
                            preferred_element_type=jnp.float32)
                    + bhead_ref[...])                              # (B, 2L)


# ------------------------- one-time weight prep -----------------------------
def prepare_params(params):
    """Kernel-ready weights; called ONCE, outside the per-call path."""
    dh = D_MODEL // NHEADS
    scale = 1.0 / (dh ** 0.5)
    wqkv, bqkv = params["wqkv"], params["bqkv"]
    bf = jnp.bfloat16
    return dict(
        emb=params["emb"],                                  # f32 (exact gather)
        wq=(wqkv[:, :, :D_MODEL] * scale).astype(bf),       # scale folded in
        bq=bqkv[:, :D_MODEL] * scale,
        wk=wqkv[:, :, D_MODEL:2 * D_MODEL].astype(bf),
        bk=bqkv[:, D_MODEL:2 * D_MODEL],
        wv=wqkv[:, :, 2 * D_MODEL:].astype(bf),
        bv=bqkv[:, 2 * D_MODEL:],
        wo=params["wo"].astype(bf), bo=params["bo"],
        ln1g=params["ln1g"], ln1b=params["ln1b"],
        w1=params["w1"].astype(bf), b1=params["b1"],
        w2=params["w2"].astype(bf), b2=params["b2"],
        ln2g=params["ln2g"], ln2b=params["ln2b"],
        whead=jnp.concatenate([params["wm"], params["wl"]], axis=1),  # f32
        bhead=jnp.concatenate([params["bm"], params["bl"]], axis=1),  # (1, 2L)
    )


# ------------------------------- wrapper -----------------------------------
@jax.jit
def transformer_forward(input_ids, pemat, kp):
    B, S = input_ids.shape
    ids2d = input_ids.reshape(B * S, 1).astype(jnp.int32)   # metadata reshape

    vmem = pl.BlockSpec(memory_space=pltpu.MemorySpace.VMEM)
    args = (ids2d, kp["emb"], pemat,
            kp["wq"], kp["bq"], kp["wk"], kp["bk"], kp["wv"], kp["bv"],
            kp["wo"], kp["bo"], kp["ln1g"], kp["ln1b"],
            kp["w1"], kp["b1"], kp["w2"], kp["b2"], kp["ln2g"], kp["ln2b"],
            kp["whead"], kp["bhead"])

    out = pl.pallas_call(
        encoder_kernel,
        out_shape=jax.ShapeDtypeStruct((B, 2 * D_LATENT), jnp.float32),
        in_specs=[vmem] * len(args),
        out_specs=vmem,
    )(*args)

    return out[:, :D_LATENT], out[:, D_LATENT:]


# -------------------------- pure-JAX reference ------------------------------
def reference_forward(input_ids, pemat, params):
    te = jnp.take(params["emb"], input_ids, axis=0)
    x = te + pemat[None]
    dh = D_MODEL // NHEADS
    scale = 1.0 / (dh ** 0.5)

    def ln(x, g, b):
        mu = jnp.mean(x, axis=-1, keepdims=True)
        var = jnp.mean((x - mu) ** 2, axis=-1, keepdims=True)
        return (x - mu) * jax.lax.rsqrt(var + LN_EPS) * g + b

    for blk in range(NBLOCKS):
        qkv = jnp.einsum("bsd,de->bse", x, params["wqkv"][blk]) \
            + params["bqkv"][blk]
        q, k, v = jnp.split(qkv, 3, axis=-1)
        B, S, _ = q.shape
        q = q.reshape(B, S, NHEADS, dh).transpose(0, 2, 1, 3)
        k = k.reshape(B, S, NHEADS, dh).transpose(0, 2, 1, 3)
        v = v.reshape(B, S, NHEADS, dh).transpose(0, 2, 1, 3)
        s = jnp.einsum("bhqd,bhkd->bhqk", q, k) * scale
        p = jax.nn.softmax(s, axis=-1)
        o = jnp.einsum("bhqk,bhkd->bhqd", p, v)
        o = o.transpose(0, 2, 1, 3).reshape(B, S, D_MODEL)
        attn = jnp.einsum("bsd,de->bse", o, params["wo"][blk]) \
            + params["bo"][blk]
        x = ln(x + attn, params["ln1g"][blk], params["ln1b"][blk])
        h1 = jax.nn.relu(
            jnp.einsum("bsd,df->bsf", x, params["w1"][blk])
            + params["b1"][blk])
        h2 = jnp.einsum("bsf,fd->bsd", h1, params["w2"][blk]) \
            + params["b2"][blk]
        x = ln(x + h2, params["ln2g"][blk], params["ln2b"][blk])

    pooled = x.mean(1)
    mean = pooled @ params["wm"] + params["bm"][0]
    logstd = pooled @ params["wl"] + params["bl"][0]
    return mean, logstd


# ------------------------------ param init ---------------------------------
def init_params(key):
    ks = jax.random.split(key, 16)
    std = 0.02
    return {
        "emb": jax.random.normal(ks[0], (VOCAB, D_MODEL), jnp.float32) * std,
        "wqkv": jax.random.normal(ks[1], (NBLOCKS, D_MODEL, 3 * D_MODEL),
                                  jnp.float32) * std,
        "bqkv": jnp.zeros((NBLOCKS, 3 * D_MODEL), jnp.float32),
        "wo": jax.random.normal(ks[2], (NBLOCKS, D_MODEL, D_MODEL),
                                jnp.float32) * std,
        "bo": jnp.zeros((NBLOCKS, D_MODEL), jnp.float32),
        "ln1g": jnp.ones((NBLOCKS, D_MODEL), jnp.float32),
        "ln1b": jnp.zeros((NBLOCKS, D_MODEL), jnp.float32),
        "w1": jax.random.normal(ks[3], (NBLOCKS, D_MODEL, DFF),
                                jnp.float32) * std,
        "b1": jnp.zeros((NBLOCKS, DFF), jnp.float32),
        "w2": jax.random.normal(ks[4], (NBLOCKS, DFF, D_MODEL),
                                jnp.float32) * std,
        "b2": jnp.zeros((NBLOCKS, D_MODEL), jnp.float32),
        "ln2g": jnp.ones((NBLOCKS, D_MODEL), jnp.float32),
        "ln2b": jnp.zeros((NBLOCKS, D_MODEL), jnp.float32),
        "wm": jax.random.normal(ks[5], (D_MODEL, D_LATENT),
                                jnp.float32) * std,
        "bm": jax.random.normal(ks[6], (1, D_LATENT), jnp.float32) * std,
        "wl": jax.random.normal(ks[7], (D_MODEL, D_LATENT),
                                jnp.float32) * std,
        "bl": jax.random.normal(ks[8], (1, D_LATENT), jnp.float32) * std,
    }


# --------------------------------- main -------------------------------------
if __name__ == "__main__":
    key = jax.random.PRNGKey(0)
    k_param, k_ids, k_pe = jax.random.split(key, 3)

    params = init_params(k_param)
    input_ids = jax.random.randint(k_ids, (BATCH, SEQ), 0, VOCAB, jnp.int32)
    pemat = jax.random.normal(k_pe, (SEQ, D_MODEL), jnp.float32) * 0.1

    kparams = prepare_params(params)     # one-time prep, not in per-call path
    mean, logstd = transformer_forward(input_ids, pemat, kparams)
    jax.block_until_ready((mean, logstd))

    ref_mean, ref_logstd = reference_forward(input_ids, pemat, params)
    assert mean.shape == (BATCH, D_LATENT) and logstd.shape == (BATCH, D_LATENT)
    assert jnp.allclose(mean, ref_mean, atol=1e-3, rtol=1e-3), \
        float(jnp.max(jnp.abs(mean - ref_mean)))
    assert jnp.allclose(logstd, ref_logstd, atol=1e-3, rtol=1e-3), \
        float(jnp.max(jnp.abs(logstd - ref_logstd)))

    print("KERNEL_OK")
</pallas_src>

<mosaic_0001>
module attributes {stable_mosaic.version = 11 : i64} {
  func.func @encoder_kernel(%arg0: memref<16x1xi32, #tpu.memory_space<vmem>>, %arg1: memref<256x32xf32, #tpu.memory_space<vmem>>, %arg2: memref<8x32xf32, #tpu.memory_space<vmem>>, %arg3: memref<2x32x32xbf16, #tpu.memory_space<vmem>>, %arg4: memref<2x32xf32, #tpu.memory_space<vmem>>, %arg5: memref<2x32x32xbf16, #tpu.memory_space<vmem>>, %arg6: memref<2x32xf32, #tpu.memory_space<vmem>>, %arg7: memref<2x32x32xbf16, #tpu.memory_space<vmem>>, %arg8: memref<2x32xf32, #tpu.memory_space<vmem>>, %arg9: memref<2x32x32xbf16, #tpu.memory_space<vmem>>, %arg10: memref<2x32xf32, #tpu.memory_space<vmem>>, %arg11: memref<2x32xf32, #tpu.memory_space<vmem>>, %arg12: memref<2x32xf32, #tpu.memory_space<vmem>>, %arg13: memref<2x32x64xbf16, #tpu.memory_space<vmem>>, %arg14: memref<2x64xf32, #tpu.memory_space<vmem>>, %arg15: memref<2x64x32xbf16, #tpu.memory_space<vmem>>, %arg16: memref<2x32xf32, #tpu.memory_space<vmem>>, %arg17: memref<2x32xf32, #tpu.memory_space<vmem>>, %arg18: memref<2x32xf32, #tpu.memory_space<vmem>>, %arg19: memref<32x32xf32, #tpu.memory_space<vmem>>, %arg20: memref<1x32xf32, #tpu.memory_space<vmem>>, %arg21: memref<2x32xf32, #tpu.memory_space<vmem>>) attributes {dimension_semantics = [], scalar_prefetch = 0 : i64, scratch_operands = 0 : i64, tpu.core_type = #tpu.core_type<tc>} {
    %0 = tpu.iota {dimensions = array<i32: 1>} : vector<16x256xi32>
    %c0 = arith.constant 0 : index
    %c0_0 = arith.constant 0 : index
    %1 = vector.load %arg0[%c0, %c0_0] : memref<16x1xi32, #tpu.memory_space<vmem>>, vector<16x1xi32>
    %2 = vector.broadcast %1 : vector<16x1xi32> to vector<16x256xi32>
    %3 = arith.cmpi eq, %0, %2 : vector<16x256xi32>
    %4 = arith.extui %3 : vector<16x256xi1> to vector<16x256xi32>
    %5 = arith.sitofp %4 : vector<16x256xi32> to vector<16x256xf32>
    %c0_1 = arith.constant 0 : index
    %c0_2 = arith.constant 0 : index
    %6 = vector.load %arg1[%c0_1, %c0_2] : memref<256x32xf32, #tpu.memory_space<vmem>>, vector<256x32xf32>
    %cst = arith.constant dense<0.000000e+00> : vector<16x32xf32>
    %7 = tpu.matmul %5, %6, %cst {dimension_numbers = #tpu.dot_dimension_numbers<[1], [0], [0], [1], [0, 0, 1, 1], [], []>} : vector<16x256xf32>, vector<256x32xf32>, vector<16x32xf32> -> vector<16x32xf32>
    %8 = vector.shape_cast %7 : vector<16x32xf32> to vector<2x8x32xf32>
    %c0_3 = arith.constant 0 : index
    %c0_4 = arith.constant 0 : index
    %9 = vector.load %arg2[%c0_3, %c0_4] : memref<8x32xf32, #tpu.memory_space<vmem>>, vector<8x32xf32>
    %10 = vector.shape_cast %9 : vector<8x32xf32> to vector<1x8x32xf32>
    %11 = vector.broadcast %10 : vector<1x8x32xf32> to vector<2x8x32xf32>
    %12 = arith.addf %8, %11 : vector<2x8x32xf32>
    %13 = vector.shape_cast %12 : vector<2x8x32xf32> to vector<16x32xf32>
    %c0_5 = arith.constant 0 : index
    %c0_6 = arith.constant 0 : index
    %c0_7 = arith.constant 0 : index
    %14 = vector.load %arg3[%c0_5, %c0_6, %c0_7] : memref<2x32x32xbf16, #tpu.memory_space<vmem>>, vector<1x32x32xbf16>
    %15 = vector.shape_cast %14 : vector<1x32x32xbf16> to vector<32x32xbf16>
    %c0_8 = arith.constant 0 : index
    %c0_9 = arith.constant 0 : index
    %c0_10 = arith.constant 0 : index
    %16 = vector.load %arg5[%c0_8, %c0_9, %c0_10] : memref<2x32x32xbf16, #tpu.memory_space<vmem>>, vector<1x32x32xbf16>
    %17 = vector.shape_cast %16 : vector<1x32x32xbf16> to vector<32x32xbf16>
    %c0_11 = arith.constant 0 : index
    %c0_12 = arith.constant 0 : index
    %c0_13 = arith.constant 0 : index
    %18 = vector.load %arg7[%c0_11, %c0_12, %c0_13] : memref<2x32x32xbf16, #tpu.memory_space<vmem>>, vector<1x32x32xbf16>
    %19 = vector.shape_cast %18 : vector<1x32x32xbf16> to vector<32x32xbf16>
    %c0_14 = arith.constant 0 : index
    %c0_15 = arith.constant 0 : index
    %c0_16 = arith.constant 0 : index
    %20 = vector.load %arg9[%c0_14, %c0_15, %c0_16] : memref<2x32x32xbf16, #tpu.memory_space<vmem>>, vector<1x32x32xbf16>
    %21 = vector.shape_cast %20 : vector<1x32x32xbf16> to vector<32x32xbf16>
    %c0_17 = arith.constant 0 : index
    %c0_18 = arith.constant 0 : index
    %c0_19 = arith.constant 0 : index
    %22 = vector.load %arg13[%c0_17, %c0_18, %c0_19] : memref<2x32x64xbf16, #tpu.memory_space<vmem>>, vector<1x32x64xbf16>
    %23 = vector.shape_cast %22 : vector<1x32x64xbf16> to vector<32x64xbf16>
    %c0_20 = arith.constant 0 : index
    %c0_21 = arith.constant 0 : index
    %c0_22 = arith.constant 0 : index
    %24 = vector.load %arg15[%c0_20, %c0_21, %c0_22] : memref<2x64x32xbf16, #tpu.memory_space<vmem>>, vector<1x64x32xbf16>
    %25 = vector.shape_cast %24 : vector<1x64x32xbf16> to vector<64x32xbf16>
    %c0_23 = arith.constant 0 : index
    %c0_24 = arith.constant 0 : index
    %26 = vector.load %arg4[%c0_23, %c0_24] : memref<2x32xf32, #tpu.memory_space<vmem>>, vector<1x32xf32>
    %c0_25 = arith.constant 0 : index
    %c0_26 = arith.constant 0 : index
    %27 = vector.load %arg6[%c0_25, %c0_26] : memref<2x32xf32, #tpu.memory_space<vmem>>, vector<1x32xf32>
    %c0_27 = arith.constant 0 : index
    %c0_28 = arith.constant 0 : index
    %28 = vector.load %arg8[%c0_27, %c0_28] : memref<2x32xf32, #tpu.memory_space<vmem>>, vector<1x32xf32>
    %c0_29 = arith.constant 0 : index
    %c0_30 = arith.constant 0 : index
    %29 = vector.load %arg10[%c0_29, %c0_30] : memref<2x32xf32, #tpu.memory_space<vmem>>, vector<1x32xf32>
    %c0_31 = arith.constant 0 : index
    %c0_32 = arith.constant 0 : index
    %30 = vector.load %arg14[%c0_31, %c0_32] : memref<2x64xf32, #tpu.memory_space<vmem>>, vector<1x64xf32>
    %c0_33 = arith.constant 0 : index
    %c0_34 = arith.constant 0 : index
    %31 = vector.load %arg16[%c0_33, %c0_34] : memref<2x32xf32, #tpu.memory_space<vmem>>, vector<1x32xf32>
    %c0_35 = arith.constant 0 : index
    %c0_36 = arith.constant 0 : index
    %32 = vector.load %arg11[%c0_35, %c0_36] : memref<2x32xf32, #tpu.memory_space<vmem>>, vector<1x32xf32>
    %c0_37 = arith.constant 0 : index
    %c0_38 = arith.constant 0 : index
    %33 = vector.load %arg12[%c0_37, %c0_38] : memref<2x32xf32, #tpu.memory_space<vmem>>, vector<1x32xf32>
    %c0_39 = arith.constant 0 : index
    %c0_40 = arith.constant 0 : index
    %34 = vector.load %arg17[%c0_39, %c0_40] : memref<2x32xf32, #tpu.memory_space<vmem>>, vector<1x32xf32>
    %c0_41 = arith.constant 0 : index
    %c0_42 = arith.constant 0 : index
    %35 = vector.load %arg18[%c0_41, %c0_42] : memref<2x32xf32, #tpu.memory_space<vmem>>, vector<1x32xf32>
    %36 = arith.truncf %13 : vector<16x32xf32> to vector<16x32xbf16>
    %cst_43 = arith.constant dense<0.000000e+00> : vector<16x32xf32>
    %37 = tpu.matmul %36, %15, %cst_43 {dimension_numbers = #tpu.dot_dimension_numbers<[1], [0], [0], [1], [0, 0, 1, 1], [], []>} : vector<16x32xbf16>, vector<32x32xbf16>, vector<16x32xf32> -> vector<16x32xf32>
    %38 = vector.broadcast %26 : vector<1x32xf32> to vector<16x32xf32>
    %39 = arith.addf %37, %38 : vector<16x32xf32>
    %40 = arith.truncf %39 : vector<16x32xf32> to vector<16x32xbf16>
    %cst_44 = arith.constant dense<0.000000e+00> : vector<16x32xf32>
    %41 = tpu.matmul %36, %17, %cst_44 {dimension_numbers = #tpu.dot_dimension_numbers<[1], [0], [0], [1], [0, 0, 1, 1], [], []>} : vector<16x32xbf16>, vector<32x32xbf16>, vector<16x32xf32> -> vector<16x32xf32>
    %42 = vector.broadcast %27 : vector<1x32xf32> to vector<16x32xf32>
    %43 = arith.addf %41, %42 : vector<16x32xf32>
    %44 = arith.truncf %43 : vector<16x32xf32> to vector<16x32xbf16>
    %cst_45 = arith.constant dense<0.000000e+00> : vector<16x32xf32>
    %45 = tpu.matmul %36, %19, %cst_45 {dimension_numbers = #tpu.dot_dimension_numbers<[1], [0], [0], [1], [0, 0, 1, 1], [], []>} : vector<16x32xbf16>, vector<32x32xbf16>, vector<16x32xf32> -> vector<16x32xf32>
    %46 = vector.broadcast %28 : vector<1x32xf32> to vector<16x32xf32>
    %47 = arith.addf %45, %46 : vector<16x32xf32>
    %48 = arith.truncf %47 : vector<16x32xf32> to vector<16x32xbf16>
    %49 = vector.extract_strided_slice %40 {offsets = [0, 0], sizes = [16, 8], strides = [1, 1]} : vector<16x32xbf16> to vector<16x8xbf16>
    %50 = vector.shape_cast %49 : vector<16x8xbf16> to vector<2x8x8xbf16>
    %51 = vector.extract_strided_slice %44 {offsets = [0, 0], sizes = [16, 8], strides = [1, 1]} : vector<16x32xbf16> to vector<16x8xbf16>
    %52 = vector.shape_cast %51 : vector<16x8xbf16> to vector<2x8x8xbf16>
    %53 = vector.extract_strided_slice %48 {offsets = [0, 0], sizes = [16, 8], strides = [1, 1]} : vector<16x32xbf16> to vector<16x8xbf16>
    %54 = vector.shape_cast %53 : vector<16x8xbf16> to vector<2x8x8xbf16>
    "tpu.trace_start"() <{level = 10 : i32, message = "bqd,bkd->bqk"}> : () -> ()
    %cst_46 = arith.constant dense<0.000000e+00> : vector<2x8x8xf32>
    %55 = tpu.matmul %50, %52, %cst_46 {dimension_numbers = #tpu.dot_dimension_numbers<[2], [2], [1], [1], [0, 0, 0, 1, 1, 1], [0], [0]>} : vector<2x8x8xbf16>, vector<2x8x8xbf16>, vector<2x8x8xf32> -> vector<2x8x8xf32>
    "tpu.trace_stop"() : () -> ()
    %cst_47 = arith.constant dense<0xFF800000> : vector<2x8xf32>
    %56 = vector.multi_reduction <maximumf>, %55, %cst_47 [2] : vector<2x8x8xf32> to vector<2x8xf32>
    %57 = vector.shape_cast %56 : vector<2x8xf32> to vector<2x8x1xf32>
    %58 = vector.broadcast %57 : vector<2x8x1xf32> to vector<2x8x8xf32>
    %59 = arith.subf %55, %58 : vector<2x8x8xf32>
    %60 = math.exp %59 : vector<2x8x8xf32>
    %cst_48 = arith.constant dense<0.000000e+00> : vector<2x8xf32>
    %61 = vector.multi_reduction <add>, %60, %cst_48 [2] : vector<2x8x8xf32> to vector<2x8xf32>
    %62 = vector.shape_cast %61 : vector<2x8xf32> to vector<2x8x1xf32>
    %63 = tpu.reciprocal %62 {approx = true} : vector<2x8x1xf32> -> vector<2x8x1xf32>
    %64 = vector.broadcast %63 : vector<2x8x1xf32> to vector<2x8x8xf32>
    %65 = arith.mulf %60, %64 : vector<2x8x8xf32>
    %66 = arith.truncf %65 : vector<2x8x8xf32> to vector<2x8x8xbf16>
    "tpu.trace_start"() <{level = 10 : i32, message = "bqk,bkd->bqd"}> : () -> ()
    %cst_49 = arith.constant dense<0.000000e+00> : vector<2x8x8xf32>
    %67 = tpu.matmul %66, %54, %cst_49 {dimension_numbers = #tpu.dot_dimension_numbers<[2], [1], [1], [2], [0, 0, 0, 1, 1, 2], [0], [0]>} : vector<2x8x8xbf16>, vector<2x8x8xbf16>, vector<2x8x8xf32> -> vector<2x8x8xf32>
    "tpu.trace_stop"() : () -> ()
    %68 = vector.shape_cast %67 : vector<2x8x8xf32> to vector<16x8xf32>
    %69 = arith.truncf %68 : vector<16x8xf32> to vector<16x8xbf16>
    %70 = vector.extract_strided_slice %21 {offsets = [0, 0], sizes = [8, 32], strides = [1, 1]} : vector<32x32xbf16> to vector<8x32xbf16>
    %cst_50 = arith.constant dense<0.000000e+00> : vector<16x32xf32>
    %71 = tpu.matmul %69, %70, %cst_50 {dimension_numbers = #tpu.dot_dimension_numbers<[1], [0], [0], [1], [0, 0, 1, 1], [], []>} : vector<16x8xbf16>, vector<8x32xbf16>, vector<16x32xf32> -> vector<16x32xf32>
    %72 = vector.extract_strided_slice %40 {offsets = [0, 8], sizes = [16, 8], strides = [1, 1]} : vector<16x32xbf16> to vector<16x8xbf16>
    %73 = vector.shape_cast %72 : vector<16x8xbf16> to vector<2x8x8xbf16>
    %74 = vector.extract_strided_slice %44 {offsets = [0, 8], sizes = [16, 8], strides = [1, 1]} : vector<16x32xbf16> to vector<16x8xbf16>
    %75 = vector.shape_cast %74 : vector<16x8xbf16> to vector<2x8x8xbf16>
    %76 = vector.extract_strided_slice %48 {offsets = [0, 8], sizes = [16, 8], strides = [1, 1]} : vector<16x32xbf16> to vector<16x8xbf16>
    %77 = vector.shape_cast %76 : vector<16x8xbf16> to vector<2x8x8xbf16>
    "tpu.trace_start"() <{level = 10 : i32, message = "bqd,bkd->bqk"}> : () -> ()
    %cst_51 = arith.constant dense<0.000000e+00> : vector<2x8x8xf32>
    %78 = tpu.matmul %73, %75, %cst_51 {dimension_numbers = #tpu.dot_dimension_numbers<[2], [2], [1], [1], [0, 0, 0, 1, 1, 1], [0], [0]>} : vector<2x8x8xbf16>, vector<2x8x8xbf16>, vector<2x8x8xf32> -> vector<2x8x8xf32>
    "tpu.trace_stop"() : () -> ()
    %cst_52 = arith.constant dense<0xFF800000> : vector<2x8xf32>
    %79 = vector.multi_reduction <maximumf>, %78, %cst_52 [2] : vector<2x8x8xf32> to vector<2x8xf32>
    %80 = vector.shape_cast %79 : vector<2x8xf32> to vector<2x8x1xf32>
    %81 = vector.broadcast %80 : vector<2x8x1xf32> to vector<2x8x8xf32>
    %82 = arith.subf %78, %81 : vector<2x8x8xf32>
    %83 = math.exp %82 : vector<2x8x8xf32>
    %cst_53 = arith.constant dense<0.000000e+00> : vector<2x8xf32>
    %84 = vector.multi_reduction <add>, %83, %cst_53 [2] : vector<2x8x8xf32> to vector<2x8xf32>
    %85 = vector.shape_cast %84 : vector<2x8xf32> to vector<2x8x1xf32>
    %86 = tpu.reciprocal %85 {approx = true} : vector<2x8x1xf32> -> vector<2x8x1xf32>
    %87 = vector.broadcast %86 : vector<2x8x1xf32> to vector<2x8x8xf32>
    %88 = arith.mulf %83, %87 : vector<2x8x8xf32>
    %89 = arith.truncf %88 : vector<2x8x8xf32> to vector<2x8x8xbf16>
    "tpu.trace_start"() <{level = 10 : i32, message = "bqk,bkd->bqd"}> : () -> ()
    %cst_54 = arith.constant dense<0.000000e+00> : vector<2x8x8xf32>
    %90 = tpu.matmul %89, %77, %cst_54 {dimension_numbers = #tpu.dot_dimension_numbers<[2], [1], [1], [2], [0, 0, 0, 1, 1, 2], [0], [0]>} : vector<2x8x8xbf16>, vector<2x8x8xbf16>, vector<2x8x8xf32> -> vector<2x8x8xf32>
    "tpu.trace_stop"() : () -> ()
    %91 = vector.shape_cast %90 : vector<2x8x8xf32> to vector<16x8xf32>
    %92 = arith.truncf %91 : vector<16x8xf32> to vector<16x8xbf16>
    %93 = vector.extract_strided_slice %21 {offsets = [8, 0], sizes = [8, 32], strides = [1, 1]} : vector<32x32xbf16> to vector<8x32xbf16>
    %cst_55 = arith.constant dense<0.000000e+00> : vector<16x32xf32>
    %94 = tpu.matmul %92, %93, %cst_55 {dimension_numbers = #tpu.dot_dimension_numbers<[1], [0], [0], [1], [0, 0, 1, 1], [], []>} : vector<16x8xbf16>, vector<8x32xbf16>, vector<16x32xf32> -> vector<16x32xf32>
    %95 = arith.addf %71, %94 : vector<16x32xf32>
    %96 = vector.extract_strided_slice %40 {offsets = [0, 16], sizes = [16, 8], strides = [1, 1]} : vector<16x32xbf16> to vector<16x8xbf16>
    %97 = vector.shape_cast %96 : vector<16x8xbf16> to vector<2x8x8xbf16>
    %98 = vector.extract_strided_slice %44 {offsets = [0, 16], sizes = [16, 8], strides = [1, 1]} : vector<16x32xbf16> to vector<16x8xbf16>
    %99 = vector.shape_cast %98 : vector<16x8xbf16> to vector<2x8x8xbf16>
    %100 = vector.extract_strided_slice %48 {offsets = [0, 16], sizes = [16, 8], strides = [1, 1]} : vector<16x32xbf16> to vector<16x8xbf16>
    %101 = vector.shape_cast %100 : vector<16x8xbf16> to vector<2x8x8xbf16>
    "tpu.trace_start"() <{level = 10 : i32, message = "bqd,bkd->bqk"}> : () -> ()
    %cst_56 = arith.constant dense<0.000000e+00> : vector<2x8x8xf32>
    %102 = tpu.matmul %97, %99, %cst_56 {dimension_numbers = #tpu.dot_dimension_numbers<[2], [2], [1], [1], [0, 0, 0, 1, 1, 1], [0], [0]>} : vector<2x8x8xbf16>, vector<2x8x8xbf16>, vector<2x8x8xf32> -> vector<2x8x8xf32>
    "tpu.trace_stop"() : () -> ()
    %cst_57 = arith.constant dense<0xFF800000> : vector<2x8xf32>
    %103 = vector.multi_reduction <maximumf>, %102, %cst_57 [2] : vector<2x8x8xf32> to vector<2x8xf32>
    %104 = vector.shape_cast %103 : vector<2x8xf32> to vector<2x8x1xf32>
    %105 = vector.broadcast %104 : vector<2x8x1xf32> to vector<2x8x8xf32>
    %106 = arith.subf %102, %105 : vector<2x8x8xf32>
    %107 = math.exp %106 : vector<2x8x8xf32>
    %cst_58 = arith.constant dense<0.000000e+00> : vector<2x8xf32>
    %108 = vector.multi_reduction <add>, %107, %cst_58 [2] : vector<2x8x8xf32> to vector<2x8xf32>
    %109 = vector.shape_cast %108 : vector<2x8xf32> to vector<2x8x1xf32>
    %110 = tpu.reciprocal %109 {approx = true} : vector<2x8x1xf32> -> vector<2x8x1xf32>
    %111 = vector.broadcast %110 : vector<2x8x1xf32> to vector<2x8x8xf32>
    %112 = arith.mulf %107, %111 : vector<2x8x8xf32>
    %113 = arith.truncf %112 : vector<2x8x8xf32> to vector<2x8x8xbf16>
    "tpu.trace_start"() <{level = 10 : i32, message = "bqk,bkd->bqd"}> : () -> ()
    %cst_59 = arith.constant dense<0.000000e+00> : vector<2x8x8xf32>
    %114 = tpu.matmul %113, %101, %cst_59 {dimension_numbers = #tpu.dot_dimension_numbers<[2], [1], [1], [2], [0, 0, 0, 1, 1, 2], [0], [0]>} : vector<2x8x8xbf16>, vector<2x8x8xbf16>, vector<2x8x8xf32> -> vector<2x8x8xf32>
    "tpu.trace_stop"() : () -> ()
    %115 = vector.shape_cast %114 : vector<2x8x8xf32> to vector<16x8xf32>
    %116 = arith.truncf %115 : vector<16x8xf32> to vector<16x8xbf16>
    %117 = vector.extract_strided_slice %21 {offsets = [16, 0], sizes = [8, 32], strides = [1, 1]} : vector<32x32xbf16> to vector<8x32xbf16>
    %cst_60 = arith.constant dense<0.000000e+00> : vector<16x32xf32>
    %118 = tpu.matmul %116, %117, %cst_60 {dimension_numbers = #tpu.dot_dimension_numbers<[1], [0], [0], [1], [0, 0, 1, 1], [], []>} : vector<16x8xbf16>, vector<8x32xbf16>, vector<16x32xf32> -> vector<16x32xf32>
    %119 = arith.addf %95, %118 : vector<16x32xf32>
    %120 = vector.extract_strided_slice %40 {offsets = [0, 24], sizes = [16, 8], strides = [1, 1]} : vector<16x32xbf16> to vector<16x8xbf16>
    %121 = vector.shape_cast %120 : vector<16x8xbf16> to vector<2x8x8xbf16>
    %122 = vector.extract_strided_slice %44 {offsets = [0, 24], sizes = [16, 8], strides = [1, 1]} : vector<16x32xbf16> to vector<16x8xbf16>
    %123 = vector.shape_cast %122 : vector<16x8xbf16> to vector<2x8x8xbf16>
    %124 = vector.extract_strided_slice %48 {offsets = [0, 24], sizes = [16, 8], strides = [1, 1]} : vector<16x32xbf16> to vector<16x8xbf16>
    %125 = vector.shape_cast %124 : vector<16x8xbf16> to vector<2x8x8xbf16>
    "tpu.trace_start"() <{level = 10 : i32, message = "bqd,bkd->bqk"}> : () -> ()
    %cst_61 = arith.constant dense<0.000000e+00> : vector<2x8x8xf32>
    %126 = tpu.matmul %121, %123, %cst_61 {dimension_numbers = #tpu.dot_dimension_numbers<[2], [2], [1], [1], [0, 0, 0, 1, 1, 1], [0], [0]>} : vector<2x8x8xbf16>, vector<2x8x8xbf16>, vector<2x8x8xf32> -> vector<2x8x8xf32>
    "tpu.trace_stop"() : () -> ()
    %cst_62 = arith.constant dense<0xFF800000> : vector<2x8xf32>
    %127 = vector.multi_reduction <maximumf>, %126, %cst_62 [2] : vector<2x8x8xf32> to vector<2x8xf32>
    %128 = vector.shape_cast %127 : vector<2x8xf32> to vector<2x8x1xf32>
    %129 = vector.broadcast %128 : vector<2x8x1xf32> to vector<2x8x8xf32>
    %130 = arith.subf %126, %129 : vector<2x8x8xf32>
    %131 = math.exp %130 : vector<2x8x8xf32>
    %cst_63 = arith.constant dense<0.000000e+00> : vector<2x8xf32>
    %132 = vector.multi_reduction <add>, %131, %cst_63 [2] : vector<2x8x8xf32> to vector<2x8xf32>
    %133 = vector.shape_cast %132 : vector<2x8xf32> to vector<2x8x1xf32>
    %134 = tpu.reciprocal %133 {approx = true} : vector<2x8x1xf32> -> vector<2x8x1xf32>
    %135 = vector.broadcast %134 : vector<2x8x1xf32> to vector<2x8x8xf32>
    %136 = arith.mulf %131, %135 : vector<2x8x8xf32>
    %137 = arith.truncf %136 : vector<2x8x8xf32> to vector<2x8x8xbf16>
    "tpu.trace_start"() <{level = 10 : i32, message = "bqk,bkd->bqd"}> : () -> ()
    %cst_64 = arith.constant dense<0.000000e+00> : vector<2x8x8xf32>
    %138 = tpu.matmul %137, %125, %cst_64 {dimension_numbers = #tpu.dot_dimension_numbers<[2], [1], [1], [2], [0, 0, 0, 1, 1, 2], [0], [0]>} : vector<2x8x8xbf16>, vector<2x8x8xbf16>, vector<2x8x8xf32> -> vector<2x8x8xf32>
    "tpu.trace_stop"() : () -> ()
    %139 = vector.shape_cast %138 : vector<2x8x8xf32> to vector<16x8xf32>
    %140 = arith.truncf %139 : vector<16x8xf32> to vector<16x8xbf16>
    %141 = vector.extract_strided_slice %21 {offsets = [24, 0], sizes = [8, 32], strides = [1, 1]} : vector<32x32xbf16> to vector<8x32xbf16>
    %cst_65 = arith.constant dense<0.000000e+00> : vector<16x32xf32>
    %142 = tpu.matmul %140, %141, %cst_65 {dimension_numbers = #tpu.dot_dimension_numbers<[1], [0], [0], [1], [0, 0, 1, 1], [], []>} : vector<16x8xbf16>, vector<8x32xbf16>, vector<16x32xf32> -> vector<16x32xf32>
    %143 = arith.addf %119, %142 : vector<16x32xf32>
    %144 = vector.broadcast %29 : vector<1x32xf32> to vector<16x32xf32>
    %145 = arith.addf %143, %144 : vector<16x32xf32>
    %146 = arith.addf %13, %145 : vector<16x32xf32>
    %cst_66 = arith.constant dense<0.000000e+00> : vector<16xf32>
    %147 = vector.multi_reduction <add>, %146, %cst_66 [1] : vector<16x32xf32> to vector<16xf32>
    %148 = vector.shape_cast %147 : vector<16xf32> to vector<16x1xf32>
    %cst_67 = arith.constant 3.200000e+01 : f32
    %149 = vector.broadcast %cst_67 : f32 to vector<16x1xf32>
    %150 = arith.divf %148, %149 : vector<16x1xf32>
    %151 = arith.mulf %146, %146 : vector<16x32xf32>
    %cst_68 = arith.constant dense<0.000000e+00> : vector<16xf32>
    %152 = vector.multi_reduction <add>, %151, %cst_68 [1] : vector<16x32xf32> to vector<16xf32>
    %153 = vector.shape_cast %152 : vector<16xf32> to vector<16x1xf32>
    %cst_69 = arith.constant 3.200000e+01 : f32
    %154 = vector.broadcast %cst_69 : f32 to vector<16x1xf32>
    %155 = arith.divf %153, %154 : vector<16x1xf32>
    %156 = arith.mulf %150, %150 : vector<16x1xf32>
    %157 = arith.subf %155, %156 : vector<16x1xf32>
    %158 = vector.broadcast %150 : vector<16x1xf32> to vector<16x32xf32>
    %159 = arith.subf %146, %158 : vector<16x32xf32>
    %cst_70 = arith.constant 9.99999974E-6 : f32
    %160 = vector.broadcast %cst_70 : f32 to vector<16x1xf32>
    %161 = arith.addf %157, %160 : vector<16x1xf32>
    %162 = math.rsqrt %161 : vector<16x1xf32>
    %163 = vector.broadcast %162 : vector<16x1xf32> to vector<16x32xf32>
    %164 = arith.mulf %159, %163 : vector<16x32xf32>
    %165 = vector.broadcast %32 : vector<1x32xf32> to vector<16x32xf32>
    %166 = arith.mulf %164, %165 : vector<16x32xf32>
    %167 = vector.broadcast %33 : vector<1x32xf32> to vector<16x32xf32>
    %168 = arith.addf %166, %167 : vector<16x32xf32>
    %169 = arith.truncf %168 : vector<16x32xf32> to vector<16x32xbf16>
    %cst_71 = arith.constant dense<0.000000e+00> : vector<16x64xf32>
    %170 = tpu.matmul %169, %23, %cst_71 {dimension_numbers = #tpu.dot_dimension_numbers<[1], [0], [0], [1], [0, 0, 1, 1], [], []>} : vector<16x32xbf16>, vector<32x64xbf16>, vector<16x64xf32> -> vector<16x64xf32>
    %171 = vector.broadcast %30 : vector<1x64xf32> to vector<16x64xf32>
    %172 = arith.addf %170, %171 : vector<16x64xf32>
    %cst_72 = arith.constant 0.000000e+00 : f32
    %173 = vector.broadcast %cst_72 : f32 to vector<16x64xf32>
    %174 = arith.maximumf %172, %173 : vector<16x64xf32>
    %175 = arith.truncf %174 : vector<16x64xf32> to vector<16x64xbf16>
    %cst_73 = arith.constant dense<0.000000e+00> : vector<16x32xf32>
    %176 = tpu.matmul %175, %25, %cst_73 {dimension_numbers = #tpu.dot_dimension_numbers<[1], [0], [0], [1], [0, 0, 1, 1], [], []>} : vector<16x64xbf16>, vector<64x32xbf16>, vector<16x32xf32> -> vector<16x32xf32>
    %177 = vector.broadcast %31 : vector<1x32xf32> to vector<16x32xf32>
    %178 = arith.addf %176, %177 : vector<16x32xf32>
    %179 = arith.addf %168, %178 : vector<16x32xf32>
    %cst_74 = arith.constant dense<0.000000e+00> : vector<16xf32>
    %180 = vector.multi_reduction <add>, %179, %cst_74 [1] : vector<16x32xf32> to vector<16xf32>
    %181 = vector.shape_cast %180 : vector<16xf32> to vector<16x1xf32>
    %cst_75 = arith.constant 3.200000e+01 : f32
    %182 = vector.broadcast %cst_75 : f32 to vector<16x1xf32>
    %183 = arith.divf %181, %182 : vector<16x1xf32>
    %184 = arith.mulf %179, %179 : vector<16x32xf32>
    %cst_76 = arith.constant dense<0.000000e+00> : vector<16xf32>
    %185 = vector.multi_reduction <add>, %184, %cst_76 [1] : vector<16x32xf32> to vector<16xf32>
    %186 = vector.shape_cast %185 : vector<16xf32> to vector<16x1xf32>
    %cst_77 = arith.constant 3.200000e+01 : f32
    %187 = vector.broadcast %cst_77 : f32 to vector<16x1xf32>
    %188 = arith.divf %186, %187 : vector<16x1xf32>
    %189 = arith.mulf %183, %183 : vector<16x1xf32>
    %190 = arith.subf %188, %189 : vector<16x1xf32>
    %191 = vector.broadcast %183 : vector<16x1xf32> to vector<16x32xf32>
    %192 = arith.subf %179, %191 : vector<16x32xf32>
    %cst_78 = arith.constant 9.99999974E-6 : f32
    %193 = vector.broadcast %cst_78 : f32 to vector<16x1xf32>
    %194 = arith.addf %190, %193 : vector<16x1xf32>
    %195 = math.rsqrt %194 : vector<16x1xf32>
    %196 = vector.broadcast %195 : vector<16x1xf32> to vector<16x32xf32>
    %197 = arith.mulf %192, %196 : vector<16x32xf32>
    %198 = vector.broadcast %34 : vector<1x32xf32> to vector<16x32xf32>
    %199 = arith.mulf %197, %198 : vector<16x32xf32>
    %200 = vector.broadcast %35 : vector<1x32xf32> to vector<16x32xf32>
    %201 = arith.addf %199, %200 : vector<16x32xf32>
    %c1 = arith.constant 1 : index
    %c0_79 = arith.constant 0 : index
    %c0_80 = arith.constant 0 : index
    %202 = vector.load %arg3[%c1, %c0_79, %c0_80] : memref<2x32x32xbf16, #tpu.memory_space<vmem>>, vector<1x32x32xbf16>
    %203 = vector.shape_cast %202 : vector<1x32x32xbf16> to vector<32x32xbf16>
    %c1_81 = arith.constant 1 : index
    %c0_82 = arith.constant 0 : index
    %c0_83 = arith.constant 0 : index
    %204 = vector.load %arg5[%c1_81, %c0_82, %c0_83] : memref<2x32x32xbf16, #tpu.memory_space<vmem>>, vector<1x32x32xbf16>
    %205 = vector.shape_cast %204 : vector<1x32x32xbf16> to vector<32x32xbf16>
    %c1_84 = arith.constant 1 : index
    %c0_85 = arith.constant 0 : index
    %c0_86 = arith.constant 0 : index
    %206 = vector.load %arg7[%c1_84, %c0_85, %c0_86] : memref<2x32x32xbf16, #tpu.memory_space<vmem>>, vector<1x32x32xbf16>
    %207 = vector.shape_cast %206 : vector<1x32x32xbf16> to vector<32x32xbf16>
    %c1_87 = arith.constant 1 : index
    %c0_88 = arith.constant 0 : index
    %c0_89 = arith.constant 0 : index
    %208 = vector.load %arg9[%c1_87, %c0_88, %c0_89] : memref<2x32x32xbf16, #tpu.memory_space<vmem>>, vector<1x32x32xbf16>
    %209 = vector.shape_cast %208 : vector<1x32x32xbf16> to vector<32x32xbf16>
    %c1_90 = arith.constant 1 : index
    %c0_91 = arith.constant 0 : index
    %c0_92 = arith.constant 0 : index
    %210 = vector.load %arg13[%c1_90, %c0_91, %c0_92] : memref<2x32x64xbf16, #tpu.memory_space<vmem>>, vector<1x32x64xbf16>
    %211 = vector.shape_cast %210 : vector<1x32x64xbf16> to vector<32x64xbf16>
    %c1_93 = arith.constant 1 : index
    %c0_94 = arith.constant 0 : index
    %c0_95 = arith.constant 0 : index
    %212 = vector.load %arg15[%c1_93, %c0_94, %c0_95] : memref<2x64x32xbf16, #tpu.memory_space<vmem>>, vector<1x64x32xbf16>
    %213 = vector.shape_cast %212 : vector<1x64x32xbf16> to vector<64x32xbf16>
    %c1_96 = arith.constant 1 : index
    %c0_97 = arith.constant 0 : index
    %214 = vector.load %arg4[%c1_96, %c0_97] : memref<2x32xf32, #tpu.memory_space<vmem>>, vector<1x32xf32>
    %c1_98 = arith.constant 1 : index
    %c0_99 = arith.constant 0 : index
    %215 = vector.load %arg6[%c1_98, %c0_99] : memref<2x32xf32, #tpu.memory_space<vmem>>, vector<1x32xf32>
    %c1_100 = arith.constant 1 : index
    %c0_101 = arith.constant 0 : index
    %216 = vector.load %arg8[%c1_100, %c0_101] : memref<2x32xf32, #tpu.memory_space<vmem>>, vector<1x32xf32>
    %c1_102 = arith.constant 1 : index
    %c0_103 = arith.constant 0 : index
    %217 = vector.load %arg10[%c1_102, %c0_103] : memref<2x32xf32, #tpu.memory_space<vmem>>, vector<1x32xf32>
    %c1_104 = arith.constant 1 : index
    %c0_105 = arith.constant 0 : index
    %218 = vector.load %arg14[%c1_104, %c0_105] : memref<2x64xf32, #tpu.memory_space<vmem>>, vector<1x64xf32>
    %c1_106 = arith.constant 1 : index
    %c0_107 = arith.constant 0 : index
    %219 = vector.load %arg16[%c1_106, %c0_107] : memref<2x32xf32, #tpu.memory_space<vmem>>, vector<1x32xf32>
    %c1_108 = arith.constant 1 : index
    %c0_109 = arith.constant 0 : index
    %220 = vector.load %arg11[%c1_108, %c0_109] : memref<2x32xf32, #tpu.memory_space<vmem>>, vector<1x32xf32>
    %c1_110 = arith.constant 1 : index
    %c0_111 = arith.constant 0 : index
    %221 = vector.load %arg12[%c1_110, %c0_111] : memref<2x32xf32, #tpu.memory_space<vmem>>, vector<1x32xf32>
    %c1_112 = arith.constant 1 : index
    %c0_113 = arith.constant 0 : index
    %222 = vector.load %arg17[%c1_112, %c0_113] : memref<2x32xf32, #tpu.memory_space<vmem>>, vector<1x32xf32>
    %c1_114 = arith.constant 1 : index
    %c0_115 = arith.constant 0 : index
    %223 = vector.load %arg18[%c1_114, %c0_115] : memref<2x32xf32, #tpu.memory_space<vmem>>, vector<1x32xf32>
    %224 = arith.truncf %201 : vector<16x32xf32> to vector<16x32xbf16>
    %cst_116 = arith.constant dense<0.000000e+00> : vector<16x32xf32>
    %225 = tpu.matmul %224, %203, %cst_116 {dimension_numbers = #tpu.dot_dimension_numbers<[1], [0], [0], [1], [0, 0, 1, 1], [], []>} : vector<16x32xbf16>, vector<32x32xbf16>, vector<16x32xf32> -> vector<16x32xf32>
    %226 = vector.broadcast %214 : vector<1x32xf32> to vector<16x32xf32>
    %227 = arith.addf %225, %226 : vector<16x32xf32>
    %228 = arith.truncf %227 : vector<16x32xf32> to vector<16x32xbf16>
    %cst_117 = arith.constant dense<0.000000e+00> : vector<16x32xf32>
    %229 = tpu.matmul %224, %205, %cst_117 {dimension_numbers = #tpu.dot_dimension_numbers<[1], [0], [0], [1], [0, 0, 1, 1], [], []>} : vector<16x32xbf16>, vector<32x32xbf16>, vector<16x32xf32> -> vector<16x32xf32>
    %230 = vector.broadcast %215 : vector<1x32xf32> to vector<16x32xf32>
    %231 = arith.addf %229, %230 : vector<16x32xf32>
    %232 = arith.truncf %231 : vector<16x32xf32> to vector<16x32xbf16>
    %cst_118 = arith.constant dense<0.000000e+00> : vector<16x32xf32>
    %233 = tpu.matmul %224, %207, %cst_118 {dimension_numbers = #tpu.dot_dimension_numbers<[1], [0], [0], [1], [0, 0, 1, 1], [], []>} : vector<16x32xbf16>, vector<32x32xbf16>, vector<16x32xf32> -> vector<16x32xf32>
    %234 = vector.broadcast %216 : vector<1x32xf32> to vector<16x32xf32>
    %235 = arith.addf %233, %234 : vector<16x32xf32>
    %236 = arith.truncf %235 : vector<16x32xf32> to vector<16x32xbf16>
    %237 = vector.extract_strided_slice %228 {offsets = [0, 0], sizes = [16, 8], strides = [1, 1]} : vector<16x32xbf16> to vector<16x8xbf16>
    %238 = vector.shape_cast %237 : vector<16x8xbf16> to vector<2x8x8xbf16>
    %239 = vector.extract_strided_slice %232 {offsets = [0, 0], sizes = [16, 8], strides = [1, 1]} : vector<16x32xbf16> to vector<16x8xbf16>
    %240 = vector.shape_cast %239 : vector<16x8xbf16> to vector<2x8x8xbf16>
    %241 = vector.extract_strided_slice %236 {offsets = [0, 0], sizes = [16, 8], strides = [1, 1]} : vector<16x32xbf16> to vector<16x8xbf16>
    %242 = vector.shape_cast %241 : vector<16x8xbf16> to vector<2x8x8xbf16>
    "tpu.trace_start"() <{level = 10 : i32, message = "bqd,bkd->bqk"}> : () -> ()
    %cst_119 = arith.constant dense<0.000000e+00> : vector<2x8x8xf32>
    %243 = tpu.matmul %238, %240, %cst_119 {dimension_numbers = #tpu.dot_dimension_numbers<[2], [2], [1], [1], [0, 0, 0, 1, 1, 1], [0], [0]>} : vector<2x8x8xbf16>, vector<2x8x8xbf16>, vector<2x8x8xf32> -> vector<2x8x8xf32>
    "tpu.trace_stop"() : () -> ()
    %cst_120 = arith.constant dense<0xFF800000> : vector<2x8xf32>
    %244 = vector.multi_reduction <maximumf>, %243, %cst_120 [2] : vector<2x8x8xf32> to vector<2x8xf32>
    %245 = vector.shape_cast %244 : vector<2x8xf32> to vector<2x8x1xf32>
    %246 = vector.broadcast %245 : vector<2x8x1xf32> to vector<2x8x8xf32>
    %247 = arith.subf %243, %246 : vector<2x8x8xf32>
    %248 = math.exp %247 : vector<2x8x8xf32>
    %cst_121 = arith.constant dense<0.000000e+00> : vector<2x8xf32>
    %249 = vector.multi_reduction <add>, %248, %cst_121 [2] : vector<2x8x8xf32> to vector<2x8xf32>
    %250 = vector.shape_cast %249 : vector<2x8xf32> to vector<2x8x1xf32>
    %251 = tpu.reciprocal %250 {approx = true} : vector<2x8x1xf32> -> vector<2x8x1xf32>
    %252 = vector.broadcast %251 : vector<2x8x1xf32> to vector<2x8x8xf32>
    %253 = arith.mulf %248, %252 : vector<2x8x8xf32>
    %254 = arith.truncf %253 : vector<2x8x8xf32> to vector<2x8x8xbf16>
    "tpu.trace_start"() <{level = 10 : i32, message = "bqk,bkd->bqd"}> : () -> ()
    %cst_122 = arith.constant dense<0.000000e+00> : vector<2x8x8xf32>
    %255 = tpu.matmul %254, %242, %cst_122 {dimension_numbers = #tpu.dot_dimension_numbers<[2], [1], [1], [2], [0, 0, 0, 1, 1, 2], [0], [0]>} : vector<2x8x8xbf16>, vector<2x8x8xbf16>, vector<2x8x8xf32> -> vector<2x8x8xf32>
    "tpu.trace_stop"() : () -> ()
    %256 = vector.shape_cast %255 : vector<2x8x8xf32> to vector<16x8xf32>
    %257 = arith.truncf %256 : vector<16x8xf32> to vector<16x8xbf16>
    %258 = vector.extract_strided_slice %209 {offsets = [0, 0], sizes = [8, 32], strides = [1, 1]} : vector<32x32xbf16> to vector<8x32xbf16>
    %cst_123 = arith.constant dense<0.000000e+00> : vector<16x32xf32>
    %259 = tpu.matmul %257, %258, %cst_123 {dimension_numbers = #tpu.dot_dimension_numbers<[1], [0], [0], [1], [0, 0, 1, 1], [], []>} : vector<16x8xbf16>, vector<8x32xbf16>, vector<16x32xf32> -> vector<16x32xf32>
    %260 = vector.extract_strided_slice %228 {offsets = [0, 8], sizes = [16, 8], strides = [1, 1]} : vector<16x32xbf16> to vector<16x8xbf16>
    %261 = vector.shape_cast %260 : vector<16x8xbf16> to vector<2x8x8xbf16>
    %262 = vector.extract_strided_slice %232 {offsets = [0, 8], sizes = [16, 8], strides = [1, 1]} : vector<16x32xbf16> to vector<16x8xbf16>
    %263 = vector.shape_cast %262 : vector<16x8xbf16> to vector<2x8x8xbf16>
    %264 = vector.extract_strided_slice %236 {offsets = [0, 8], sizes = [16, 8], strides = [1, 1]} : vector<16x32xbf16> to vector<16x8xbf16>
    %265 = vector.shape_cast %264 : vector<16x8xbf16> to vector<2x8x8xbf16>
    "tpu.trace_start"() <{level = 10 : i32, message = "bqd,bkd->bqk"}> : () -> ()
    %cst_124 = arith.constant dense<0.000000e+00> : vector<2x8x8xf32>
    %266 = tpu.matmul %261, %263, %cst_124 {dimension_numbers = #tpu.dot_dimension_numbers<[2], [2], [1], [1], [0, 0, 0, 1, 1, 1], [0], [0]>} : vector<2x8x8xbf16>, vector<2x8x8xbf16>, vector<2x8x8xf32> -> vector<2x8x8xf32>
    "tpu.trace_stop"() : () -> ()
    %cst_125 = arith.constant dense<0xFF800000> : vector<2x8xf32>
    %267 = vector.multi_reduction <maximumf>, %266, %cst_125 [2] : vector<2x8x8xf32> to vector<2x8xf32>
    %268 = vector.shape_cast %267 : vector<2x8xf32> to vector<2x8x1xf32>
    %269 = vector.broadcast %268 : vector<2x8x1xf32> to vector<2x8x8xf32>
    %270 = arith.subf %266, %269 : vector<2x8x8xf32>
    %271 = math.exp %270 : vector<2x8x8xf32>
    %cst_126 = arith.constant dense<0.000000e+00> : vector<2x8xf32>
    %272 = vector.multi_reduction <add>, %271, %cst_126 [2] : vector<2x8x8xf32> to vector<2x8xf32>
    %273 = vector.shape_cast %272 : vector<2x8xf32> to vector<2x8x1xf32>
    %274 = tpu.reciprocal %273 {approx = true} : vector<2x8x1xf32> -> vector<2x8x1xf32>
    %275 = vector.broadcast %274 : vector<2x8x1xf32> to vector<2x8x8xf32>
    %276 = arith.mulf %271, %275 : vector<2x8x8xf32>
    %277 = arith.truncf %276 : vector<2x8x8xf32> to vector<2x8x8xbf16>
    "tpu.trace_start"() <{level = 10 : i32, message = "bqk,bkd->bqd"}> : () -> ()
    %cst_127 = arith.constant dense<0.000000e+00> : vector<2x8x8xf32>
    %278 = tpu.matmul %277, %265, %cst_127 {dimension_numbers = #tpu.dot_dimension_numbers<[2], [1], [1], [2], [0, 0, 0, 1, 1, 2], [0], [0]>} : vector<2x8x8xbf16>, vector<2x8x8xbf16>, vector<2x8x8xf32> -> vector<2x8x8xf32>
    "tpu.trace_stop"() : () -> ()
    %279 = vector.shape_cast %278 : vector<2x8x8xf32> to vector<16x8xf32>
    %280 = arith.truncf %279 : vector<16x8xf32> to vector<16x8xbf16>
    %281 = vector.extract_strided_slice %209 {offsets = [8, 0], sizes = [8, 32], strides = [1, 1]} : vector<32x32xbf16> to vector<8x32xbf16>
    %cst_128 = arith.constant dense<0.000000e+00> : vector<16x32xf32>
    %282 = tpu.matmul %280, %281, %cst_128 {dimension_numbers = #tpu.dot_dimension_numbers<[1], [0], [0], [1], [0, 0, 1, 1], [], []>} : vector<16x8xbf16>, vector<8x32xbf16>, vector<16x32xf32> -> vector<16x32xf32>
    %283 = arith.addf %259, %282 : vector<16x32xf32>
    %284 = vector.extract_strided_slice %228 {offsets = [0, 16], sizes = [16, 8], strides = [1, 1]} : vector<16x32xbf16> to vector<16x8xbf16>
    %285 = vector.shape_cast %284 : vector<16x8xbf16> to vector<2x8x8xbf16>
    %286 = vector.extract_strided_slice %232 {offsets = [0, 16], sizes = [16, 8], strides = [1, 1]} : vector<16x32xbf16> to vector<16x8xbf16>
    %287 = vector.shape_cast %286 : vector<16x8xbf16> to vector<2x8x8xbf16>
    %288 = vector.extract_strided_slice %236 {offsets = [0, 16], sizes = [16, 8], strides = [1, 1]} : vector<16x32xbf16> to vector<16x8xbf16>
    %289 = vector.shape_cast %288 : vector<16x8xbf16> to vector<2x8x8xbf16>
    "tpu.trace_start"() <{level = 10 : i32, message = "bqd,bkd->bqk"}> : () -> ()
    %cst_129 = arith.constant dense<0.000000e+00> : vector<2x8x8xf32>
    %290 = tpu.matmul %285, %287, %cst_129 {dimension_numbers = #tpu.dot_dimension_numbers<[2], [2], [1], [1], [0, 0, 0, 1, 1, 1], [0], [0]>} : vector<2x8x8xbf16>, vector<2x8x8xbf16>, vector<2x8x8xf32> -> vector<2x8x8xf32>
    "tpu.trace_stop"() : () -> ()
    %cst_130 = arith.constant dense<0xFF800000> : vector<2x8xf32>
    %291 = vector.multi_reduction <maximumf>, %290, %cst_130 [2] : vector<2x8x8xf32> to vector<2x8xf32>
    %292 = vector.shape_cast %291 : vector<2x8xf32> to vector<2x8x1xf32>
    %293 = vector.broadcast %292 : vector<2x8x1xf32> to vector<2x8x8xf32>
    %294 = arith.subf %290, %293 : vector<2x8x8xf32>
    %295 = math.exp %294 : vector<2x8x8xf32>
    %cst_131 = arith.constant dense<0.000000e+00> : vector<2x8xf32>
    %296 = vector.multi_reduction <add>, %295, %cst_131 [2] : vector<2x8x8xf32> to vector<2x8xf32>
    %297 = vector.shape_cast %296 : vector<2x8xf32> to vector<2x8x1xf32>
    %298 = tpu.reciprocal %297 {approx = true} : vector<2x8x1xf32> -> vector<2x8x1xf32>
    %299 = vector.broadcast %298 : vector<2x8x1xf32> to vector<2x8x8xf32>
    %300 = arith.mulf %295, %299 : vector<2x8x8xf32>
    %301 = arith.truncf %300 : vector<2x8x8xf32> to vector<2x8x8xbf16>
    "tpu.trace_start"() <{level = 10 : i32, message = "bqk,bkd->bqd"}> : () -> ()
    %cst_132 = arith.constant dense<0.000000e+00> : vector<2x8x8xf32>
    %302 = tpu.matmul %301, %289, %cst_132 {dimension_numbers = #tpu.dot_dimension_numbers<[2], [1], [1], [2], [0, 0, 0, 1, 1, 2], [0], [0]>} : vector<2x8x8xbf16>, vector<2x8x8xbf16>, vector<2x8x8xf32> -> vector<2x8x8xf32>
    "tpu.trace_stop"() : () -> ()
    %303 = vector.shape_cast %302 : vector<2x8x8xf32> to vector<16x8xf32>
    %304 = arith.truncf %303 : vector<16x8xf32> to vector<16x8xbf16>
    %305 = vector.extract_strided_slice %209 {offsets = [16, 0], sizes = [8, 32], strides = [1, 1]} : vector<32x32xbf16> to vector<8x32xbf16>
    %cst_133 = arith.constant dense<0.000000e+00> : vector<16x32xf32>
    %306 = tpu.matmul %304, %305, %cst_133 {dimension_numbers = #tpu.dot_dimension_numbers<[1], [0], [0], [1], [0, 0, 1, 1], [], []>} : vector<16x8xbf16>, vector<8x32xbf16>, vector<16x32xf32> -> vector<16x32xf32>
    %307 = arith.addf %283, %306 : vector<16x32xf32>
    %308 = vector.extract_strided_slice %228 {offsets = [0, 24], sizes = [16, 8], strides = [1, 1]} : vector<16x32xbf16> to vector<16x8xbf16>
    %309 = vector.shape_cast %308 : vector<16x8xbf16> to vector<2x8x8xbf16>
    %310 = vector.extract_strided_slice %232 {offsets = [0, 24], sizes = [16, 8], strides = [1, 1]} : vector<16x32xbf16> to vector<16x8xbf16>
    %311 = vector.shape_cast %310 : vector<16x8xbf16> to vector<2x8x8xbf16>
    %312 = vector.extract_strided_slice %236 {offsets = [0, 24], sizes = [16, 8], strides = [1, 1]} : vector<16x32xbf16> to vector<16x8xbf16>
    %313 = vector.shape_cast %312 : vector<16x8xbf16> to vector<2x8x8xbf16>
    "tpu.trace_start"() <{level = 10 : i32, message = "bqd,bkd->bqk"}> : () -> ()
    %cst_134 = arith.constant dense<0.000000e+00> : vector<2x8x8xf32>
    %314 = tpu.matmul %309, %311, %cst_134 {dimension_numbers = #tpu.dot_dimension_numbers<[2], [2], [1], [1], [0, 0, 0, 1, 1, 1], [0], [0]>} : vector<2x8x8xbf16>, vector<2x8x8xbf16>, vector<2x8x8xf32> -> vector<2x8x8xf32>
    "tpu.trace_stop"() : () -> ()
    %cst_135 = arith.constant dense<0xFF800000> : vector<2x8xf32>
    %315 = vector.multi_reduction <maximumf>, %314, %cst_135 [2] : vector<2x8x8xf32> to vector<2x8xf32>
    %316 = vector.shape_cast %315 : vector<2x8xf32> to vector<2x8x1xf32>
    %317 = vector.broadcast %316 : vector<2x8x1xf32> to vector<2x8x8xf32>
    %318 = arith.subf %314, %317 : vector<2x8x8xf32>
    %319 = math.exp %318 : vector<2x8x8xf32>
    %cst_136 = arith.constant dense<0.000000e+00> : vector<2x8xf32>
    %320 = vector.multi_reduction <add>, %319, %cst_136 [2] : vector<2x8x8xf32> to vector<2x8xf32>
    %321 = vector.shape_cast %320 : vector<2x8xf32> to vector<2x8x1xf32>
    %322 = tpu.reciprocal %321 {approx = true} : vector<2x8x1xf32> -> vector<2x8x1xf32>
    %323 = vector.broadcast %322 : vector<2x8x1xf32> to vector<2x8x8xf32>
    %324 = arith.mulf %319, %323 : vector<2x8x8xf32>
    %325 = arith.truncf %324 : vector<2x8x8xf32> to vector<2x8x8xbf16>
    "tpu.trace_start"() <{level = 10 : i32, message = "bqk,bkd->bqd"}> : () -> ()
    %cst_137 = arith.constant dense<0.000000e+00> : vector<2x8x8xf32>
    %326 = tpu.matmul %325, %313, %cst_137 {dimension_numbers = #tpu.dot_dimension_numbers<[2], [1], [1], [2], [0, 0, 0, 1, 1, 2], [0], [0]>} : vector<2x8x8xbf16>, vector<2x8x8xbf16>, vector<2x8x8xf32> -> vector<2x8x8xf32>
    "tpu.trace_stop"() : () -> ()
    %327 = vector.shape_cast %326 : vector<2x8x8xf32> to vector<16x8xf32>
    %328 = arith.truncf %327 : vector<16x8xf32> to vector<16x8xbf16>
    %329 = vector.extract_strided_slice %209 {offsets = [24, 0], sizes = [8, 32], strides = [1, 1]} : vector<32x32xbf16> to vector<8x32xbf16>
    %cst_138 = arith.constant dense<0.000000e+00> : vector<16x32xf32>
    %330 = tpu.matmul %328, %329, %cst_138 {dimension_numbers = #tpu.dot_dimension_numbers<[1], [0], [0], [1], [0, 0, 1, 1], [], []>} : vector<16x8xbf16>, vector<8x32xbf16>, vector<16x32xf32> -> vector<16x32xf32>
    %331 = arith.addf %307, %330 : vector<16x32xf32>
    %332 = vector.broadcast %217 : vector<1x32xf32> to vector<16x32xf32>
    %333 = arith.addf %331, %332 : vector<16x32xf32>
    %334 = arith.addf %201, %333 : vector<16x32xf32>
    %cst_139 = arith.constant dense<0.000000e+00> : vector<16xf32>
    %335 = vector.multi_reduction <add>, %334, %cst_139 [1] : vector<16x32xf32> to vector<16xf32>
    %336 = vector.shape_cast %335 : vector<16xf32> to vector<16x1xf32>
    %cst_140 = arith.constant 3.200000e+01 : f32
    %337 = vector.broadcast %cst_140 : f32 to vector<16x1xf32>
    %338 = arith.divf %336, %337 : vector<16x1xf32>
    %339 = arith.mulf %334, %334 : vector<16x32xf32>
    %cst_141 = arith.constant dense<0.000000e+00> : vector<16xf32>
    %340 = vector.multi_reduction <add>, %339, %cst_141 [1] : vector<16x32xf32> to vector<16xf32>
    %341 = vector.shape_cast %340 : vector<16xf32> to vector<16x1xf32>
    %cst_142 = arith.constant 3.200000e+01 : f32
    %342 = vector.broadcast %cst_142 : f32 to vector<16x1xf32>
    %343 = arith.divf %341, %342 : vector<16x1xf32>
    %344 = arith.mulf %338, %338 : vector<16x1xf32>
    %345 = arith.subf %343, %344 : vector<16x1xf32>
    %346 = vector.broadcast %338 : vector<16x1xf32> to vector<16x32xf32>
    %347 = arith.subf %334, %346 : vector<16x32xf32>
    %cst_143 = arith.constant 9.99999974E-6 : f32
    %348 = vector.broadcast %cst_143 : f32 to vector<16x1xf32>
    %349 = arith.addf %345, %348 : vector<16x1xf32>
    %350 = math.rsqrt %349 : vector<16x1xf32>
    %351 = vector.broadcast %350 : vector<16x1xf32> to vector<16x32xf32>
    %352 = arith.mulf %347, %351 : vector<16x32xf32>
    %353 = vector.broadcast %220 : vector<1x32xf32> to vector<16x32xf32>
    %354 = arith.mulf %352, %353 : vector<16x32xf32>
    %355 = vector.broadcast %221 : vector<1x32xf32> to vector<16x32xf32>
    %356 = arith.addf %354, %355 : vector<16x32xf32>
    %357 = arith.truncf %356 : vector<16x32xf32> to vector<16x32xbf16>
    %cst_144 = arith.constant dense<0.000000e+00> : vector<16x64xf32>
    %358 = tpu.matmul %357, %211, %cst_144 {dimension_numbers = #tpu.dot_dimension_numbers<[1], [0], [0], [1], [0, 0, 1, 1], [], []>} : vector<16x32xbf16>, vector<32x64xbf16>, vector<16x64xf32> -> vector<16x64xf32>
    %359 = vector.broadcast %218 : vector<1x64xf32> to vector<16x64xf32>
    %360 = arith.addf %358, %359 : vector<16x64xf32>
    %cst_145 = arith.constant 0.000000e+00 : f32
    %361 = vector.broadcast %cst_145 : f32 to vector<16x64xf32>
    %362 = arith.maximumf %360, %361 : vector<16x64xf32>
    %363 = arith.truncf %362 : vector<16x64xf32> to vector<16x64xbf16>
    %cst_146 = arith.constant dense<0.000000e+00> : vector<16x32xf32>
    %364 = tpu.matmul %363, %213, %cst_146 {dimension_numbers = #tpu.dot_dimension_numbers<[1], [0], [0], [1], [0, 0, 1, 1], [], []>} : vector<16x64xbf16>, vector<64x32xbf16>, vector<16x32xf32> -> vector<16x32xf32>
    %365 = vector.broadcast %219 : vector<1x32xf32> to vector<16x32xf32>
    %366 = arith.addf %364, %365 : vector<16x32xf32>
    %367 = arith.addf %356, %366 : vector<16x32xf32>
    %cst_147 = arith.constant dense<0.000000e+00> : vector<16xf32>
    %368 = vector.multi_reduction <add>, %367, %cst_147 [1] : vector<16x32xf32> to vector<16xf32>
    %369 = vector.shape_cast %368 : vector<16xf32> to vector<16x1xf32>
    %cst_148 = arith.constant 3.200000e+01 : f32
    %370 = vector.broadcast %cst_148 : f32 to vector<16x1xf32>
    %371 = arith.divf %369, %370 : vector<16x1xf32>
    %372 = arith.mulf %367, %367 : vector<16x32xf32>
    %cst_149 = arith.constant dense<0.000000e+00> : vector<16xf32>
    %373 = vector.multi_reduction <add>, %372, %cst_149 [1] : vector<16x32xf32> to vector<16xf32>
    %374 = vector.shape_cast %373 : vector<16xf32> to vector<16x1xf32>
    %cst_150 = arith.constant 3.200000e+01 : f32
    %375 = vector.broadcast %cst_150 : f32 to vector<16x1xf32>
    %376 = arith.divf %374, %375 : vector<16x1xf32>
    %377 = arith.mulf %371, %371 : vector<16x1xf32>
    %378 = arith.subf %376, %377 : vector<16x1xf32>
    %379 = vector.broadcast %371 : vector<16x1xf32> to vector<16x32xf32>
    %380 = arith.subf %367, %379 : vector<16x32xf32>
    %cst_151 = arith.constant 9.99999974E-6 : f32
    %381 = vector.broadcast %cst_151 : f32 to vector<16x1xf32>
    %382 = arith.addf %378, %381 : vector<16x1xf32>
    %383 = math.rsqrt %382 : vector<16x1xf32>
    %384 = vector.broadcast %383 : vector<16x1xf32> to vector<16x32xf32>
    %385 = arith.mulf %380, %384 : vector<16x32xf32>
    %386 = vector.broadcast %222 : vector<1x32xf32> to vector<16x32xf32>
    %387 = arith.mulf %385, %386 : vector<16x32xf32>
    %388 = vector.broadcast %223 : vector<1x32xf32> to vector<16x32xf32>
    %389 = arith.addf %387, %388 : vector<16x32xf32>
    %390 = vector.shape_cast %389 : vector<16x32xf32> to vector<2x8x32xf32>
    %cst_152 = arith.constant dense<0.000000e+00> : vector<2x32xf32>
    %391 = vector.multi_reduction <add>, %390, %cst_152 [1] : vector<2x8x32xf32> to vector<2x32xf32>
    %cst_153 = arith.constant 8.000000e+00 : f32
    %392 = vector.broadcast %cst_153 : f32 to vector<2x32xf32>
    %393 = arith.divf %391, %392 : vector<2x32xf32>
    %c0_154 = arith.constant 0 : index
    %c0_155 = arith.constant 0 : index
    %394 = vector.load %arg19[%c0_154, %c0_155] : memref<32x32xf32, #tpu.memory_space<vmem>>, vector<32x32xf32>
    %cst_156 = arith.constant dense<0.000000e+00> : vector<2x32xf32>
    %395 = tpu.matmul %393, %394, %cst_156 {dimension_numbers = #tpu.dot_dimension_numbers<[1], [0], [0], [1], [0, 0, 1, 1], [], []>} : vector<2x32xf32>, vector<32x32xf32>, vector<2x32xf32> -> vector<2x32xf32>
    %c0_157 = arith.constant 0 : index
    %c0_158 = arith.constant 0 : index
    %396 = vector.load %arg20[%c0_157, %c0_158] : memref<1x32xf32, #tpu.memory_space<vmem>>, vector<1x32xf32>
    %397 = vector.broadcast %396 : vector<1x32xf32> to vector<2x32xf32>
    %398 = arith.addf %395, %397 : vector<2x32xf32>
    %c0_159 = arith.constant 0 : index
    %c0_160 = arith.constant 0 : index
    %399 = vector.load %arg21[%c0_159, %c0_160] : memref<2x32xf32, #tpu.memory_space<vmem>>, vector<2x32xf32>
    tpu.vector_store %arg21[%c0_159, %c0_160], %398 {strides = array<i32>} : memref<2x32xf32, #tpu.memory_space<vmem>>, vector<2x32xf32>,
    return
  }
}

</mosaic_0001>

<llo_original>
// kernel: transformer_forward.1
$region0: #{transformer_forward.1}
  #allocation0 [shape = 'u32[]', space=smem, size = 0x4, offset = 0x4, fixed_abs, tag = 'smem constant byte address 0x4 - core index']
  #allocation1 [shape = 'u32[144,128]{1,0:T(1,128)}', space=vmem, size = 0x12000, scoped, tag = 'internal scratch']
  %s0 = inlined_call_operand.vmem [shape: s32[16,1], index: 0, kind: input, shape index: {}]
  %s1 = inlined_call_operand.vmem [shape: f32[256,32], index: 1, kind: input, shape index: {}]
  %s2 = inlined_call_operand.vmem [shape: f32[8,32], index: 2, kind: input, shape index: {}]
  %s3 = inlined_call_operand.vmem [shape: bf16[2,32,32], index: 3, kind: input, shape index: {}]
  %s4 = inlined_call_operand.vmem [shape: f32[2,32], index: 4, kind: input, shape index: {}]
  %s5 = inlined_call_operand.vmem [shape: bf16[2,32,32], index: 5, kind: input, shape index: {}]
  %s6 = inlined_call_operand.vmem [shape: f32[2,32], index: 6, kind: input, shape index: {}]
  %s7 = inlined_call_operand.vmem [shape: bf16[2,32,32], index: 7, kind: input, shape index: {}]
  %s8 = inlined_call_operand.vmem [shape: f32[2,32], index: 8, kind: input, shape index: {}]
  %s9 = inlined_call_operand.vmem [shape: bf16[2,32,32], index: 9, kind: input, shape index: {}]
  %s10 = inlined_call_operand.vmem [shape: f32[2,32], index: 10, kind: input, shape index: {}]
  %s11 = inlined_call_operand.vmem [shape: f32[2,32], index: 11, kind: input, shape index: {}]
  %s12 = inlined_call_operand.vmem [shape: f32[2,32], index: 12, kind: input, shape index: {}]
  %s13 = inlined_call_operand.vmem [shape: bf16[2,32,64], index: 13, kind: input, shape index: {}]
  %s14 = inlined_call_operand.vmem [shape: f32[2,64], index: 14, kind: input, shape index: {}]
  %s15 = inlined_call_operand.vmem [shape: bf16[2,64,32], index: 15, kind: input, shape index: {}]
  %s16 = inlined_call_operand.vmem [shape: f32[2,32], index: 16, kind: input, shape index: {}]
  %s17 = inlined_call_operand.vmem [shape: f32[2,32], index: 17, kind: input, shape index: {}]
  %s18 = inlined_call_operand.vmem [shape: f32[2,32], index: 18, kind: input, shape index: {}]
  %s19 = inlined_call_operand.vmem [shape: f32[32,32], index: 19, kind: input, shape index: {}]
  %s20 = inlined_call_operand.vmem [shape: f32[1,32], index: 20, kind: input, shape index: {}]
  %s21 = inlined_call_operand.vmem [shape: f32[2,32], index: 21, kind: output, shape index: {}]
  %s22 = sld [smem:[#allocation0]]
  $region94: #{transformer_forward.1} parent=0
    _
  %s24 = ssub.s32 1, %s22
  %s25 = scalar_select 0, %s24, %s22
  // Predicated region
  $region2: #{transformer_forward.1} parent=0 // pred_check
    _
  $region3: #{transformer_forward.1} parent=0 // pred_check_branch
    %27 = sbr.rel (0) target = $region5
  $region4: #{transformer_forward.1} parent=0 // pred_region
    _
  $region5: #{transformer_forward.1} parent=0 // pred_fallthru
    _
  // Predicated region
  $region6: #{transformer_forward.1} parent=0 // pred_check
    _
  $region7: #{transformer_forward.1} parent=0 // pred_check_branch
    %29 = sbr.rel (0) target = $region9
  $region8: #{transformer_forward.1} parent=0 // pred_region
    _
  $region9: #{transformer_forward.1} parent=0 // pred_fallthru
    _
  // Predicated region
  $region10: #{transformer_forward.1} parent=0 // pred_check
    _
  $region11: #{transformer_forward.1} parent=0 // pred_check_branch
    %31 = sbr.rel (0) target = $region13
  $region12: #{transformer_forward.1} parent=0 // pred_region
    _
  $region13: #{transformer_forward.1} parent=0 // pred_fallthru
    _
  // Predicated region
  $region14: #{transformer_forward.1} parent=0 // pred_check
    _
  $region15: #{transformer_forward.1} parent=0 // pred_check_branch
    %33 = sbr.rel (0) target = $region17
  $region16: #{transformer_forward.1} parent=0 // pred_region
    _
  $region17: #{transformer_forward.1} parent=0 // pred_fallthru
    _
  // Predicated region
  $region18: #{transformer_forward.1} parent=0 // pred_check
    _
  $region19: #{transformer_forward.1} parent=0 // pred_check_branch
    %35 = sbr.rel (0) target = $region21
  $region20: #{transformer_forward.1} parent=0 // pred_region
    _
  $region21: #{transformer_forward.1} parent=0 // pred_fallthru
    _
  // Predicated region
  $region22: #{transformer_forward.1} parent=0 // pred_check
    _
  $region23: #{transformer_forward.1} parent=0 // pred_check_branch
    %37 = sbr.rel (0) target = $region25
  $region24: #{transformer_forward.1} parent=0 // pred_region
    _
  $region25: #{transformer_forward.1} parent=0 // pred_fallthru
    _
  // Predicated region
  $region26: #{transformer_forward.1} parent=0 // pred_check
    _
  $region27: #{transformer_forward.1} parent=0 // pred_check_branch
    %39 = sbr.rel (0) target = $region29
  $region28: #{transformer_forward.1} parent=0 // pred_region
    _
  $region29: #{transformer_forward.1} parent=0 // pred_fallthru
    _
  // Predicated region
  $region30: #{transformer_forward.1} parent=0 // pred_check
    _
  $region31: #{transformer_forward.1} parent=0 // pred_check_branch
    %41 = sbr.rel (0) target = $region33
  $region32: #{transformer_forward.1} parent=0 // pred_region
    _
  $region33: #{transformer_forward.1} parent=0 // pred_fallthru
    _
  // Predicated region
  $region34: #{transformer_forward.1} parent=0 // pred_check
    _
  $region35: #{transformer_forward.1} parent=0 // pred_check_branch
    %43 = sbr.rel (0) target = $region37
  $region36: #{transformer_forward.1} parent=0 // pred_region
    _
  $region37: #{transformer_forward.1} parent=0 // pred_fallthru
    _
  // Predicated region
  $region38: #{transformer_forward.1} parent=0 // pred_check
    _
  $region39: #{transformer_forward.1} parent=0 // pred_check_branch
    %45 = sbr.rel (0) target = $region41
  $region40: #{transformer_forward.1} parent=0 // pred_region
    _
  $region41: #{transformer_forward.1} parent=0 // pred_fallthru
    _
  // Predicated region
  $region42: #{transformer_forward.1} parent=0 // pred_check
    _
  $region43: #{transformer_forward.1} parent=0 // pred_check_branch
    %47 = sbr.rel (0) target = $region45
  $region44: #{transformer_forward.1} parent=0 // pred_region
    _
  $region45: #{transformer_forward.1} parent=0 // pred_fallthru
    _
  // Predicated region
  $region46: #{transformer_forward.1} parent=0 // pred_check
    _
  $region47: #{transformer_forward.1} parent=0 // pred_check_branch
    %49 = sbr.rel (0) target = $region49
  $region48: #{transformer_forward.1} parent=0 // pred_region
    _
  $region49: #{transformer_forward.1} parent=0 // pred_fallthru
    _
  // Predicated region
  $region50: #{transformer_forward.1} parent=0 // pred_check
    _
  $region51: #{transformer_forward.1} parent=0 // pred_check_branch
    %51 = sbr.rel (0) target = $region53
  $region52: #{transformer_forward.1} parent=0 // pred_region
    _
  $region53: #{transformer_forward.1} parent=0 // pred_fallthru
    _
  // Predicated region
  $region54: #{transformer_forward.1} parent=0 // pred_check
    _
  $region55: #{transformer_forward.1} parent=0 // pred_check_branch
    %53 = sbr.rel (0) target = $region57
  $region56: #{transformer_forward.1} parent=0 // pred_region
    _
  $region57: #{transformer_forward.1} parent=0 // pred_fallthru
    _
  // Predicated region
  $region58: #{transformer_forward.1} parent=0 // pred_check
    _
  $region59: #{transformer_forward.1} parent=0 // pred_check_branch
    %55 = sbr.rel (0) target = $region61
  $region60: #{transformer_forward.1} parent=0 // pred_region
    _
  $region61: #{transformer_forward.1} parent=0 // pred_fallthru
    _
  // Predicated region
  $region62: #{transformer_forward.1} parent=0 // pred_check
    _
  $region63: #{transformer_forward.1} parent=0 // pred_check_branch
    %57 = sbr.rel (0) target = $region65
  $region64: #{transformer_forward.1} parent=0 // pred_region
    _
  $region65: #{transformer_forward.1} parent=0 // pred_fallthru
    _
  // Predicated region
  $region66: #{transformer_forward.1} parent=0 // pred_check
    _
  $region67: #{transformer_forward.1} parent=0 // pred_check_branch
    %59 = sbr.rel (0) target = $region69
  $region68: #{transformer_forward.1} parent=0 // pred_region
    _
  $region69: #{transformer_forward.1} parent=0 // pred_fallthru
    _
  // Predicated region
  $region70: #{transformer_forward.1} parent=0 // pred_check
    _
  $region71: #{transformer_forward.1} parent=0 // pred_check_branch
    %61 = sbr.rel (0) target = $region73
  $region72: #{transformer_forward.1} parent=0 // pred_region
    _
  $region73: #{transformer_forward.1} parent=0 // pred_fallthru
    _
  // Predicated region
  $region74: #{transformer_forward.1} parent=0 // pred_check
    _
  $region75: #{transformer_forward.1} parent=0 // pred_check_branch
    %63 = sbr.rel (0) target = $region77
  $region76: #{transformer_forward.1} parent=0 // pred_region
    _
  $region77: #{transformer_forward.1} parent=0 // pred_fallthru
    _
  // Predicated region
  $region78: #{transformer_forward.1} parent=0 // pred_check
    _
  $region79: #{transformer_forward.1} parent=0 // pred_check_branch
    %65 = sbr.rel (0) target = $region81
  $region80: #{transformer_forward.1} parent=0 // pred_region
    _
  $region81: #{transformer_forward.1} parent=0 // pred_fallthru
    _
  // Predicated region
  $region82: #{transformer_forward.1} parent=0 // pred_check
    _
  $region83: #{transformer_forward.1} parent=0 // pred_check_branch
    %67 = sbr.rel (0) target = $region85
  $region84: #{transformer_forward.1} parent=0 // pred_region
    _
  $region85: #{transformer_forward.1} parent=0 // pred_fallthru
    _
  %v69 = vlaneseq
  %v70 = vand.u32 %v69, 127
  %v71 = vadd.s32 %v70, 128
  %v72 = vld [vmem:[%s0] sm:$0xff]
  %v73 = vld [vmem:[%s0 + $0x8] sm:$0xff]
  %74 = vset.pattern.permute.xlu0 0
  %75 = vperm.xlu0 %74, %v72
  %v76 = vpop.permute.xlu0 %75
  %77 = vset.pattern.permute.xlu0 0
  %78 = vperm.xlu0 %77, %v73
  %v79 = vpop.permute.xlu0 %78
  %vm80 = vcmp.eq.s32.totalorder %v70, %v76
  %vm81 = vcmp.eq.s32.totalorder %v71, %v76
  %vm82 = vcmp.eq.s32.totalorder %v70, %v79
  %vm83 = vcmp.eq.s32.totalorder %v71, %v79
  %v84 = vsel %vm80, 1, 0
  %v85 = vsel %vm81, 1, 0
  %v86 = vsel %vm82, 1, 0
  %v87 = vsel %vm83, 1, 0
  %v88 = vcvt.s32.f32 %v84
  %v89 = vcvt.s32.f32 %v85
  %v90 = vcvt.s32.f32 %v86
  %v91 = vcvt.s32.f32 %v87
  %v92 = vld [vmem:[%s1] sm:$0xff]
  %v93 = vld [vmem:[%s1 + $0x8] sm:$0xff]
  %v94 = vld [vmem:[%s1 + $0x10] sm:$0xff]
  %v95 = vld [vmem:[%s1 + $0x18] sm:$0xff]
  %v96 = vld [vmem:[%s1 + $0x20] sm:$0xff]
  %v97 = vld [vmem:[%s1 + $0x28] sm:$0xff]
  %v98 = vld [vmem:[%s1 + $0x30] sm:$0xff]
  %v99 = vld [vmem:[%s1 + $0x38] sm:$0xff]
  %v100 = vld [vmem:[%s1 + $0x40] sm:$0xff]
  %v101 = vld [vmem:[%s1 + $0x48] sm:$0xff]
  %v102 = vld [vmem:[%s1 + $0x50] sm:$0xff]
  %v103 = vld [vmem:[%s1 + $0x58] sm:$0xff]
  %v104 = vld [vmem:[%s1 + $0x60] sm:$0xff]
  %v105 = vld [vmem:[%s1 + $0x68] sm:$0xff]
  %v106 = vld [vmem:[%s1 + $0x70] sm:$0xff]
  %v107 = vld [vmem:[%s1 + $0x78] sm:$0xff]
  %v108 = vld [vmem:[%s1 + $0x80] sm:$0xff]
  %v109 = vld [vmem:[%s1 + $0x88] sm:$0xff]
  %v110 = vld [vmem:[%s1 + $0x90] sm:$0xff]
  %v111 = vld [vmem:[%s1 + $0x98] sm:$0xff]
  %v112 = vld [vmem:[%s1 + $0xa0] sm:$0xff]
  %v113 = vld [vmem:[%s1 + $0xa8] sm:$0xff]
  %v114 = vld [vmem:[%s1 + $0xb0] sm:$0xff]
  %v115 = vld [vmem:[%s1 + $0xb8] sm:$0xff]
  %v116 = vld [vmem:[%s1 + $0xc0] sm:$0xff]
  %v117 = vld [vmem:[%s1 + $0xc8] sm:$0xff]
  %v118 = vld [vmem:[%s1 + $0xd0] sm:$0xff]
  %v119 = vld [vmem:[%s1 + $0xd8] sm:$0xff]
  %v120 = vld [vmem:[%s1 + $0xe0] sm:$0xff]
  %v121 = vld [vmem:[%s1 + $0xe8] sm:$0xff]
  %v122 = vld [vmem:[%s1 + $0xf0] sm:$0xff]
  %v123 = vld [vmem:[%s1 + $0xf8] sm:$0xff]
  %124 = vmatprep.subr.mxu0 0.0
  %125 = vmatpush1.msra.mxu0 %v92
  %126 = vmatprep.subr.mxu0 0.0
  %127 = vmatpush1.msra.mxu0 %v93
  %128 = vmatprep.subr.mxu0 0.0
  %129 = vmatpush1.msra.mxu0 %v94
  %130 = vmatprep.subr.mxu0 0.0
  %131 = vmatpush1.msra.mxu0 %v95
  %132 = vmatprep.subr.mxu0 0.0
  %133 = vmatpush1.msra.mxu0 %v96
  %134 = vmatprep.subr.mxu0 0.0
  %135 = vmatpush1.msra.mxu0 %v97
  %136 = vmatprep.subr.mxu0 0.0
  %137 = vmatpush1.msra.mxu0 %v98
  %138 = vmatprep.subr.mxu0 0.0
  %139 = vmatpush1.msra.mxu0 %v99
  %140 = vmatprep.subr.mxu0 0.0
  %141 = vmatpush1.msra.mxu0 %v100
  %142 = vmatprep.subr.mxu0 0.0
  %143 = vmatpush1.msra.mxu0 %v101
  %144 = vmatprep.subr.mxu0 0.0
  %145 = vmatpush1.msra.mxu0 %v102
  %146 = vmatprep.subr.mxu0 0.0
  %147 = vmatpush1.msra.mxu0 %v103
  %148 = vmatprep.subr.mxu0 0.0
  %149 = vmatpush1.msra.mxu0 %v104
  %150 = vmatprep.subr.mxu0 0.0
  %151 = vmatpush1.msra.mxu0 %v105
  %152 = vmatprep.subr.mxu0 0.0
  %153 = vmatpush1.msra.mxu0 %v106
  %154 = vmatprep.subr.mxu0 0.0
  %155 = vmatpush1.msra.mxu0 %v107
  %156 = vmatprep.subr.mxu0 0.0
  %157 = vmatpush1.msra.mxu0 %v108
  %158 = vmatprep.subr.mxu0 0.0
  %159 = vmatpush1.msra.mxu0 %v109
  %160 = vmatprep.subr.mxu0 0.0
  %161 = vmatpush1.msra.mxu0 %v110
  %162 = vmatprep.subr.mxu0 0.0
  %163 = vmatpush1.msra.mxu0 %v111
  %164 = vmatprep.subr.mxu0 0.0
  %165 = vmatpush1.msra.mxu0 %v112
  %166 = vmatprep.subr.mxu0 0.0
  %167 = vmatpush1.msra.mxu0 %v113
  %168 = vmatprep.subr.mxu0 0.0
  %169 = vmatpush1.msra.mxu0 %v114
  %170 = vmatprep.subr.mxu0 0.0
  %171 = vmatpush1.msra.mxu0 %v115
  %172 = vmatprep.subr.mxu0 0.0
  %173 = vmatpush1.msra.mxu0 %v116
  %174 = vmatprep.subr.mxu0 0.0
  %175 = vmatpush1.msra.mxu0 %v117
  %176 = vmatprep.subr.mxu0 0.0
  %177 = vmatpush1.msra.mxu0 %v118
  %178 = vmatprep.subr.mxu0 0.0
  %179 = vmatpush1.msra.mxu0 %v119
  %180 = vmatprep.subr.mxu0 0.0
  %181 = vmatpush1.msra.mxu0 %v120
  %182 = vmatprep.subr.mxu0 0.0
  %183 = vmatpush1.msra.mxu0 %v121
  %184 = vmatprep.subr.mxu0 0.0
  %185 = vmatpush1.msra.mxu0 %v122
  %186 = vmatprep.subr.mxu0 0.0
  %187 = vmatpush1.msra.mxu0 %v123
  %188 = vmatprep.mubr.f32.mxu0 %v89
  %189 = vmatmul.mubr.f32.gmra.mrb[0].mxu0 %v88
  %v190 = vpop.f32.mrb[0].mxu0
  %v191 = vadd.f32 0.0, %v190
  %v192 = vpop.f32.mrb[0].mxu0
  %193 = vmatprep.mubr.f32.mxu0 %v91
  %194 = vmatmul.mubr.f32.gmra.mrb[0].mxu0 %v90
  %v195 = vpop.f32.mrb[0].mxu0
  %v196 = vadd.f32 0.0, %v195
  %v197 = vpop.f32.mrb[0].mxu0
  %198 = vdwg.mxu0
  %v199 = vld [vmem:[%s2] sm:$0xff]
  %v200 = vadd.f32 %v191, %v199
  %v201 = vadd.f32 %v196, %v199
  %v202 = vld [vmem:[%s3] sm:$0xf]
  %v203 = vld [vmem:[%s3 + $0x4] sm:$0xf]
  %v204 = vld [vmem:[%s3 + $0x8] sm:$0xf]
  %v205 = vld [vmem:[%s3 + $0xc] sm:$0xf]
  %v206 = vld [vmem:[%s5] sm:$0xf]
  %v207 = vld [vmem:[%s5 + $0x4] sm:$0xf]
  %v208 = vld [vmem:[%s5 + $0x8] sm:$0xf]
  %v209 = vld [vmem:[%s5 + $0xc] sm:$0xf]
  %v210 = vld [vmem:[%s7] sm:$0xf]
  %v211 = vld [vmem:[%s7 + $0x4] sm:$0xf]
  %v212 = vld [vmem:[%s7 + $0x8] sm:$0xf]
  %v213 = vld [vmem:[%s7 + $0xc] sm:$0xf]
  %v214 = vld [vmem:[%s9] sm:$0xf]
  %v215 = vld [vmem:[%s9 + $0x4] sm:$0xf]
  %v216 = vld [vmem:[%s9 + $0x8] sm:$0xf]
  %v217 = vld [vmem:[%s9 + $0xc] sm:$0xf]
  %v218 = vld [vmem:[%s13] sm:$0xf]
  %v219 = vld [vmem:[%s13 + $0x4] sm:$0xf]
  %v220 = vld [vmem:[%s13 + $0x8] sm:$0xf]
  %v221 = vld [vmem:[%s13 + $0xc] sm:$0xf]
  %v222 = vld [vmem:[%s15] sm:$0xf]
  %v223 = vld [vmem:[%s15 + $0x4] sm:$0xf]
  %v224 = vld [vmem:[%s15 + $0x8] sm:$0xf]
  %v225 = vld [vmem:[%s15 + $0xc] sm:$0xf]
  %v226 = vld [vmem:[%s15 + $0x10] sm:$0xf]
  %v227 = vld [vmem:[%s15 + $0x14] sm:$0xf]
  %v228 = vld [vmem:[%s15 + $0x18] sm:$0xf]
  %v229 = vld [vmem:[%s15 + $0x1c] sm:$0xf]
  %v230 = vld [vmem:[%s4] sm:$0x1]
  %v231 = vld [vmem:[%s6] sm:$0x1]
  %v232 = vld [vmem:[%s8] sm:$0x1]
  %v233 = vld [vmem:[%s10] sm:$0x1]
  %v234 = vld [vmem:[%s14] sm:$0x1]
  %v235 = vld [vmem:[%s16] sm:$0x1]
  %v236 = vld [vmem:[%s11] sm:$0x1]
  %v237 = vld [vmem:[%s12] sm:$0x1]
  %v238 = vld [vmem:[%s17] sm:$0x1]
  %v239 = vld [vmem:[%s18] sm:$0x1]
  %v240 = vpack.c.bf16 %v201, %v200
  %v241 = vlaneseq
  %v242 = vshrl.u32 %v241, 7
  %v243 = vsub.s32 0, %v242
  %v244 = vrot.slane %v230, %v243
  %v249 = vunpack.c.l.b16 %v202
  %v250 = vunpack.c.l.b16 %v203
  %v251 = vunpack.c.l.b16 %v204
  %v252 = vunpack.c.l.b16 %v205
  %v253 = vpack.c.b16 %v250, %v249
  %v254 = vpack.c.b16 %v252, %v251
  %vm257 = vcmask 261120
  %v259 = vsel %vm257, %v240, 0
  %261 = vmatprep.subr.bf16.mxu0 0
  %262 = vmatpush1.bf16.msra.mxu0 %v253
  %263 = vmatprep.subr.bf16.mxu0 0
  %264 = vmatpush1.bf16.msra.mxu0 %v254
  %265 = vmatprep.subr.bf16.mxu0 0
  %266 = vmatpush1.bf16.msra.mxu0 0
  %267 = vmatprep.subr.bf16.mxu0 0
  %268 = vmatpush1.bf16.msra.mxu0 0
  %269 = vmatprep.subr.bf16.mxu0 0
  %270 = vmatpush1.bf16.msra.mxu0 0
  %271 = vmatprep.subr.bf16.mxu0 0
  %272 = vmatpush1.bf16.msra.mxu0 0
  %273 = vmatprep.subr.bf16.mxu0 0
  %274 = vmatpush1.bf16.msra.mxu0 0
  %275 = vmatprep.subr.bf16.mxu0 0
  %276 = vmatpush1.bf16.msra.mxu0 0
  %277 = vmatprep.subr.bf16.mxu0 0
  %278 = vmatpush1.bf16.msra.mxu0 0
  %279 = vmatprep.subr.bf16.mxu0 0
  %280 = vmatpush1.bf16.msra.mxu0 0
  %281 = vmatprep.subr.bf16.mxu0 0
  %282 = vmatpush1.bf16.msra.mxu0 0
  %283 = vmatprep.subr.bf16.mxu0 0
  %284 = vmatpush1.bf16.msra.mxu0 0
  %285 = vmatprep.subr.bf16.mxu0 0
  %286 = vmatpush1.bf16.msra.mxu0 0
  %287 = vmatprep.subr.bf16.mxu0 0
  %288 = vmatpush1.bf16.msra.mxu0 0
  %289 = vmatprep.subr.bf16.mxu0 0
  %290 = vmatpush1.bf16.msra.mxu0 0
  %291 = vmatprep.subr.bf16.mxu0 0
  %292 = vmatpush1.bf16.msra.mxu0 0
  %293 = vmatprep.mubr.bf16.mxu0 0
  %294 = vmatmul.mubr.bf16.gmra.mrb[0].mxu0 %v259
  %v295 = vpop.f32.mrb[0].mxu0
  %v296 = vadd.f32 %v244, %v295
  %v297 = vpop.f32.mrb[0].mxu0
  %v298 = vpop.f32.mrb[0].mxu0
  %v299 = vadd.f32 %v244, %v298
  %v300 = vpop.f32.mrb[0].mxu0
  %301 = vdwg.mxu0
  %v302 = vpack.c.bf16 %v299, %v296
  %v303 = vlaneseq
  %v304 = vshrl.u32 %v303, 7
  %v305 = vsub.s32 0, %v304
  %v306 = vrot.slane %v231, %v305
  %v311 = vunpack.c.l.b16 %v206
  %v312 = vunpack.c.l.b16 %v207
  %v313 = vunpack.c.l.b16 %v208
  %v314 = vunpack.c.l.b16 %v209
  %v315 = vpack.c.b16 %v312, %v311
  %v316 = vpack.c.b16 %v314, %v313
  %319 = vmatprep.subr.bf16.mxu0 0
  %320 = vmatpush1.bf16.msra.mxu0 %v315
  %321 = vmatprep.subr.bf16.mxu0 0
  %322 = vmatpush1.bf16.msra.mxu0 %v316
  %323 = vmatprep.subr.bf16.mxu0 0
  %324 = vmatpush1.bf16.msra.mxu0 0
  %325 = vmatprep.subr.bf16.mxu0 0
  %326 = vmatpush1.bf16.msra.mxu0 0
  %327 = vmatprep.subr.bf16.mxu0 0
  %328 = vmatpush1.bf16.msra.mxu0 0
  %329 = vmatprep.subr.bf16.mxu0 0
  %330 = vmatpush1.bf16.msra.mxu0 0
  %331 = vmatprep.subr.bf16.mxu0 0
  %332 = vmatpush1.bf16.msra.mxu0 0
  %333 = vmatprep.subr.bf16.mxu0 0
  %334 = vmatpush1.bf16.msra.mxu0 0
  %335 = vmatprep.subr.bf16.mxu0 0
  %336 = vmatpush1.bf16.msra.mxu0 0
  %337 = vmatprep.subr.bf16.mxu0 0
  %338 = vmatpush1.bf16.msra.mxu0 0
  %339 = vmatprep.subr.bf16.mxu0 0
  %340 = vmatpush1.bf16.msra.mxu0 0
  %341 = vmatprep.subr.bf16.mxu0 0
  %342 = vmatpush1.bf16.msra.mxu0 0
  %343 = vmatprep.subr.bf16.mxu0 0
  %344 = vmatpush1.bf16.msra.mxu0 0
  %345 = vmatprep.subr.bf16.mxu0 0
  %346 = vmatpush1.bf16.msra.mxu0 0
  %347 = vmatprep.subr.bf16.mxu0 0
  %348 = vmatpush1.bf16.msra.mxu0 0
  %349 = vmatprep.subr.bf16.mxu0 0
  %350 = vmatpush1.bf16.msra.mxu0 0
  %351 = vmatprep.mubr.bf16.mxu0 0
  %352 = vmatmul.mubr.bf16.gmra.mrb[0].mxu0 %v259
  %v353 = vpop.f32.mrb[0].mxu0
  %v354 = vadd.f32 %v306, %v353
  %v355 = vpop.f32.mrb[0].mxu0
  %v356 = vpop.f32.mrb[0].mxu0
  %v357 = vadd.f32 %v306, %v356
  %v358 = vpop.f32.mrb[0].mxu0
  %359 = vdwg.mxu0
  %v360 = vpack.c.bf16 %v357, %v354
  %v361 = vlaneseq
  %v362 = vshrl.u32 %v361, 7
  %v363 = vsub.s32 0, %v362
  %v364 = vrot.slane %v232, %v363
  %v369 = vunpack.c.l.b16 %v210
  %v370 = vunpack.c.l.b16 %v211
  %v371 = vunpack.c.l.b16 %v212
  %v372 = vunpack.c.l.b16 %v213
  %v373 = vpack.c.b16 %v370, %v369
  %v374 = vpack.c.b16 %v372, %v371
  %377 = vmatprep.subr.bf16.mxu0 0
  %378 = vmatpush1.bf16.msra.mxu0 %v373
  %379 = vmatprep.subr.bf16.mxu0 0
  %380 = vmatpush1.bf16.msra.mxu0 %v374
  %381 = vmatprep.subr.bf16.mxu0 0
  %382 = vmatpush1.bf16.msra.mxu0 0
  %383 = vmatprep.subr.bf16.mxu0 0
  %384 = vmatpush1.bf16.msra.mxu0 0
  %385 = vmatprep.subr.bf16.mxu0 0
  %386 = vmatpush1.bf16.msra.mxu0 0
  %387 = vmatprep.subr.bf16.mxu0 0
  %388 = vmatpush1.bf16.msra.mxu0 0
  %389 = vmatprep.subr.bf16.mxu0 0
  %390 = vmatpush1.bf16.msra.mxu0 0
  %391 = vmatprep.subr.bf16.mxu0 0
  %392 = vmatpush1.bf16.msra.mxu0 0
  %393 = vmatprep.subr.bf16.mxu0 0
  %394 = vmatpush1.bf16.msra.mxu0 0
  %395 = vmatprep.subr.bf16.mxu0 0
  %396 = vmatpush1.bf16.msra.mxu0 0
  %397 = vmatprep.subr.bf16.mxu0 0
  %398 = vmatpush1.bf16.msra.mxu0 0
  %399 = vmatprep.subr.bf16.mxu0 0
  %400 = vmatpush1.bf16.msra.mxu0 0
  %401 = vmatprep.subr.bf16.mxu0 0
  %402 = vmatpush1.bf16.msra.mxu0 0
  %403 = vmatprep.subr.bf16.mxu0 0
  %404 = vmatpush1.bf16.msra.mxu0 0
  %405 = vmatprep.subr.bf16.mxu0 0
  %406 = vmatpush1.bf16.msra.mxu0 0
  %407 = vmatprep.subr.bf16.mxu0 0
  %408 = vmatpush1.bf16.msra.mxu0 0
  %409 = vmatprep.mubr.bf16.mxu0 0
  %410 = vmatmul.mubr.bf16.gmra.mrb[0].mxu0 %v259
  %v411 = vpop.f32.mrb[0].mxu0
  %v412 = vadd.f32 %v364, %v411
  %v413 = vpop.f32.mrb[0].mxu0
  %v414 = vpop.f32.mrb[0].mxu0
  %v415 = vadd.f32 %v364, %v414
  %v416 = vpop.f32.mrb[0].mxu0
  %417 = vdwg.mxu0
  %v418 = vpack.c.bf16 %v415, %v412
  %v420 = vunpack.c.l.b16 %v302
  %v421 = vunpack.c.h.b16 %v302
  %v422 = vpack.c.b16 %v420, %v420
  %v423 = vpack.c.b16 %v421, %v421
  %v425 = vunpack.c.l.b16 %v360
  %v426 = vunpack.c.h.b16 %v360
  %v427 = vpack.c.b16 %v425, %v425
  %v428 = vpack.c.b16 %v426, %v426
  %v430 = vunpack.c.l.b16 %v418
  %v431 = vunpack.c.h.b16 %v418
  %v432 = vpack.c.b16 %v430, %v430
  %v433 = vpack.c.b16 %v431, %v431
  %vm434 = vcmask 64512
  %v436 = vsel %vm434, %v422, 0
  %v439 = vsel %vm434, %v427, 0
  %441 = vmatprep.subr.bf16.mxu0 0
  %442 = vmatpush1.bf16.xpose.msra.mxu0 %v439
  %443 = vmatprep.subr.bf16.mxu0 0
  %444 = vmatpush1.bf16.xpose.msra.mxu0 0
  %445 = vmatprep.subr.bf16.mxu0 0
  %446 = vmatpush1.bf16.xpose.msra.mxu0 0
  %447 = vmatprep.subr.bf16.mxu0 0
  %448 = vmatpush1.bf16.xpose.msra.mxu0 0
  %449 = vmatprep.subr.bf16.mxu0 0
  %450 = vmatpush1.bf16.xpose.msra.mxu0 0
  %451 = vmatprep.subr.bf16.mxu0 0
  %452 = vmatpush1.bf16.xpose.msra.mxu0 0
  %453 = vmatprep.subr.bf16.mxu0 0
  %454 = vmatpush1.bf16.xpose.msra.mxu0 0
  %455 = vmatprep.subr.bf16.mxu0 0
  %456 = vmatpush1.bf16.xpose.msra.mxu0 0
  %457 = vmatprep.subr.bf16.mxu0 0
  %458 = vmatpush1.bf16.xpose.msra.mxu0 0
  %459 = vmatprep.subr.bf16.mxu0 0
  %460 = vmatpush1.bf16.xpose.msra.mxu0 0
  %461 = vmatprep.subr.bf16.mxu0 0
  %462 = vmatpush1.bf16.xpose.msra.mxu0 0
  %463 = vmatprep.subr.bf16.mxu0 0
  %464 = vmatpush1.bf16.xpose.msra.mxu0 0
  %465 = vmatprep.subr.bf16.mxu0 0
  %466 = vmatpush1.bf16.xpose.msra.mxu0 0
  %467 = vmatprep.subr.bf16.mxu0 0
  %468 = vmatpush1.bf16.xpose.msra.mxu0 0
  %469 = vmatprep.subr.bf16.mxu0 0
  %470 = vmatpush1.bf16.xpose.msra.mxu0 0
  %471 = vmatprep.subr.bf16.mxu0 0
  %472 = vmatpush1.bf16.xpose.msra.mxu0 0
  %473 = vmatprep.mubr.bf16.mxu0 0
  %474 = vmatmul.mubr.bf16.gmra.mrb[0].mxu0 %v436
  %v475 = vpop.f32.mrb[0].mxu0
  %v476 = vadd.f32 0.0, %v475
  %v477 = vpop.f32.mrb[0].mxu0
  %v478 = vpop.f32.mrb[0].mxu0
  %v479 = vpop.f32.mrb[0].mxu0
  %480 = vdwg.mxu0
  %v482 = vsel %vm434, %v423, 0
  %v485 = vsel %vm434, %v428, 0
  %487 = vmatprep.subr.bf16.mxu0 0
  %488 = vmatpush1.bf16.xpose.msra.mxu0 %v485
  %489 = vmatprep.subr.bf16.mxu0 0
  %490 = vmatpush1.bf16.xpose.msra.mxu0 0
  %491 = vmatprep.subr.bf16.mxu0 0
  %492 = vmatpush1.bf16.xpose.msra.mxu0 0
  %493 = vmatprep.subr.bf16.mxu0 0
  %494 = vmatpush1.bf16.xpose.msra.mxu0 0
  %495 = vmatprep.subr.bf16.mxu0 0
  %496 = vmatpush1.bf16.xpose.msra.mxu0 0
  %497 = vmatprep.subr.bf16.mxu0 0
  %498 = vmatpush1.bf16.xpose.msra.mxu0 0
  %499 = vmatprep.subr.bf16.mxu0 0
  %500 = vmatpush1.bf16.xpose.msra.mxu0 0
  %501 = vmatprep.subr.bf16.mxu0 0
  %502 = vmatpush1.bf16.xpose.msra.mxu0 0
  %503 = vmatprep.subr.bf16.mxu0 0
  %504 = vmatpush1.bf16.xpose.msra.mxu0 0
  %505 = vmatprep.subr.bf16.mxu0 0
  %506 = vmatpush1.bf16.xpose.msra.mxu0 0
  %507 = vmatprep.subr.bf16.mxu0 0
  %508 = vmatpush1.bf16.xpose.msra.mxu0 0
  %509 = vmatprep.subr.bf16.mxu0 0
  %510 = vmatpush1.bf16.xpose.msra.mxu0 0
  %511 = vmatprep.subr.bf16.mxu0 0
  %512 = vmatpush1.bf16.xpose.msra.mxu0 0
  %513 = vmatprep.subr.bf16.mxu0 0
  %514 = vmatpush1.bf16.xpose.msra.mxu0 0
  %515 = vmatprep.subr.bf16.mxu0 0
  %516 = vmatpush1.bf16.xpose.msra.mxu0 0
  %517 = vmatprep.subr.bf16.mxu0 0
  %518 = vmatpush1.bf16.xpose.msra.mxu0 0
  %519 = vmatprep.mubr.bf16.mxu0 0
  %520 = vmatmul.mubr.bf16.gmra.mrb[0].mxu0 %v482
  %v521 = vpop.f32.mrb[0].mxu0
  %v522 = vadd.f32 0.0, %v521
  %v523 = vpop.f32.mrb[0].mxu0
  %v524 = vpop.f32.mrb[0].mxu0
  %v525 = vpop.f32.mrb[0].mxu0
  %526 = vdwg.mxu0
  %v527 = vsel %vm434, %v476, -inf
  %528 = vmax.xlane.f32.xlu0 %v527
  %v529 = vpop.xlane.xlu0 %528
  %v530 = vsel %vm434, %v522, -inf
  %531 = vmax.xlane.f32.xlu0 %v530
  %v532 = vpop.xlane.xlu0 %531
  %v533 = vsub.f32 %v476, %v529
  %v534 = vsub.f32 %v522, %v532
  %v535 = vmul.f32 %v533, 1.442695
  %v536 = vpow.pop %v535
  %v537 = vmul.f32 %v534, 1.442695
  %v538 = vpow.pop %v537
  %v539 = vsel %vm434, %v536, 0.0
  %540 = vadd.xlane.f32.xlu0 %v539
  %v541 = vpop.xlane.xlu0 %540
  %v542 = vsel %vm434, %v538, 0.0
  %543 = vadd.xlane.f32.xlu0 %v542
  %v544 = vpop.xlane.xlu0 %543
  %v545 = vrcp.pop %v541
  %v546 = vrcp.pop %v544
  %v547 = vmul.f32 %v536, %v545
  %v548 = vmul.f32 %v538, %v546
  %v549 = vpack.c.bf16 %v547, %v547
  %v550 = vpack.c.bf16 %v548, %v548
  %v552 = vsel %vm434, %v549, 0
  %vm554 = vcmask 1043456
  %v556 = vsel %vm554, %v432, 0
  %558 = vmatprep.subr.bf16.mxu0 0
  %559 = vmatpush1.bf16.msra.mxu0 %v556
  %560 = vmatprep.subr.bf16.mxu0 0
  %561 = vmatpush1.bf16.msra.mxu0 0
  %562 = vmatprep.subr.bf16.mxu0 0
  %563 = vmatpush1.bf16.msra.mxu0 0
  %564 = vmatprep.subr.bf16.mxu0 0
  %565 = vmatpush1.bf16.msra.mxu0 0
  %566 = vmatprep.subr.bf16.mxu0 0
  %567 = vmatpush1.bf16.msra.mxu0 0
  %568 = vmatprep.subr.bf16.mxu0 0
  %569 = vmatpush1.bf16.msra.mxu0 0
  %570 = vmatprep.subr.bf16.mxu0 0
  %571 = vmatpush1.bf16.msra.mxu0 0
  %572 = vmatprep.subr.bf16.mxu0 0
  %573 = vmatpush1.bf16.msra.mxu0 0
  %574 = vmatprep.subr.bf16.mxu0 0
  %575 = vmatpush1.bf16.msra.mxu0 0
  %576 = vmatprep.subr.bf16.mxu0 0
  %577 = vmatpush1.bf16.msra.mxu0 0
  %578 = vmatprep.subr.bf16.mxu0 0
  %579 = vmatpush1.bf16.msra.mxu0 0
  %580 = vmatprep.subr.bf16.mxu0 0
  %581 = vmatpush1.bf16.msra.mxu0 0
  %582 = vmatprep.subr.bf16.mxu0 0
  %583 = vmatpush1.bf16.msra.mxu0 0
  %584 = vmatprep.subr.bf16.mxu0 0
  %585 = vmatpush1.bf16.msra.mxu0 0
  %586 = vmatprep.subr.bf16.mxu0 0
  %587 = vmatpush1.bf16.msra.mxu0 0
  %588 = vmatprep.subr.bf16.mxu0 0
  %589 = vmatpush1.bf16.msra.mxu0 0
  %590 = vmatprep.mubr.bf16.mxu0 0
  %591 = vmatmul.mubr.bf16.gmra.mrb[0].mxu0 %v552
  %v592 = vpop.f32.mrb[0].mxu0
  %v593 = vadd.f32 0.0, %v592
  %v594 = vpop.f32.mrb[0].mxu0
  %v595 = vpop.f32.mrb[0].mxu0
  %v596 = vpop.f32.mrb[0].mxu0
  %597 = vdwg.mxu0
  %v599 = vsel %vm434, %v550, 0
  %v602 = vsel %vm554, %v433, 0
  %604 = vmatprep.subr.bf16.mxu0 0
  %605 = vmatpush1.bf16.msra.mxu0 %v602
  %606 = vmatprep.subr.bf16.mxu0 0
  %607 = vmatpush1.bf16.msra.mxu0 0
  %608 = vmatprep.subr.bf16.mxu0 0
  %609 = vmatpush1.bf16.msra.mxu0 0
  %610 = vmatprep.subr.bf16.mxu0 0
  %611 = vmatpush1.bf16.msra.mxu0 0
  %612 = vmatprep.subr.bf16.mxu0 0
  %613 = vmatpush1.bf16.msra.mxu0 0
  %614 = vmatprep.subr.bf16.mxu0 0
  %615 = vmatpush1.bf16.msra.mxu0 0
  %616 = vmatprep.subr.bf16.mxu0 0
  %617 = vmatpush1.bf16.msra.mxu0 0
  %618 = vmatprep.subr.bf16.mxu0 0
  %619 = vmatpush1.bf16.msra.mxu0 0
  %620 = vmatprep.subr.bf16.mxu0 0
  %621 = vmatpush1.bf16.msra.mxu0 0
  %622 = vmatprep.subr.bf16.mxu0 0
  %623 = vmatpush1.bf16.msra.mxu0 0
  %624 = vmatprep.subr.bf16.mxu0 0
  %625 = vmatpush1.bf16.msra.mxu0 0
  %626 = vmatprep.subr.bf16.mxu0 0
  %627 = vmatpush1.bf16.msra.mxu0 0
  %628 = vmatprep.subr.bf16.mxu0 0
  %629 = vmatpush1.bf16.msra.mxu0 0
  %630 = vmatprep.subr.bf16.mxu0 0
  %631 = vmatpush1.bf16.msra.mxu0 0
  %632 = vmatprep.subr.bf16.mxu0 0
  %633 = vmatpush1.bf16.msra.mxu0 0
  %634 = vmatprep.subr.bf16.mxu0 0
  %635 = vmatpush1.bf16.msra.mxu0 0
  %636 = vmatprep.mubr.bf16.mxu0 0
  %637 = vmatmul.mubr.bf16.gmra.mrb[0].mxu0 %v599
  %v638 = vpop.f32.mrb[0].mxu0
  %v639 = vadd.f32 0.0, %v638
  %v640 = vpop.f32.mrb[0].mxu0
  %v641 = vpop.f32.mrb[0].mxu0
  %v642 = vpop.f32.mrb[0].mxu0
  %643 = vdwg.mxu0
  %v644 = vpack.c.bf16 %v639, %v593
  %645 = vrot.lane.b32.xlu0 %v422, 120
  %v646 = vpop.permute.xlu0 %645
  %647 = vrot.lane.b32.xlu0 %v427, 120
  %v648 = vpop.permute.xlu0 %647
  %v650 = vsel %vm434, %v646, 0
  %v653 = vsel %vm434, %v648, 0
  %655 = vmatprep.subr.bf16.mxu0 0
  %656 = vmatpush1.bf16.xpose.msra.mxu0 %v653
  %657 = vmatprep.subr.bf16.mxu0 0
  %658 = vmatpush1.bf16.xpose.msra.mxu0 0
  %659 = vmatprep.subr.bf16.mxu0 0
  %660 = vmatpush1.bf16.xpose.msra.mxu0 0
  %661 = vmatprep.subr.bf16.mxu0 0
  %662 = vmatpush1.bf16.xpose.msra.mxu0 0
  %663 = vmatprep.subr.bf16.mxu0 0
  %664 = vmatpush1.bf16.xpose.msra.mxu0 0
  %665 = vmatprep.subr.bf16.mxu0 0
  %666 = vmatpush1.bf16.xpose.msra.mxu0 0
  %667 = vmatprep.subr.bf16.mxu0 0
  %668 = vmatpush1.bf16.xpose.msra.mxu0 0
  %669 = vmatprep.subr.bf16.mxu0 0
  %670 = vmatpush1.bf16.xpose.msra.mxu0 0
  %671 = vmatprep.subr.bf16.mxu0 0
  %672 = vmatpush1.bf16.xpose.msra.mxu0 0
  %673 = vmatprep.subr.bf16.mxu0 0
  %674 = vmatpush1.bf16.xpose.msra.mxu0 0
  %675 = vmatprep.subr.bf16.mxu0 0
  %676 = vmatpush1.bf16.xpose.msra.mxu0 0
  %677 = vmatprep.subr.bf16.mxu0 0
  %678 = vmatpush1.bf16.xpose.msra.mxu0 0
  %679 = vmatprep.subr.bf16.mxu0 0
  %680 = vmatpush1.bf16.xpose.msra.mxu0 0
  %681 = vmatprep.subr.bf16.mxu0 0
  %682 = vmatpush1.bf16.xpose.msra.mxu0 0
  %683 = vmatprep.subr.bf16.mxu0 0
  %684 = vmatpush1.bf16.xpose.msra.mxu0 0
  %685 = vmatprep.subr.bf16.mxu0 0
  %686 = vmatpush1.bf16.xpose.msra.mxu0 0
  %687 = vmatprep.mubr.bf16.mxu0 0
  %688 = vmatmul.mubr.bf16.gmra.mrb[0].mxu0 %v650
  %v689 = vpop.f32.mrb[0].mxu0
  %v690 = vadd.f32 0.0, %v689
  %v691 = vpop.f32.mrb[0].mxu0
  %v692 = vpop.f32.mrb[0].mxu0
  %v693 = vpop.f32.mrb[0].mxu0
  %694 = vdwg.mxu0
  %695 = vrot.lane.b32.xlu0 %v423, 120
  %v696 = vpop.permute.xlu0 %695
  %697 = vrot.lane.b32.xlu0 %v428, 120
  %v698 = vpop.permute.xlu0 %697
  %v700 = vsel %vm434, %v696, 0
  %v703 = vsel %vm434, %v698, 0
  %705 = vmatprep.subr.bf16.mxu0 0
  %706 = vmatpush1.bf16.xpose.msra.mxu0 %v703
  %707 = vmatprep.subr.bf16.mxu0 0
  %708 = vmatpush1.bf16.xpose.msra.mxu0 0
  %709 = vmatprep.subr.bf16.mxu0 0
  %710 = vmatpush1.bf16.xpose.msra.mxu0 0
  %711 = vmatprep.subr.bf16.mxu0 0
  %712 = vmatpush1.bf16.xpose.msra.mxu0 0
  %713 = vmatprep.subr.bf16.mxu0 0
  %714 = vmatpush1.bf16.xpose.msra.mxu0 0
  %715 = vmatprep.subr.bf16.mxu0 0
  %716 = vmatpush1.bf16.xpose.msra.mxu0 0
  %717 = vmatprep.subr.bf16.mxu0 0
  %718 = vmatpush1.bf16.xpose.msra.mxu0 0
  %719 = vmatprep.subr.bf16.mxu0 0
  %720 = vmatpush1.bf16.xpose.msra.mxu0 0
  %721 = vmatprep.subr.bf16.mxu0 0
  %722 = vmatpush1.bf16.xpose.msra.mxu0 0
  %723 = vmatprep.subr.bf16.mxu0 0
  %724 = vmatpush1.bf16.xpose.msra.mxu0 0
  %725 = vmatprep.subr.bf16.mxu0 0
  %726 = vmatpush1.bf16.xpose.msra.mxu0 0
  %727 = vmatprep.subr.bf16.mxu0 0
  %728 = vmatpush1.bf16.xpose.msra.mxu0 0
  %729 = vmatprep.subr.bf16.mxu0 0
  %730 = vmatpush1.bf16.xpose.msra.mxu0 0
  %731 = vmatprep.subr.bf16.mxu0 0
  %732 = vmatpush1.bf16.xpose.msra.mxu0 0
  %733 = vmatprep.subr.bf16.mxu0 0
  %734 = vmatpush1.bf16.xpose.msra.mxu0 0
  %735 = vmatprep.subr.bf16.mxu0 0
  %736 = vmatpush1.bf16.xpose.msra.mxu0 0
  %737 = vmatprep.mubr.bf16.mxu0 0
  %738 = vmatmul.mubr.bf16.gmra.mrb[0].mxu0 %v700
  %v739 = vpop.f32.mrb[0].mxu0
  %v740 = vadd.f32 0.0, %v739
  %v741 = vpop.f32.mrb[0].mxu0
  %v742 = vpop.f32.mrb[0].mxu0
  %v743 = vpop.f32.mrb[0].mxu0
  %744 = vdwg.mxu0
  %v745 = vsel %vm434, %v690, -inf
  %746 = vmax.xlane.f32.xlu0 %v745
  %v747 = vpop.xlane.xlu0 %746
  %v748 = vsel %vm434, %v740, -inf
  %749 = vmax.xlane.f32.xlu0 %v748
  %v750 = vpop.xlane.xlu0 %749
  %v751 = vsub.f32 %v690, %v747
  %v752 = vsub.f32 %v740, %v750
  %v753 = vmul.f32 %v751, 1.442695
  %v754 = vpow.pop %v753
  %v755 = vmul.f32 %v752, 1.442695
  %v756 = vpow.pop %v755
  %v757 = vsel %vm434, %v754, 0.0
  %758 = vadd.xlane.f32.xlu0 %v757
  %v759 = vpop.xlane.xlu0 %758
  %v760 = vsel %vm434, %v756, 0.0
  %761 = vadd.xlane.f32.xlu0 %v760
  %v762 = vpop.xlane.xlu0 %761
  %v763 = vrcp.pop %v759
  %v764 = vrcp.pop %v762
  %v765 = vmul.f32 %v754, %v763
  %v766 = vmul.f32 %v756, %v764
  %v767 = vpack.c.bf16 %v765, %v765
  %v768 = vpack.c.bf16 %v766, %v766
  %769 = vrot.lane.b32.xlu0 %v432, 120
  %v770 = vpop.permute.xlu0 %769
  %v772 = vsel %vm434, %v767, 0
  %v775 = vsel %vm554, %v770, 0
  %777 = vmatprep.subr.bf16.mxu0 0
  %778 = vmatpush1.bf16.msra.mxu0 %v775
  %779 = vmatprep.subr.bf16.mxu0 0
  %780 = vmatpush1.bf16.msra.mxu0 0
  %781 = vmatprep.subr.bf16.mxu0 0
  %782 = vmatpush1.bf16.msra.mxu0 0
  %783 = vmatprep.subr.bf16.mxu0 0
  %784 = vmatpush1.bf16.msra.mxu0 0
  %785 = vmatprep.subr.bf16.mxu0 0
  %786 = vmatpush1.bf16.msra.mxu0 0
  %787 = vmatprep.subr.bf16.mxu0 0
  %788 = vmatpush1.bf16.msra.mxu0 0
  %789 = vmatprep.subr.bf16.mxu0 0
  %790 = vmatpush1.bf16.msra.mxu0 0
  %791 = vmatprep.subr.bf16.mxu0 0
  %792 = vmatpush1.bf16.msra.mxu0 0
  %793 = vmatprep.subr.bf16.mxu0 0
  %794 = vmatpush1.bf16.msra.mxu0 0
  %795 = vmatprep.subr.bf16.mxu0 0
  %796 = vmatpush1.bf16.msra.mxu0 0
  %797 = vmatprep.subr.bf16.mxu0 0
  %798 = vmatpush1.bf16.msra.mxu0 0
  %799 = vmatprep.subr.bf16.mxu0 0
  %800 = vmatpush1.bf16.msra.mxu0 0
  %801 = vmatprep.subr.bf16.mxu0 0
  %802 = vmatpush1.bf16.msra.mxu0 0
  %803 = vmatprep.subr.bf16.mxu0 0
  %804 = vmatpush1.bf16.msra.mxu0 0
  %805 = vmatprep.subr.bf16.mxu0 0
  %806 = vmatpush1.bf16.msra.mxu0 0
  %807 = vmatprep.subr.bf16.mxu0 0
  %808 = vmatpush1.bf16.msra.mxu0 0
  %809 = vmatprep.mubr.bf16.mxu0 0
  %810 = vmatmul.mubr.bf16.gmra.mrb[0].mxu0 %v772
  %v811 = vpop.f32.mrb[0].mxu0
  %v812 = vadd.f32 0.0, %v811
  %v813 = vpop.f32.mrb[0].mxu0
  %v814 = vpop.f32.mrb[0].mxu0
  %v815 = vpop.f32.mrb[0].mxu0
  %816 = vdwg.mxu0
  %817 = vrot.lane.b32.xlu0 %v433, 120
  %v818 = vpop.permute.xlu0 %817
  %v820 = vsel %vm434, %v768, 0
  %v823 = vsel %vm554, %v818, 0
  %825 = vmatprep.subr.bf16.mxu0 0
  %826 = vmatpush1.bf16.msra.mxu0 %v823
  %827 = vmatprep.subr.bf16.mxu0 0
  %828 = vmatpush1.bf16.msra.mxu0 0
  %829 = vmatprep.subr.bf16.mxu0 0
  %830 = vmatpush1.bf16.msra.mxu0 0
  %831 = vmatprep.subr.bf16.mxu0 0
  %832 = vmatpush1.bf16.msra.mxu0 0
  %833 = vmatprep.subr.bf16.mxu0 0
  %834 = vmatpush1.bf16.msra.mxu0 0
  %835 = vmatprep.subr.bf16.mxu0 0
  %836 = vmatpush1.bf16.msra.mxu0 0
  %837 = vmatprep.subr.bf16.mxu0 0
  %838 = vmatpush1.bf16.msra.mxu0 0
  %839 = vmatprep.subr.bf16.mxu0 0
  %840 = vmatpush1.bf16.msra.mxu0 0
  %841 = vmatprep.subr.bf16.mxu0 0
  %842 = vmatpush1.bf16.msra.mxu0 0
  %843 = vmatprep.subr.bf16.mxu0 0
  %844 = vmatpush1.bf16.msra.mxu0 0
  %845 = vmatprep.subr.bf16.mxu0 0
  %846 = vmatpush1.bf16.msra.mxu0 0
  %847 = vmatprep.subr.bf16.mxu0 0
  %848 = vmatpush1.bf16.msra.mxu0 0
  %849 = vmatprep.subr.bf16.mxu0 0
  %850 = vmatpush1.bf16.msra.mxu0 0
  %851 = vmatprep.subr.bf16.mxu0 0
  %852 = vmatpush1.bf16.msra.mxu0 0
  %853 = vmatprep.subr.bf16.mxu0 0
  %854 = vmatpush1.bf16.msra.mxu0 0
  %855 = vmatprep.subr.bf16.mxu0 0
  %856 = vmatpush1.bf16.msra.mxu0 0
  %857 = vmatprep.mubr.bf16.mxu0 0
  %858 = vmatmul.mubr.bf16.gmra.mrb[0].mxu0 %v820
  %v859 = vpop.f32.mrb[0].mxu0
  %v860 = vadd.f32 0.0, %v859
  %v861 = vpop.f32.mrb[0].mxu0
  %v862 = vpop.f32.mrb[0].mxu0
  %v863 = vpop.f32.mrb[0].mxu0
  %864 = vdwg.mxu0
  %v865 = vpack.c.bf16 %v860, %v812
  %v867 = vsel %vm434, %v865, 0
  %v870 = vsel %vm554, %v215, 0
  %872 = vmatprep.subr.bf16.mxu0 0
  %873 = vmatpush1.bf16.msra.mxu0 %v870
  %874 = vmatprep.subr.bf16.mxu0 0
  %875 = vmatpush1.bf16.msra.mxu0 0
  %876 = vmatprep.subr.bf16.mxu0 0
  %877 = vmatpush1.bf16.msra.mxu0 0
  %878 = vmatprep.subr.bf16.mxu0 0
  %879 = vmatpush1.bf16.msra.mxu0 0
  %880 = vmatprep.subr.bf16.mxu0 0
  %881 = vmatpush1.bf16.msra.mxu0 0
  %882 = vmatprep.subr.bf16.mxu0 0
  %883 = vmatpush1.bf16.msra.mxu0 0
  %884 = vmatprep.subr.bf16.mxu0 0
  %885 = vmatpush1.bf16.msra.mxu0 0
  %886 = vmatprep.subr.bf16.mxu0 0
  %887 = vmatpush1.bf16.msra.mxu0 0
  %888 = vmatprep.subr.bf16.mxu0 0
  %889 = vmatpush1.bf16.msra.mxu0 0
  %890 = vmatprep.subr.bf16.mxu0 0
  %891 = vmatpush1.bf16.msra.mxu0 0
  %892 = vmatprep.subr.bf16.mxu0 0
  %893 = vmatpush1.bf16.msra.mxu0 0
  %894 = vmatprep.subr.bf16.mxu0 0
  %895 = vmatpush1.bf16.msra.mxu0 0
  %896 = vmatprep.subr.bf16.mxu0 0
  %897 = vmatpush1.bf16.msra.mxu0 0
  %898 = vmatprep.subr.bf16.mxu0 0
  %899 = vmatpush1.bf16.msra.mxu0 0
  %900 = vmatprep.subr.bf16.mxu0 0
  %901 = vmatpush1.bf16.msra.mxu0 0
  %902 = vmatprep.subr.bf16.mxu0 0
  %903 = vmatpush1.bf16.msra.mxu0 0
  %904 = vmatprep.mubr.bf16.mxu0 0
  %905 = vmatmul.mubr.bf16.gmra.mrb[0].mxu0 %v867
  %v906 = vpop.f32.mrb[0].mxu0
  %v907 = vadd.f32 0.0, %v906
  %v908 = vpop.f32.mrb[0].mxu0
  %v909 = vpop.f32.mrb[0].mxu0
  %v910 = vadd.f32 0.0, %v909
  %v911 = vpop.f32.mrb[0].mxu0
  %912 = vdwg.mxu0
  %v914 = vsel %vm434, %v644, 0
  %v917 = vsel %vm554, %v214, 0
  %919 = vmatprep.subr.bf16.mxu0 0
  %920 = vmatpush1.bf16.msra.mxu0 %v917
  %921 = vmatprep.subr.bf16.mxu0 0
  %922 = vmatpush1.bf16.msra.mxu0 0
  %923 = vmatprep.subr.bf16.mxu0 0
  %924 = vmatpush1.bf16.msra.mxu0 0
  %925 = vmatprep.subr.bf16.mxu0 0
  %926 = vmatpush1.bf16.msra.mxu0 0
  %927 = vmatprep.subr.bf16.mxu0 0
  %928 = vmatpush1.bf16.msra.mxu0 0
  %929 = vmatprep.subr.bf16.mxu0 0
  %930 = vmatpush1.bf16.msra.mxu0 0
  %931 = vmatprep.subr.bf16.mxu0 0
  %932 = vmatpush1.bf16.msra.mxu0 0
  %933 = vmatprep.subr.bf16.mxu0 0
  %934 = vmatpush1.bf16.msra.mxu0 0
  %935 = vmatprep.subr.bf16.mxu0 0
  %936 = vmatpush1.bf16.msra.mxu0 0
  %937 = vmatprep.subr.bf16.mxu0 0
  %938 = vmatpush1.bf16.msra.mxu0 0
  %939 = vmatprep.subr.bf16.mxu0 0
  %940 = vmatpush1.bf16.msra.mxu0 0
  %941 = vmatprep.subr.bf16.mxu0 0
  %942 = vmatpush1.bf16.msra.mxu0 0
  %943 = vmatprep.subr.bf16.mxu0 0
  %944 = vmatpush1.bf16.msra.mxu0 0
  %945 = vmatprep.subr.bf16.mxu0 0
  %946 = vmatpush1.bf16.msra.mxu0 0
  %947 = vmatprep.subr.bf16.mxu0 0
  %948 = vmatpush1.bf16.msra.mxu0 0
  %949 = vmatprep.subr.bf16.mxu0 0
  %950 = vmatpush1.bf16.msra.mxu0 0
  %951 = vmatprep.mubr.bf16.mxu0 0
  %952 = vmatmul.mubr.bf16.gmra.mrb[0].mxu0 %v914
  %v953 = vpop.f32.mrb[0].mxu0
  %v954 = vadd.f32 %v907, %v953
  %v955 = vpop.f32.mrb[0].mxu0
  %v956 = vpop.f32.mrb[0].mxu0
  %v957 = vadd.f32 %v910, %v956
  %v958 = vpop.f32.mrb[0].mxu0
  %959 = vdwg.mxu0
  %960 = vrot.lane.b32.xlu0 %v422, 112
  %v961 = vpop.permute.xlu0 %960
  %962 = vrot.lane.b32.xlu0 %v427, 112
  %v963 = vpop.permute.xlu0 %962
  %v965 = vsel %vm434, %v961, 0
  %v968 = vsel %vm434, %v963, 0
  %970 = vmatprep.subr.bf16.mxu0 0
  %971 = vmatpush1.bf16.xpose.msra.mxu0 %v968
  %972 = vmatprep.subr.bf16.mxu0 0
  %973 = vmatpush1.bf16.xpose.msra.mxu0 0
  %974 = vmatprep.subr.bf16.mxu0 0
  %975 = vmatpush1.bf16.xpose.msra.mxu0 0
  %976 = vmatprep.subr.bf16.mxu0 0
  %977 = vmatpush1.bf16.xpose.msra.mxu0 0
  %978 = vmatprep.subr.bf16.mxu0 0
  %979 = vmatpush1.bf16.xpose.msra.mxu0 0
  %980 = vmatprep.subr.bf16.mxu0 0
  %981 = vmatpush1.bf16.xpose.msra.mxu0 0
  %982 = vmatprep.subr.bf16.mxu0 0
  %983 = vmatpush1.bf16.xpose.msra.mxu0 0
  %984 = vmatprep.subr.bf16.mxu0 0
  %985 = vmatpush1.bf16.xpose.msra.mxu0 0
  %986 = vmatprep.subr.bf16.mxu0 0
  %987 = vmatpush1.bf16.xpose.msra.mxu0 0
  %988 = vmatprep.subr.bf16.mxu0 0
  %989 = vmatpush1.bf16.xpose.msra.mxu0 0
  %990 = vmatprep.subr.bf16.mxu0 0
  %991 = vmatpush1.bf16.xpose.msra.mxu0 0
  %992 = vmatprep.subr.bf16.mxu0 0
  %993 = vmatpush1.bf16.xpose.msra.mxu0 0
  %994 = vmatprep.subr.bf16.mxu0 0
  %995 = vmatpush1.bf16.xpose.msra.mxu0 0
  %996 = vmatprep.subr.bf16.mxu0 0
  %997 = vmatpush1.bf16.xpose.msra.mxu0 0
  %998 = vmatprep.subr.bf16.mxu0 0
  %999 = vmatpush1.bf16.xpose.msra.mxu0 0
  %1000 = vmatprep.subr.bf16.mxu0 0
  %1001 = vmatpush1.bf16.xpose.msra.mxu0 0
  %1002 = vmatprep.mubr.bf16.mxu0 0
  %1003 = vmatmul.mubr.bf16.gmra.mrb[0].mxu0 %v965
  %v1004 = vpop.f32.mrb[0].mxu0
  %v1005 = vadd.f32 0.0, %v1004
  %v1006 = vpop.f32.mrb[0].mxu0
  %v1007 = vpop.f32.mrb[0].mxu0
  %v1008 = vpop.f32.mrb[0].mxu0
  %1009 = vdwg.mxu0
  %1010 = vrot.lane.b32.xlu0 %v423, 112
  %v1011 = vpop.permute.xlu0 %1010
  %1012 = vrot.lane.b32.xlu0 %v428, 112
  %v1013 = vpop.permute.xlu0 %1012
  %v1015 = vsel %vm434, %v1011, 0
  %v1018 = vsel %vm434, %v1013, 0
  %1020 = vmatprep.subr.bf16.mxu0 0
  %1021 = vmatpush1.bf16.xpose.msra.mxu0 %v1018
  %1022 = vmatprep.subr.bf16.mxu0 0
  %1023 = vmatpush1.bf16.xpose.msra.mxu0 0
  %1024 = vmatprep.subr.bf16.mxu0 0
  %1025 = vmatpush1.bf16.xpose.msra.mxu0 0
  %1026 = vmatprep.subr.bf16.mxu0 0
  %1027 = vmatpush1.bf16.xpose.msra.mxu0 0
  %1028 = vmatprep.subr.bf16.mxu0 0
  %1029 = vmatpush1.bf16.xpose.msra.mxu0 0
  %1030 = vmatprep.subr.bf16.mxu0 0
  %1031 = vmatpush1.bf16.xpose.msra.mxu0 0
  %1032 = vmatprep.subr.bf16.mxu0 0
  %1033 = vmatpush1.bf16.xpose.msra.mxu0 0
  %1034 = vmatprep.subr.bf16.mxu0 0
  %1035 = vmatpush1.bf16.xpose.msra.mxu0 0
  %1036 = vmatprep.subr.bf16.mxu0 0
  %1037 = vmatpush1.bf16.xpose.msra.mxu0 0
  %1038 = vmatprep.subr.bf16.mxu0 0
  %1039 = vmatpush1.bf16.xpose.msra.mxu0 0
  %1040 = vmatprep.subr.bf16.mxu0 0
  %1041 = vmatpush1.bf16.xpose.msra.mxu0 0
  %1042 = vmatprep.subr.bf16.mxu0 0
  %1043 = vmatpush1.bf16.xpose.msra.mxu0 0
  %1044 = vmatprep.subr.bf16.mxu0 0
  %1045 = vmatpush1.bf16.xpose.msra.mxu0 0
  %1046 = vmatprep.subr.bf16.mxu0 0
  %1047 = vmatpush1.bf16.xpose.msra.mxu0 0
  %1048 = vmatprep.subr.bf16.mxu0 0
  %1049 = vmatpush1.bf16.xpose.msra.mxu0 0
  %1050 = vmatprep.subr.bf16.mxu0 0
  %1051 = vmatpush1.bf16.xpose.msra.mxu0 0
  %1052 = vmatprep.mubr.bf16.mxu0 0
  %1053 = vmatmul.mubr.bf16.gmra.mrb[0].mxu0 %v1015
  %v1054 = vpop.f32.mrb[0].mxu0
  %v1055 = vadd.f32 0.0, %v1054
  %v1056 = vpop.f32.mrb[0].mxu0
  %v1057 = vpop.f32.mrb[0].mxu0
  %v1058 = vpop.f32.mrb[0].mxu0
  %1059 = vdwg.mxu0
  %v1060 = vsel %vm434, %v1005, -inf
  %1061 = vmax.xlane.f32.xlu0 %v1060
  %v1062 = vpop.xlane.xlu0 %1061
  %v1063 = vsel %vm434, %v1055, -inf
  %1064 = vmax.xlane.f32.xlu0 %v1063
  %v1065 = vpop.xlane.xlu0 %1064
  %v1066 = vsub.f32 %v1005, %v1062
  %v1067 = vsub.f32 %v1055, %v1065
  %v1068 = vmul.f32 %v1066, 1.442695
  %v1069 = vpow.pop %v1068
  %v1070 = vmul.f32 %v1067, 1.442695
  %v1071 = vpow.pop %v1070
  %v1072 = vsel %vm434, %v1069, 0.0
  %1073 = vadd.xlane.f32.xlu0 %v1072
  %v1074 = vpop.xlane.xlu0 %1073
  %v1075 = vsel %vm434, %v1071, 0.0
  %1076 = vadd.xlane.f32.xlu0 %v1075
  %v1077 = vpop.xlane.xlu0 %1076
  %v1078 = vrcp.pop %v1074
  %v1079 = vrcp.pop %v1077
  %v1080 = vmul.f32 %v1069, %v1078
  %v1081 = vmul.f32 %v1071, %v1079
  %v1082 = vpack.c.bf16 %v1080, %v1080
  %v1083 = vpack.c.bf16 %v1081, %v1081
  %1084 = vrot.lane.b32.xlu0 %v432, 112
  %v1085 = vpop.permute.xlu0 %1084
  %v1087 = vsel %vm434, %v1082, 0
  %v1090 = vsel %vm554, %v1085, 0
  %1092 = vmatprep.subr.bf16.mxu0 0
  %1093 = vmatpush1.bf16.msra.mxu0 %v1090
  %1094 = vmatprep.subr.bf16.mxu0 0
  %1095 = vmatpush1.bf16.msra.mxu0 0
  %1096 = vmatprep.subr.bf16.mxu0 0
  %1097 = vmatpush1.bf16.msra.mxu0 0
  %1098 = vmatprep.subr.bf16.mxu0 0
  %1099 = vmatpush1.bf16.msra.mxu0 0
  %1100 = vmatprep.subr.bf16.mxu0 0
  %1101 = vmatpush1.bf16.msra.mxu0 0
  %1102 = vmatprep.subr.bf16.mxu0 0
  %1103 = vmatpush1.bf16.msra.mxu0 0
  %1104 = vmatprep.subr.bf16.mxu0 0
  %1105 = vmatpush1.bf16.msra.mxu0 0
  %1106 = vmatprep.subr.bf16.mxu0 0
  %1107 = vmatpush1.bf16.msra.mxu0 0
  %1108 = vmatprep.subr.bf16.mxu0 0
  %1109 = vmatpush1.bf16.msra.mxu0 0
  %1110 = vmatprep.subr.bf16.mxu0 0
  %1111 = vmatpush1.bf16.msra.mxu0 0
  %1112 = vmatprep.subr.bf16.mxu0 0
  %1113 = vmatpush1.bf16.msra.mxu0 0
  %1114 = vmatprep.subr.bf16.mxu0 0
  %1115 = vmatpush1.bf16.msra.mxu0 0
  %1116 = vmatprep.subr.bf16.mxu0 0
  %1117 = vmatpush1.bf16.msra.mxu0 0
  %1118 = vmatprep.subr.bf16.mxu0 0
  %1119 = vmatpush1.bf16.msra.mxu0 0
  %1120 = vmatprep.subr.bf16.mxu0 0
  %1121 = vmatpush1.bf16.msra.mxu0 0
  %1122 = vmatprep.subr.bf16.mxu0 0
  %1123 = vmatpush1.bf16.msra.mxu0 0
  %1124 = vmatprep.mubr.bf16.mxu0 0
  %1125 = vmatmul.mubr.bf16.gmra.mrb[0].mxu0 %v1087
  %v1126 = vpop.f32.mrb[0].mxu0
  %v1127 = vadd.f32 0.0, %v1126
  %v1128 = vpop.f32.mrb[0].mxu0
  %v1129 = vpop.f32.mrb[0].mxu0
  %v1130 = vpop.f32.mrb[0].mxu0
  %1131 = vdwg.mxu0
  %1132 = vrot.lane.b32.xlu0 %v433, 112
  %v1133 = vpop.permute.xlu0 %1132
  %v1135 = vsel %vm434, %v1083, 0
  %v1138 = vsel %vm554, %v1133, 0
  %1140 = vmatprep.subr.bf16.mxu0 0
  %1141 = vmatpush1.bf16.msra.mxu0 %v1138
  %1142 = vmatprep.subr.bf16.mxu0 0
  %1143 = vmatpush1.bf16.msra.mxu0 0
  %1144 = vmatprep.subr.bf16.mxu0 0
  %1145 = vmatpush1.bf16.msra.mxu0 0
  %1146 = vmatprep.subr.bf16.mxu0 0
  %1147 = vmatpush1.bf16.msra.mxu0 0
  %1148 = vmatprep.subr.bf16.mxu0 0
  %1149 = vmatpush1.bf16.msra.mxu0 0
  %1150 = vmatprep.subr.bf16.mxu0 0
  %1151 = vmatpush1.bf16.msra.mxu0 0
  %1152 = vmatprep.subr.bf16.mxu0 0
  %1153 = vmatpush1.bf16.msra.mxu0 0
  %1154 = vmatprep.subr.bf16.mxu0 0
  %1155 = vmatpush1.bf16.msra.mxu0 0
  %1156 = vmatprep.subr.bf16.mxu0 0
  %1157 = vmatpush1.bf16.msra.mxu0 0
  %1158 = vmatprep.subr.bf16.mxu0 0
  %1159 = vmatpush1.bf16.msra.mxu0 0
  %1160 = vmatprep.subr.bf16.mxu0 0
  %1161 = vmatpush1.bf16.msra.mxu0 0
  %1162 = vmatprep.subr.bf16.mxu0 0
  %1163 = vmatpush1.bf16.msra.mxu0 0
  %1164 = vmatprep.subr.bf16.mxu0 0
  %1165 = vmatpush1.bf16.msra.mxu0 0
  %1166 = vmatprep.subr.bf16.mxu0 0
  %1167 = vmatpush1.bf16.msra.mxu0 0
  %1168 = vmatprep.subr.bf16.mxu0 0
  %1169 = vmatpush1.bf16.msra.mxu0 0
  %1170 = vmatprep.subr.bf16.mxu0 0
  %1171 = vmatpush1.bf16.msra.mxu0 0
  %1172 = vmatprep.mubr.bf16.mxu0 0
  %1173 = vmatmul.mubr.bf16.gmra.mrb[0].mxu0 %v1135
  %v1174 = vpop.f32.mrb[0].mxu0
  %v1175 = vadd.f32 0.0, %v1174
  %v1176 = vpop.f32.mrb[0].mxu0
  %v1177 = vpop.f32.mrb[0].mxu0
  %v1178 = vpop.f32.mrb[0].mxu0
  %1179 = vdwg.mxu0
  %v1180 = vpack.c.bf16 %v1175, %v1127
  %v1182 = vsel %vm434, %v1180, 0
  %v1185 = vsel %vm554, %v216, 0
  %1187 = vmatprep.subr.bf16.mxu0 0
  %1188 = vmatpush1.bf16.msra.mxu0 %v1185
  %1189 = vmatprep.subr.bf16.mxu0 0
  %1190 = vmatpush1.bf16.msra.mxu0 0
  %1191 = vmatprep.subr.bf16.mxu0 0
  %1192 = vmatpush1.bf16.msra.mxu0 0
  %1193 = vmatprep.subr.bf16.mxu0 0
  %1194 = vmatpush1.bf16.msra.mxu0 0
  %1195 = vmatprep.subr.bf16.mxu0 0
  %1196 = vmatpush1.bf16.msra.mxu0 0
  %1197 = vmatprep.subr.bf16.mxu0 0
  %1198 = vmatpush1.bf16.msra.mxu0 0
  %1199 = vmatprep.subr.bf16.mxu0 0
  %1200 = vmatpush1.bf16.msra.mxu0 0
  %1201 = vmatprep.subr.bf16.mxu0 0
  %1202 = vmatpush1.bf16.msra.mxu0 0
  %1203 = vmatprep.subr.bf16.mxu0 0
  %1204 = vmatpush1.bf16.msra.mxu0 0
  %1205 = vmatprep.subr.bf16.mxu0 0
  %1206 = vmatpush1.bf16.msra.mxu0 0
  %1207 = vmatprep.subr.bf16.mxu0 0
  %1208 = vmatpush1.bf16.msra.mxu0 0
  %1209 = vmatprep.subr.bf16.mxu0 0
  %1210 = vmatpush1.bf16.msra.mxu0 0
  %1211 = vmatprep.subr.bf16.mxu0 0
  %1212 = vmatpush1.bf16.msra.mxu0 0
  %1213 = vmatprep.subr.bf16.mxu0 0
  %1214 = vmatpush1.bf16.msra.mxu0 0
  %1215 = vmatprep.subr.bf16.mxu0 0
  %1216 = vmatpush1.bf16.msra.mxu0 0
  %1217 = vmatprep.subr.bf16.mxu0 0
  %1218 = vmatpush1.bf16.msra.mxu0 0
  %1219 = vmatprep.mubr.bf16.mxu0 0
  %1220 = vmatmul.mubr.bf16.gmra.mrb[0].mxu0 %v1182
  %v1221 = vpop.f32.mrb[0].mxu0
  %v1222 = vadd.f32 0.0, %v1221
  %v1223 = vpop.f32.mrb[0].mxu0
  %v1224 = vpop.f32.mrb[0].mxu0
  %v1225 = vadd.f32 0.0, %v1224
  %v1226 = vpop.f32.mrb[0].mxu0
  %1227 = vdwg.mxu0
  %v1228 = vadd.f32 %v954, %v1222
  %v1229 = vadd.f32 %v957, %v1225
  %1230 = vrot.lane.b32.xlu0 %v422, 104
  %v1231 = vpop.permute.xlu0 %1230
  %1232 = vrot.lane.b32.xlu0 %v427, 104
  %v1233 = vpop.permute.xlu0 %1232
  %v1235 = vsel %vm434, %v1231, 0
  %v1238 = vsel %vm434, %v1233, 0
  %1240 = vmatprep.subr.bf16.mxu0 0
  %1241 = vmatpush1.bf16.xpose.msra.mxu0 %v1238
  %1242 = vmatprep.subr.bf16.mxu0 0
  %1243 = vmatpush1.bf16.xpose.msra.mxu0 0
  %1244 = vmatprep.subr.bf16.mxu0 0
  %1245 = vmatpush1.bf16.xpose.msra.mxu0 0
  %1246 = vmatprep.subr.bf16.mxu0 0
  %1247 = vmatpush1.bf16.xpose.msra.mxu0 0
  %1248 = vmatprep.subr.bf16.mxu0 0
  %1249 = vmatpush1.bf16.xpose.msra.mxu0 0
  %1250 = vmatprep.subr.bf16.mxu0 0
  %1251 = vmatpush1.bf16.xpose.msra.mxu0 0
  %1252 = vmatprep.subr.bf16.mxu0 0
  %1253 = vmatpush1.bf16.xpose.msra.mxu0 0
  %1254 = vmatprep.subr.bf16.mxu0 0
  %1255 = vmatpush1.bf16.xpose.msra.mxu0 0
  %1256 = vmatprep.subr.bf16.mxu0 0
  %1257 = vmatpush1.bf16.xpose.msra.mxu0 0
  %1258 = vmatprep.subr.bf16.mxu0 0
  %1259 = vmatpush1.bf16.xpose.msra.mxu0 0
  %1260 = vmatprep.subr.bf16.mxu0 0
  %1261 = vmatpush1.bf16.xpose.msra.mxu0 0
  %1262 = vmatprep.subr.bf16.mxu0 0
  %1263 = vmatpush1.bf16.xpose.msra.mxu0 0
  %1264 = vmatprep.subr.bf16.mxu0 0
  %1265 = vmatpush1.bf16.xpose.msra.mxu0 0
  %1266 = vmatprep.subr.bf16.mxu0 0
  %1267 = vmatpush1.bf16.xpose.msra.mxu0 0
  %1268 = vmatprep.subr.bf16.mxu0 0
  %1269 = vmatpush1.bf16.xpose.msra.mxu0 0
  %1270 = vmatprep.subr.bf16.mxu0 0
  %1271 = vmatpush1.bf16.xpose.msra.mxu0 0
  %1272 = vmatprep.mubr.bf16.mxu0 0
  %1273 = vmatmul.mubr.bf16.gmra.mrb[0].mxu0 %v1235
  %v1274 = vpop.f32.mrb[0].mxu0
  %v1275 = vadd.f32 0.0, %v1274
  %v1276 = vpop.f32.mrb[0].mxu0
  %v1277 = vpop.f32.mrb[0].mxu0
  %v1278 = vpop.f32.mrb[0].mxu0
  %1279 = vdwg.mxu0
  %1280 = vrot.lane.b32.xlu0 %v423, 104
  %v1281 = vpop.permute.xlu0 %1280
  %1282 = vrot.lane.b32.xlu0 %v428, 104
  %v1283 = vpop.permute.xlu0 %1282
  %v1285 = vsel %vm434, %v1281, 0
  %v1288 = vsel %vm434, %v1283, 0
  %1290 = vmatprep.subr.bf16.mxu0 0
  %1291 = vmatpush1.bf16.xpose.msra.mxu0 %v1288
  %1292 = vmatprep.subr.bf16.mxu0 0
  %1293 = vmatpush1.bf16.xpose.msra.mxu0 0
  %1294 = vmatprep.subr.bf16.mxu0 0
  %1295 = vmatpush1.bf16.xpose.msra.mxu0 0
  %1296 = vmatprep.subr.bf16.mxu0 0
  %1297 = vmatpush1.bf16.xpose.msra.mxu0 0
  %1298 = vmatprep.subr.bf16.mxu0 0
  %1299 = vmatpush1.bf16.xpose.msra.mxu0 0
  %1300 = vmatprep.subr.bf16.mxu0 0
  %1301 = vmatpush1.bf16.xpose.msra.mxu0 0
  %1302 = vmatprep.subr.bf16.mxu0 0
  %1303 = vmatpush1.bf16.xpose.msra.mxu0 0
  %1304 = vmatprep.subr.bf16.mxu0 0
  %1305 = vmatpush1.bf16.xpose.msra.mxu0 0
  %1306 = vmatprep.subr.bf16.mxu0 0
  %1307 = vmatpush1.bf16.xpose.msra.mxu0 0
  %1308 = vmatprep.subr.bf16.mxu0 0
  %1309 = vmatpush1.bf16.xpose.msra.mxu0 0
  %1310 = vmatprep.subr.bf16.mxu0 0
  %1311 = vmatpush1.bf16.xpose.msra.mxu0 0
  %1312 = vmatprep.subr.bf16.mxu0 0
  %1313 = vmatpush1.bf16.xpose.msra.mxu0 0
  %1314 = vmatprep.subr.bf16.mxu0 0
  %1315 = vmatpush1.bf16.xpose.msra.mxu0 0
  %1316 = vmatprep.subr.bf16.mxu0 0
  %1317 = vmatpush1.bf16.xpose.msra.mxu0 0
  %1318 = vmatprep.subr.bf16.mxu0 0
  %1319 = vmatpush1.bf16.xpose.msra.mxu0 0
  %1320 = vmatprep.subr.bf16.mxu0 0
  %1321 = vmatpush1.bf16.xpose.msra.mxu0 0
  %1322 = vmatprep.mubr.bf16.mxu0 0
  %1323 = vmatmul.mubr.bf16.gmra.mrb[0].mxu0 %v1285
  %v1324 = vpop.f32.mrb[0].mxu0
  %v1325 = vadd.f32 0.0, %v1324
  %v1326 = vpop.f32.mrb[0].mxu0
  %v1327 = vpop.f32.mrb[0].mxu0
  %v1328 = vpop.f32.mrb[0].mxu0
  %1329 = vdwg.mxu0
  %v1330 = vsel %vm434, %v1275, -inf
  %1331 = vmax.xlane.f32.xlu0 %v1330
  %v1332 = vpop.xlane.xlu0 %1331
  %v1333 = vsel %vm434, %v1325, -inf
  %1334 = vmax.xlane.f32.xlu0 %v1333
  %v1335 = vpop.xlane.xlu0 %1334
  %v1336 = vsub.f32 %v1275, %v1332
  %v1337 = vsub.f32 %v1325, %v1335
  %v1338 = vmul.f32 %v1336, 1.442695
  %v1339 = vpow.pop %v1338
  %v1340 = vmul.f32 %v1337, 1.442695
  %v1341 = vpow.pop %v1340
  %v1342 = vsel %vm434, %v1339, 0.0
  %1343 = vadd.xlane.f32.xlu0 %v1342
  %v1344 = vpop.xlane.xlu0 %1343
  %v1345 = vsel %vm434, %v1341, 0.0
  %1346 = vadd.xlane.f32.xlu0 %v1345
  %v1347 = vpop.xlane.xlu0 %1346
  %v1348 = vrcp.pop %v1344
  %v1349 = vrcp.pop %v1347
  %v1350 = vmul.f32 %v1339, %v1348
  %v1351 = vmul.f32 %v1341, %v1349
  %v1352 = vpack.c.bf16 %v1350, %v1350
  %v1353 = vpack.c.bf16 %v1351, %v1351
  %1354 = vrot.lane.b32.xlu0 %v432, 104
  %v1355 = vpop.permute.xlu0 %1354
  %v1357 = vsel %vm434, %v1352, 0
  %v1360 = vsel %vm554, %v1355, 0
  %1362 = vmatprep.subr.bf16.mxu0 0
  %1363 = vmatpush1.bf16.msra.mxu0 %v1360
  %1364 = vmatprep.subr.bf16.mxu0 0
  %1365 = vmatpush1.bf16.msra.mxu0 0
  %1366 = vmatprep.subr.bf16.mxu0 0
  %1367 = vmatpush1.bf16.msra.mxu0 0
  %1368 = vmatprep.subr.bf16.mxu0 0
  %1369 = vmatpush1.bf16.msra.mxu0 0
  %1370 = vmatprep.subr.bf16.mxu0 0
  %1371 = vmatpush1.bf16.msra.mxu0 0
  %1372 = vmatprep.subr.bf16.mxu0 0
  %1373 = vmatpush1.bf16.msra.mxu0 0
  %1374 = vmatprep.subr.bf16.mxu0 0
  %1375 = vmatpush1.bf16.msra.mxu0 0
  %1376 = vmatprep.subr.bf16.mxu0 0
  %1377 = vmatpush1.bf16.msra.mxu0 0
  %1378 = vmatprep.subr.bf16.mxu0 0
  %1379 = vmatpush1.bf16.msra.mxu0 0
  %1380 = vmatprep.subr.bf16.mxu0 0
  %1381 = vmatpush1.bf16.msra.mxu0 0
  %1382 = vmatprep.subr.bf16.mxu0 0
  %1383 = vmatpush1.bf16.msra.mxu0 0
  %1384 = vmatprep.subr.bf16.mxu0 0
  %1385 = vmatpush1.bf16.msra.mxu0 0
  %1386 = vmatprep.subr.bf16.mxu0 0
  %1387 = vmatpush1.bf16.msra.mxu0 0
  %1388 = vmatprep.subr.bf16.mxu0 0
  %1389 = vmatpush1.bf16.msra.mxu0 0
  %1390 = vmatprep.subr.bf16.mxu0 0
  %1391 = vmatpush1.bf16.msra.mxu0 0
  %1392 = vmatprep.subr.bf16.mxu0 0
  %1393 = vmatpush1.bf16.msra.mxu0 0
  %1394 = vmatprep.mubr.bf16.mxu0 0
  %1395 = vmatmul.mubr.bf16.gmra.mrb[0].mxu0 %v1357
  %v1396 = vpop.f32.mrb[0].mxu0
  %v1397 = vadd.f32 0.0, %v1396
  %v1398 = vpop.f32.mrb[0].mxu0
  %v1399 = vpop.f32.mrb[0].mxu0
  %v1400 = vpop.f32.mrb[0].mxu0
  %1401 = vdwg.mxu0
  %1402 = vrot.lane.b32.xlu0 %v433, 104
  %v1403 = vpop.permute.xlu0 %1402
  %v1405 = vsel %vm434, %v1353, 0
  %v1408 = vsel %vm554, %v1403, 0
  %1410 = vmatprep.subr.bf16.mxu0 0
  %1411 = vmatpush1.bf16.msra.mxu0 %v1408
  %1412 = vmatprep.subr.bf16.mxu0 0
  %1413 = vmatpush1.bf16.msra.mxu0 0
  %1414 = vmatprep.subr.bf16.mxu0 0
  %1415 = vmatpush1.bf16.msra.mxu0 0
  %1416 = vmatprep.subr.bf16.mxu0 0
  %1417 = vmatpush1.bf16.msra.mxu0 0
  %1418 = vmatprep.subr.bf16.mxu0 0
  %1419 = vmatpush1.bf16.msra.mxu0 0
  %1420 = vmatprep.subr.bf16.mxu0 0
  %1421 = vmatpush1.bf16.msra.mxu0 0
  %1422 = vmatprep.subr.bf16.mxu0 0
  %1423 = vmatpush1.bf16.msra.mxu0 0
  %1424 = vmatprep.subr.bf16.mxu0 0
  %1425 = vmatpush1.bf16.msra.mxu0 0
  %1426 = vmatprep.subr.bf16.mxu0 0
  %1427 = vmatpush1.bf16.msra.mxu0 0
  %1428 = vmatprep.subr.bf16.mxu0 0
  %1429 = vmatpush1.bf16.msra.mxu0 0
  %1430 = vmatprep.subr.bf16.mxu0 0
  %1431 = vmatpush1.bf16.msra.mxu0 0
  %1432 = vmatprep.subr.bf16.mxu0 0
  %1433 = vmatpush1.bf16.msra.mxu0 0
  %1434 = vmatprep.subr.bf16.mxu0 0
  %1435 = vmatpush1.bf16.msra.mxu0 0
  %1436 = vmatprep.subr.bf16.mxu0 0
  %1437 = vmatpush1.bf16.msra.mxu0 0
  %1438 = vmatprep.subr.bf16.mxu0 0
  %1439 = vmatpush1.bf16.msra.mxu0 0
  %1440 = vmatprep.subr.bf16.mxu0 0
  %1441 = vmatpush1.bf16.msra.mxu0 0
  %1442 = vmatprep.mubr.bf16.mxu0 0
  %1443 = vmatmul.mubr.bf16.gmra.mrb[0].mxu0 %v1405
  %v1444 = vpop.f32.mrb[0].mxu0
  %v1445 = vadd.f32 0.0, %v1444
  %v1446 = vpop.f32.mrb[0].mxu0
  %v1447 = vpop.f32.mrb[0].mxu0
  %v1448 = vpop.f32.mrb[0].mxu0
  %1449 = vdwg.mxu0
  %v1450 = vpack.c.bf16 %v1445, %v1397
  %v1452 = vsel %vm434, %v1450, 0
  %v1455 = vsel %vm554, %v217, 0
  %1457 = vmatprep.subr.bf16.mxu0 0
  %1458 = vmatpush1.bf16.msra.mxu0 %v1455
  %1459 = vmatprep.subr.bf16.mxu0 0
  %1460 = vmatpush1.bf16.msra.mxu0 0
  %1461 = vmatprep.subr.bf16.mxu0 0
  %1462 = vmatpush1.bf16.msra.mxu0 0
  %1463 = vmatprep.subr.bf16.mxu0 0
  %1464 = vmatpush1.bf16.msra.mxu0 0
  %1465 = vmatprep.subr.bf16.mxu0 0
  %1466 = vmatpush1.bf16.msra.mxu0 0
  %1467 = vmatprep.subr.bf16.mxu0 0
  %1468 = vmatpush1.bf16.msra.mxu0 0
  %1469 = vmatprep.subr.bf16.mxu0 0
  %1470 = vmatpush1.bf16.msra.mxu0 0
  %1471 = vmatprep.subr.bf16.mxu0 0
  %1472 = vmatpush1.bf16.msra.mxu0 0
  %1473 = vmatprep.subr.bf16.mxu0 0
  %1474 = vmatpush1.bf16.msra.mxu0 0
  %1475 = vmatprep.subr.bf16.mxu0 0
  %1476 = vmatpush1.bf16.msra.mxu0 0
  %1477 = vmatprep.subr.bf16.mxu0 0
  %1478 = vmatpush1.bf16.msra.mxu0 0
  %1479 = vmatprep.subr.bf16.mxu0 0
  %1480 = vmatpush1.bf16.msra.mxu0 0
  %1481 = vmatprep.subr.bf16.mxu0 0
  %1482 = vmatpush1.bf16.msra.mxu0 0
  %1483 = vmatprep.subr.bf16.mxu0 0
  %1484 = vmatpush1.bf16.msra.mxu0 0
  %1485 = vmatprep.subr.bf16.mxu0 0
  %1486 = vmatpush1.bf16.msra.mxu0 0
  %1487 = vmatprep.subr.bf16.mxu0 0
  %1488 = vmatpush1.bf16.msra.mxu0 0
  %1489 = vmatprep.mubr.bf16.mxu0 0
  %1490 = vmatmul.mubr.bf16.gmra.mrb[0].mxu0 %v1452
  %v1491 = vpop.f32.mrb[0].mxu0
  %v1492 = vadd.f32 0.0, %v1491
  %v1493 = vpop.f32.mrb[0].mxu0
  %v1494 = vpop.f32.mrb[0].mxu0
  %v1495 = vadd.f32 0.0, %v1494
  %v1496 = vpop.f32.mrb[0].mxu0
  %1497 = vdwg.mxu0
  %v1498 = vadd.f32 %v1228, %v1492
  %v1499 = vadd.f32 %v1229, %v1495
  %v1500 = vlaneseq
  %v1501 = vshrl.u32 %v1500, 7
  %v1502 = vsub.s32 0, %v1501
  %v1503 = vrot.slane %v233, %v1502
  %v1504 = vadd.f32 %v1498, %v1503
  %v1505 = vadd.f32 %v1499, %v1503
  %v1506 = vadd.f32 %v200, %v1504
  %v1507 = vadd.f32 %v201, %v1505
  %v1508 = vsel %vm257, %v1506, 0.0
  %1509 = vadd.xlane.f32.xlu0 %v1508
  %v1510 = vpop.xlane.xlu0 %1509
  %v1511 = vsel %vm257, %v1507, 0.0
  %1512 = vadd.xlane.f32.xlu0 %v1511
  %v1513 = vpop.xlane.xlu0 %1512
  %v1514 = vrcp.pop 32.0
  %v1515 = vmul.f32 %v1510, %v1514
  %v1516 = vmul.f32 %v1513, %v1514
  %v1517 = vmul.f32 %v1506, %v1506
  %v1518 = vmul.f32 %v1507, %v1507
  %v1519 = vsel %vm257, %v1517, 0.0
  %1520 = vadd.xlane.f32.xlu0 %v1519
  %v1521 = vpop.xlane.xlu0 %1520
  %v1522 = vsel %vm257, %v1518, 0.0
  %1523 = vadd.xlane.f32.xlu0 %v1522
  %v1524 = vpop.xlane.xlu0 %1523
  %v1525 = vmul.f32 %v1521, %v1514
  %v1526 = vmul.f32 %v1524, %v1514
  %v1527 = vmul.f32 %v1515, %v1515
  %v1528 = vmul.f32 %v1516, %v1516
  %v1529 = vsub.f32 %v1525, %v1527
  %v1530 = vsub.f32 %v1526, %v1528
  %v1531 = vsub.f32 %v1506, %v1515
  %v1532 = vsub.f32 %v1507, %v1516
  %v1533 = vadd.f32 %v1529, 1e-05
  %v1534 = vadd.f32 %v1530, 1e-05
  %v1535 = vrsqrt.pop %v1533
  %v1536 = vrsqrt.pop %v1534
  %v1537 = vmul.f32 %v1531, %v1535
  %v1538 = vmul.f32 %v1532, %v1536
  %v1539 = vlaneseq
  %v1540 = vshrl.u32 %v1539, 7
  %v1541 = vsub.s32 0, %v1540
  %v1542 = vrot.slane %v236, %v1541
  %v1543 = vmul.f32 %v1537, %v1542
  %v1544 = vmul.f32 %v1538, %v1542
  %v1545 = vlaneseq
  %v1546 = vshrl.u32 %v1545, 7
  %v1547 = vsub.s32 0, %v1546
  %v1548 = vrot.slane %v237, %v1547
  %v1549 = vadd.f32 %v1543, %v1548
  %v1550 = vadd.f32 %v1544, %v1548
  %v1551 = vpack.c.bf16 %v1550, %v1549
  %v1552 = vlaneseq
  %v1553 = vshrl.u32 %v1552, 7
  %v1554 = vsub.s32 0, %v1553
  %v1555 = vrot.slane %v234, %v1554
  %v1560 = vunpack.c.l.b16 %v218
  %v1561 = vunpack.c.l.b16 %v219
  %v1562 = vunpack.c.l.b16 %v220
  %v1563 = vunpack.c.l.b16 %v221
  %v1564 = vpack.c.b16 %v1561, %v1560
  %v1565 = vpack.c.b16 %v1563, %v1562
  %v1569 = vsel %vm257, %v1551, 0
  %1571 = vmatprep.subr.bf16.mxu0 0
  %1572 = vmatpush1.bf16.msra.mxu0 %v1564
  %1573 = vmatprep.subr.bf16.mxu0 0
  %1574 = vmatpush1.bf16.msra.mxu0 %v1565
  %1575 = vmatprep.subr.bf16.mxu0 0
  %1576 = vmatpush1.bf16.msra.mxu0 0
  %1577 = vmatprep.subr.bf16.mxu0 0
  %1578 = vmatpush1.bf16.msra.mxu0 0
  %1579 = vmatprep.subr.bf16.mxu0 0
  %1580 = vmatpush1.bf16.msra.mxu0 0
  %1581 = vmatprep.subr.bf16.mxu0 0
  %1582 = vmatpush1.bf16.msra.mxu0 0
  %1583 = vmatprep.subr.bf16.mxu0 0
  %1584 = vmatpush1.bf16.msra.mxu0 0
  %1585 = vmatprep.subr.bf16.mxu0 0
  %1586 = vmatpush1.bf16.msra.mxu0 0
  %1587 = vmatprep.subr.bf16.mxu0 0
  %1588 = vmatpush1.bf16.msra.mxu0 0
  %1589 = vmatprep.subr.bf16.mxu0 0
  %1590 = vmatpush1.bf16.msra.mxu0 0
  %1591 = vmatprep.subr.bf16.mxu0 0
  %1592 = vmatpush1.bf16.msra.mxu0 0
  %1593 = vmatprep.subr.bf16.mxu0 0
  %1594 = vmatpush1.bf16.msra.mxu0 0
  %1595 = vmatprep.subr.bf16.mxu0 0
  %1596 = vmatpush1.bf16.msra.mxu0 0
  %1597 = vmatprep.subr.bf16.mxu0 0
  %1598 = vmatpush1.bf16.msra.mxu0 0
  %1599 = vmatprep.subr.bf16.mxu0 0
  %1600 = vmatpush1.bf16.msra.mxu0 0
  %1601 = vmatprep.subr.bf16.mxu0 0
  %1602 = vmatpush1.bf16.msra.mxu0 0
  %1603 = vmatprep.mubr.bf16.mxu0 0
  %1604 = vmatmul.mubr.bf16.gmra.mrb[0].mxu0 %v1569
  %v1605 = vpop.f32.mrb[0].mxu0
  %v1606 = vadd.f32 %v1555, %v1605
  %v1607 = vpop.f32.mrb[0].mxu0
  %v1608 = vpop.f32.mrb[0].mxu0
  %v1609 = vadd.f32 %v1555, %v1608
  %v1610 = vpop.f32.mrb[0].mxu0
  %1611 = vdwg.mxu0
  %v1612 = vmax.f32 %v1606, 0.0
  %v1613 = vmax.f32 %v1609, 0.0
  %v1614 = vpack.c.bf16 %v1613, %v1612
  %v1615 = vlaneseq
  %v1616 = vshrl.u32 %v1615, 7
  %v1617 = vsub.s32 0, %v1616
  %v1618 = vrot.slane %v235, %v1617
  %v1627 = vunpack.c.l.b16 %v222
  %v1628 = vunpack.c.l.b16 %v223
  %v1629 = vunpack.c.l.b16 %v224
  %v1630 = vunpack.c.l.b16 %v225
  %v1631 = vunpack.c.l.b16 %v226
  %v1632 = vunpack.c.l.b16 %v227
  %v1633 = vunpack.c.l.b16 %v228
  %v1634 = vunpack.c.l.b16 %v229
  %v1635 = vpack.c.b16 %v1628, %v1627
  %v1636 = vpack.c.b16 %v1630, %v1629
  %v1637 = vpack.c.b16 %v1632, %v1631
  %v1638 = vpack.c.b16 %v1634, %v1633
  %vm1643 = vcmask 523264
  %v1645 = vsel %vm1643, %v1614, 0
  %1647 = vmatprep.subr.bf16.mxu0 0
  %1648 = vmatpush1.bf16.msra.mxu0 %v1635
  %1649 = vmatprep.subr.bf16.mxu0 0
  %1650 = vmatpush1.bf16.msra.mxu0 %v1636
  %1651 = vmatprep.subr.bf16.mxu0 0
  %1652 = vmatpush1.bf16.msra.mxu0 %v1637
  %1653 = vmatprep.subr.bf16.mxu0 0
  %1654 = vmatpush1.bf16.msra.mxu0 %v1638
  %1655 = vmatprep.subr.bf16.mxu0 0
  %1656 = vmatpush1.bf16.msra.mxu0 0
  %1657 = vmatprep.subr.bf16.mxu0 0
  %1658 = vmatpush1.bf16.msra.mxu0 0
  %1659 = vmatprep.subr.bf16.mxu0 0
  %1660 = vmatpush1.bf16.msra.mxu0 0
  %1661 = vmatprep.subr.bf16.mxu0 0
  %1662 = vmatpush1.bf16.msra.mxu0 0
  %1663 = vmatprep.subr.bf16.mxu0 0
  %1664 = vmatpush1.bf16.msra.mxu0 0
  %1665 = vmatprep.subr.bf16.mxu0 0
  %1666 = vmatpush1.bf16.msra.mxu0 0
  %1667 = vmatprep.subr.bf16.mxu0 0
  %1668 = vmatpush1.bf16.msra.mxu0 0
  %1669 = vmatprep.subr.bf16.mxu0 0
  %1670 = vmatpush1.bf16.msra.mxu0 0
  %1671 = vmatprep.subr.bf16.mxu0 0
  %1672 = vmatpush1.bf16.msra.mxu0 0
  %1673 = vmatprep.subr.bf16.mxu0 0
  %1674 = vmatpush1.bf16.msra.mxu0 0
  %1675 = vmatprep.subr.bf16.mxu0 0
  %1676 = vmatpush1.bf16.msra.mxu0 0
  %1677 = vmatprep.subr.bf16.mxu0 0
  %1678 = vmatpush1.bf16.msra.mxu0 0
  %1679 = vmatprep.mubr.bf16.mxu0 0
  %1680 = vmatmul.mubr.bf16.gmra.mrb[0].mxu0 %v1645
  %v1681 = vpop.f32.mrb[0].mxu0
  %v1682 = vadd.f32 %v1618, %v1681
  %v1683 = vpop.f32.mrb[0].mxu0
  %v1684 = vpop.f32.mrb[0].mxu0
  %v1685 = vadd.f32 %v1618, %v1684
  %v1686 = vpop.f32.mrb[0].mxu0
  %1687 = vdwg.mxu0
  %v1688 = vadd.f32 %v1549, %v1682
  %v1689 = vadd.f32 %v1550, %v1685
  %v1690 = vsel %vm257, %v1688, 0.0
  %1691 = vadd.xlane.f32.xlu0 %v1690
  %v1692 = vpop.xlane.xlu0 %1691
  %v1693 = vsel %vm257, %v1689, 0.0
  %1694 = vadd.xlane.f32.xlu0 %v1693
  %v1695 = vpop.xlane.xlu0 %1694
  %v1696 = vmul.f32 %v1692, %v1514
  %v1697 = vmul.f32 %v1695, %v1514
  %v1698 = vmul.f32 %v1688, %v1688
  %v1699 = vmul.f32 %v1689, %v1689
  %v1700 = vsel %vm257, %v1698, 0.0
  %1701 = vadd.xlane.f32.xlu0 %v1700
  %v1702 = vpop.xlane.xlu0 %1701
  %v1703 = vsel %vm257, %v1699, 0.0
  %1704 = vadd.xlane.f32.xlu0 %v1703
  %v1705 = vpop.xlane.xlu0 %1704
  %v1706 = vmul.f32 %v1702, %v1514
  %v1707 = vmul.f32 %v1705, %v1514
  %v1708 = vmul.f32 %v1696, %v1696
  %v1709 = vmul.f32 %v1697, %v1697
  %v1710 = vsub.f32 %v1706, %v1708
  %v1711 = vsub.f32 %v1707, %v1709
  %v1712 = vsub.f32 %v1688, %v1696
  %v1713 = vsub.f32 %v1689, %v1697
  %v1714 = vadd.f32 %v1710, 1e-05
  %v1715 = vadd.f32 %v1711, 1e-05
  %v1716 = vrsqrt.pop %v1714
  %v1717 = vrsqrt.pop %v1715
  %v1718 = vmul.f32 %v1712, %v1716
  %v1719 = vmul.f32 %v1713, %v1717
  %v1720 = vlaneseq
  %v1721 = vshrl.u32 %v1720, 7
  %v1722 = vsub.s32 0, %v1721
  %v1723 = vrot.slane %v238, %v1722
  %v1724 = vmul.f32 %v1718, %v1723
  %v1725 = vmul.f32 %v1719, %v1723
  %v1726 = vlaneseq
  %v1727 = vshrl.u32 %v1726, 7
  %v1728 = vsub.s32 0, %v1727
  %v1729 = vrot.slane %v239, %v1728
  %v1730 = vadd.f32 %v1724, %v1729
  %v1731 = vadd.f32 %v1725, %v1729
  %s1732 = scalar_lea.vmem %s3, 16
  %v1733 = vld [vmem:[%s1732] sm:$0xf]
  %v1734 = vld [vmem:[%s1732 + $0x4] sm:$0xf]
  %v1735 = vld [vmem:[%s1732 + $0x8] sm:$0xf]
  %v1736 = vld [vmem:[%s1732 + $0xc] sm:$0xf]
  %s1737 = scalar_lea.vmem %s5, 16
  %v1738 = vld [vmem:[%s1737] sm:$0xf]
  %v1739 = vld [vmem:[%s1737 + $0x4] sm:$0xf]
  %v1740 = vld [vmem:[%s1737 + $0x8] sm:$0xf]
  %v1741 = vld [vmem:[%s1737 + $0xc] sm:$0xf]
  %s1742 = scalar_lea.vmem %s7, 16
  %v1743 = vld [vmem:[%s1742] sm:$0xf]
  %v1744 = vld [vmem:[%s1742 + $0x4] sm:$0xf]
  %v1745 = vld [vmem:[%s1742 + $0x8] sm:$0xf]
  %v1746 = vld [vmem:[%s1742 + $0xc] sm:$0xf]
  %s1747 = scalar_lea.vmem %s9, 16
  %v1748 = vld [vmem:[%s1747] sm:$0xf]
  %v1749 = vld [vmem:[%s1747 + $0x4] sm:$0xf]
  %v1750 = vld [vmem:[%s1747 + $0x8] sm:$0xf]
  %v1751 = vld [vmem:[%s1747 + $0xc] sm:$0xf]
  %s1752 = scalar_lea.vmem %s13, 16
  %v1753 = vld [vmem:[%s1752] sm:$0xf]
  %v1754 = vld [vmem:[%s1752 + $0x4] sm:$0xf]
  %v1755 = vld [vmem:[%s1752 + $0x8] sm:$0xf]
  %v1756 = vld [vmem:[%s1752 + $0xc] sm:$0xf]
  %s1757 = scalar_lea.vmem %s15, 32
  %v1758 = vld [vmem:[%s1757] sm:$0xf]
  %v1759 = vld [vmem:[%s1757 + $0x4] sm:$0xf]
  %v1760 = vld [vmem:[%s1757 + $0x8] sm:$0xf]
  %v1761 = vld [vmem:[%s1757 + $0xc] sm:$0xf]
  %v1762 = vld [vmem:[%s1757 + $0x10] sm:$0xf]
  %v1763 = vld [vmem:[%s1757 + $0x14] sm:$0xf]
  %v1764 = vld [vmem:[%s1757 + $0x18] sm:$0xf]
  %v1765 = vld [vmem:[%s1757 + $0x1c] sm:$0xf]
  %v1766 = vld [vmem:[%s4 + $0x1] sm:$0x1]
  %v1767 = vld [vmem:[%s6 + $0x1] sm:$0x1]
  %v1768 = vld [vmem:[%s8 + $0x1] sm:$0x1]
  %v1769 = vld [vmem:[%s10 + $0x1] sm:$0x1]
  %v1770 = vld [vmem:[%s14 + $0x1] sm:$0x1]
  %v1771 = vld [vmem:[%s16 + $0x1] sm:$0x1]
  %v1772 = vld [vmem:[%s11 + $0x1] sm:$0x1]
  %v1773 = vld [vmem:[%s12 + $0x1] sm:$0x1]
  %v1774 = vld [vmem:[%s17 + $0x1] sm:$0x1]
  %v1775 = vld [vmem:[%s18 + $0x1] sm:$0x1]
  %v1776 = vpack.c.bf16 %v1731, %v1730
  %v1777 = vlaneseq
  %v1778 = vshrl.u32 %v1777, 7
  %v1779 = vsub.s32 0, %v1778
  %v1780 = vrot.slane %v1766, %v1779
  %v1785 = vunpack.c.l.b16 %v1733
  %v1786 = vunpack.c.l.b16 %v1734
  %v1787 = vunpack.c.l.b16 %v1735
  %v1788 = vunpack.c.l.b16 %v1736
  %v1789 = vpack.c.b16 %v1786, %v1785
  %v1790 = vpack.c.b16 %v1788, %v1787
  %v1794 = vsel %vm257, %v1776, 0
  %1796 = vmatprep.subr.bf16.mxu0 0
  %1797 = vmatpush1.bf16.msra.mxu0 %v1789
  %1798 = vmatprep.subr.bf16.mxu0 0
  %1799 = vmatpush1.bf16.msra.mxu0 %v1790
  %1800 = vmatprep.subr.bf16.mxu0 0
  %1801 = vmatpush1.bf16.msra.mxu0 0
  %1802 = vmatprep.subr.bf16.mxu0 0
  %1803 = vmatpush1.bf16.msra.mxu0 0
  %1804 = vmatprep.subr.bf16.mxu0 0
  %1805 = vmatpush1.bf16.msra.mxu0 0
  %1806 = vmatprep.subr.bf16.mxu0 0
  %1807 = vmatpush1.bf16.msra.mxu0 0
  %1808 = vmatprep.subr.bf16.mxu0 0
  %1809 = vmatpush1.bf16.msra.mxu0 0
  %1810 = vmatprep.subr.bf16.mxu0 0
  %1811 = vmatpush1.bf16.msra.mxu0 0
  %1812 = vmatprep.subr.bf16.mxu0 0
  %1813 = vmatpush1.bf16.msra.mxu0 0
  %1814 = vmatprep.subr.bf16.mxu0 0
  %1815 = vmatpush1.bf16.msra.mxu0 0
  %1816 = vmatprep.subr.bf16.mxu0 0
  %1817 = vmatpush1.bf16.msra.mxu0 0
  %1818 = vmatprep.subr.bf16.mxu0 0
  %1819 = vmatpush1.bf16.msra.mxu0 0
  %1820 = vmatprep.subr.bf16.mxu0 0
  %1821 = vmatpush1.bf16.msra.mxu0 0
  %1822 = vmatprep.subr.bf16.mxu0 0
  %1823 = vmatpush1.bf16.msra.mxu0 0
  %1824 = vmatprep.subr.bf16.mxu0 0
  %1825 = vmatpush1.bf16.msra.mxu0 0
  %1826 = vmatprep.subr.bf16.mxu0 0
  %1827 = vmatpush1.bf16.msra.mxu0 0
  %1828 = vmatprep.mubr.bf16.mxu0 0
  %1829 = vmatmul.mubr.bf16.gmra.mrb[0].mxu0 %v1794
  %v1830 = vpop.f32.mrb[0].mxu0
  %v1831 = vadd.f32 %v1780, %v1830
  %v1832 = vpop.f32.mrb[0].mxu0
  %v1833 = vpop.f32.mrb[0].mxu0
  %v1834 = vadd.f32 %v1780, %v1833
  %v1835 = vpop.f32.mrb[0].mxu0
  %1836 = vdwg.mxu0
  %v1837 = vpack.c.bf16 %v1834, %v1831
  %v1838 = vlaneseq
  %v1839 = vshrl.u32 %v1838, 7
  %v1840 = vsub.s32 0, %v1839
  %v1841 = vrot.slane %v1767, %v1840
  %v1846 = vunpack.c.l.b16 %v1738
  %v1847 = vunpack.c.l.b16 %v1739
  %v1848 = vunpack.c.l.b16 %v1740
  %v1849 = vunpack.c.l.b16 %v1741
  %v1850 = vpack.c.b16 %v1847, %v1846
  %v1851 = vpack.c.b16 %v1849, %v1848
  %1854 = vmatprep.subr.bf16.mxu0 0
  %1855 = vmatpush1.bf16.msra.mxu0 %v1850
  %1856 = vmatprep.subr.bf16.mxu0 0
  %1857 = vmatpush1.bf16.msra.mxu0 %v1851
  %1858 = vmatprep.subr.bf16.mxu0 0
  %1859 = vmatpush1.bf16.msra.mxu0 0
  %1860 = vmatprep.subr.bf16.mxu0 0
  %1861 = vmatpush1.bf16.msra.mxu0 0
  %1862 = vmatprep.subr.bf16.mxu0 0
  %1863 = vmatpush1.bf16.msra.mxu0 0
  %1864 = vmatprep.subr.bf16.mxu0 0
  %1865 = vmatpush1.bf16.msra.mxu0 0
  %1866 = vmatprep.subr.bf16.mxu0 0
  %1867 = vmatpush1.bf16.msra.mxu0 0
  %1868 = vmatprep.subr.bf16.mxu0 0
  %1869 = vmatpush1.bf16.msra.mxu0 0
  %1870 = vmatprep.subr.bf16.mxu0 0
  %1871 = vmatpush1.bf16.msra.mxu0 0
  %1872 = vmatprep.subr.bf16.mxu0 0
  %1873 = vmatpush1.bf16.msra.mxu0 0
  %1874 = vmatprep.subr.bf16.mxu0 0
  %1875 = vmatpush1.bf16.msra.mxu0 0
  %1876 = vmatprep.subr.bf16.mxu0 0
  %1877 = vmatpush1.bf16.msra.mxu0 0
  %1878 = vmatprep.subr.bf16.mxu0 0
  %1879 = vmatpush1.bf16.msra.mxu0 0
  %1880 = vmatprep.subr.bf16.mxu0 0
  %1881 = vmatpush1.bf16.msra.mxu0 0
  %1882 = vmatprep.subr.bf16.mxu0 0
  %1883 = vmatpush1.bf16.msra.mxu0 0
  %1884 = vmatprep.subr.bf16.mxu0 0
  %1885 = vmatpush1.bf16.msra.mxu0 0
  %1886 = vmatprep.mubr.bf16.mxu0 0
  %1887 = vmatmul.mubr.bf16.gmra.mrb[0].mxu0 %v1794
  %v1888 = vpop.f32.mrb[0].mxu0
  %v1889 = vadd.f32 %v1841, %v1888
  %v1890 = vpop.f32.mrb[0].mxu0
  %v1891 = vpop.f32.mrb[0].mxu0
  %v1892 = vadd.f32 %v1841, %v1891
  %v1893 = vpop.f32.mrb[0].mxu0
  %1894 = vdwg.mxu0
  %v1895 = vpack.c.bf16 %v1892, %v1889
  %v1896 = vlaneseq
  %v1897 = vshrl.u32 %v1896, 7
  %v1898 = vsub.s32 0, %v1897
  %v1899 = vrot.slane %v1768, %v1898
  %v1904 = vunpack.c.l.b16 %v1743
  %v1905 = vunpack.c.l.b16 %v1744
  %v1906 = vunpack.c.l.b16 %v1745
  %v1907 = vunpack.c.l.b16 %v1746
  %v1908 = vpack.c.b16 %v1905, %v1904
  %v1909 = vpack.c.b16 %v1907, %v1906
  %1912 = vmatprep.subr.bf16.mxu0 0
  %1913 = vmatpush1.bf16.msra.mxu0 %v1908
  %1914 = vmatprep.subr.bf16.mxu0 0
  %1915 = vmatpush1.bf16.msra.mxu0 %v1909
  %1916 = vmatprep.subr.bf16.mxu0 0
  %1917 = vmatpush1.bf16.msra.mxu0 0
  %1918 = vmatprep.subr.bf16.mxu0 0
  %1919 = vmatpush1.bf16.msra.mxu0 0
  %1920 = vmatprep.subr.bf16.mxu0 0
  %1921 = vmatpush1.bf16.msra.mxu0 0
  %1922 = vmatprep.subr.bf16.mxu0 0
  %1923 = vmatpush1.bf16.msra.mxu0 0
  %1924 = vmatprep.subr.bf16.mxu0 0
  %1925 = vmatpush1.bf16.msra.mxu0 0
  %1926 = vmatprep.subr.bf16.mxu0 0
  %1927 = vmatpush1.bf16.msra.mxu0 0
  %1928 = vmatprep.subr.bf16.mxu0 0
  %1929 = vmatpush1.bf16.msra.mxu0 0
  %1930 = vmatprep.subr.bf16.mxu0 0
  %1931 = vmatpush1.bf16.msra.mxu0 0
  %1932 = vmatprep.subr.bf16.mxu0 0
  %1933 = vmatpush1.bf16.msra.mxu0 0
  %1934 = vmatprep.subr.bf16.mxu0 0
  %1935 = vmatpush1.bf16.msra.mxu0 0
  %1936 = vmatprep.subr.bf16.mxu0 0
  %1937 = vmatpush1.bf16.msra.mxu0 0
  %1938 = vmatprep.subr.bf16.mxu0 0
  %1939 = vmatpush1.bf16.msra.mxu0 0
  %1940 = vmatprep.subr.bf16.mxu0 0
  %1941 = vmatpush1.bf16.msra.mxu0 0
  %1942 = vmatprep.subr.bf16.mxu0 0
  %1943 = vmatpush1.bf16.msra.mxu0 0
  %1944 = vmatprep.mubr.bf16.mxu0 0
  %1945 = vmatmul.mubr.bf16.gmra.mrb[0].mxu0 %v1794
  %v1946 = vpop.f32.mrb[0].mxu0
  %v1947 = vadd.f32 %v1899, %v1946
  %v1948 = vpop.f32.mrb[0].mxu0
  %v1949 = vpop.f32.mrb[0].mxu0
  %v1950 = vadd.f32 %v1899, %v1949
  %v1951 = vpop.f32.mrb[0].mxu0
  %1952 = vdwg.mxu0
  %v1953 = vpack.c.bf16 %v1950, %v1947
  %v1955 = vunpack.c.l.b16 %v1837
  %v1956 = vunpack.c.h.b16 %v1837
  %v1957 = vpack.c.b16 %v1955, %v1955
  %v1958 = vpack.c.b16 %v1956, %v1956
  %v1960 = vunpack.c.l.b16 %v1895
  %v1961 = vunpack.c.h.b16 %v1895
  %v1962 = vpack.c.b16 %v1960, %v1960
  %v1963 = vpack.c.b16 %v1961, %v1961
  %v1965 = vunpack.c.l.b16 %v1953
  %v1966 = vunpack.c.h.b16 %v1953
  %v1967 = vpack.c.b16 %v1965, %v1965
  %v1968 = vpack.c.b16 %v1966, %v1966
  %v1970 = vsel %vm434, %v1957, 0
  %v1973 = vsel %vm434, %v1962, 0
  %1975 = vmatprep.subr.bf16.mxu0 0
  %1976 = vmatpush1.bf16.xpose.msra.mxu0 %v1973
  %1977 = vmatprep.subr.bf16.mxu0 0
  %1978 = vmatpush1.bf16.xpose.msra.mxu0 0
  %1979 = vmatprep.subr.bf16.mxu0 0
  %1980 = vmatpush1.bf16.xpose.msra.mxu0 0
  %1981 = vmatprep.subr.bf16.mxu0 0
  %1982 = vmatpush1.bf16.xpose.msra.mxu0 0
  %1983 = vmatprep.subr.bf16.mxu0 0
  %1984 = vmatpush1.bf16.xpose.msra.mxu0 0
  %1985 = vmatprep.subr.bf16.mxu0 0
  %1986 = vmatpush1.bf16.xpose.msra.mxu0 0
  %1987 = vmatprep.subr.bf16.mxu0 0
  %1988 = vmatpush1.bf16.xpose.msra.mxu0 0
  %1989 = vmatprep.subr.bf16.mxu0 0
  %1990 = vmatpush1.bf16.xpose.msra.mxu0 0
  %1991 = vmatprep.subr.bf16.mxu0 0
  %1992 = vmatpush1.bf16.xpose.msra.mxu0 0
  %1993 = vmatprep.subr.bf16.mxu0 0
  %1994 = vmatpush1.bf16.xpose.msra.mxu0 0
  %1995 = vmatprep.subr.bf16.mxu0 0
  %1996 = vmatpush1.bf16.xpose.msra.mxu0 0
  %1997 = vmatprep.subr.bf16.mxu0 0
  %1998 = vmatpush1.bf16.xpose.msra.mxu0 0
  %1999 = vmatprep.subr.bf16.mxu0 0
  %2000 = vmatpush1.bf16.xpose.msra.mxu0 0
  %2001 = vmatprep.subr.bf16.mxu0 0
  %2002 = vmatpush1.bf16.xpose.msra.mxu0 0
  %2003 = vmatprep.subr.bf16.mxu0 0
  %2004 = vmatpush1.bf16.xpose.msra.mxu0 0
  %2005 = vmatprep.subr.bf16.mxu0 0
  %2006 = vmatpush1.bf16.xpose.msra.mxu0 0
  %2007 = vmatprep.mubr.bf16.mxu0 0
  %2008 = vmatmul.mubr.bf16.gmra.mrb[0].mxu0 %v1970
  %v2009 = vpop.f32.mrb[0].mxu0
  %v2010 = vadd.f32 0.0, %v2009
  %v2011 = vpop.f32.mrb[0].mxu0
  %v2012 = vpop.f32.mrb[0].mxu0
  %v2013 = vpop.f32.mrb[0].mxu0
  %2014 = vdwg.mxu0
  %v2016 = vsel %vm434, %v1958, 0
  %v2019 = vsel %vm434, %v1963, 0
  %2021 = vmatprep.subr.bf16.mxu0 0
  %2022 = vmatpush1.bf16.xpose.msra.mxu0 %v2019
  %2023 = vmatprep.subr.bf16.mxu0 0
  %2024 = vmatpush1.bf16.xpose.msra.mxu0 0
  %2025 = vmatprep.subr.bf16.mxu0 0
  %2026 = vmatpush1.bf16.xpose.msra.mxu0 0
  %2027 = vmatprep.subr.bf16.mxu0 0
  %2028 = vmatpush1.bf16.xpose.msra.mxu0 0
  %2029 = vmatprep.subr.bf16.mxu0 0
  %2030 = vmatpush1.bf16.xpose.msra.mxu0 0
  %2031 = vmatprep.subr.bf16.mxu0 0
  %2032 = vmatpush1.bf16.xpose.msra.mxu0 0
  %2033 = vmatprep.subr.bf16.mxu0 0
  %2034 = vmatpush1.bf16.xpose.msra.mxu0 0
  %2035 = vmatprep.subr.bf16.mxu0 0
  %2036 = vmatpush1.bf16.xpose.msra.mxu0 0
  %2037 = vmatprep.subr.bf16.mxu0 0
  %2038 = vmatpush1.bf16.xpose.msra.mxu0 0
  %2039 = vmatprep.subr.bf16.mxu0 0
  %2040 = vmatpush1.bf16.xpose.msra.mxu0 0
  %2041 = vmatprep.subr.bf16.mxu0 0
  %2042 = vmatpush1.bf16.xpose.msra.mxu0 0
  %2043 = vmatprep.subr.bf16.mxu0 0
  %2044 = vmatpush1.bf16.xpose.msra.mxu0 0
  %2045 = vmatprep.subr.bf16.mxu0 0
  %2046 = vmatpush1.bf16.xpose.msra.mxu0 0
  %2047 = vmatprep.subr.bf16.mxu0 0
  %2048 = vmatpush1.bf16.xpose.msra.mxu0 0
  %2049 = vmatprep.subr.bf16.mxu0 0
  %2050 = vmatpush1.bf16.xpose.msra.mxu0 0
  %2051 = vmatprep.subr.bf16.mxu0 0
  %2052 = vmatpush1.bf16.xpose.msra.mxu0 0
  %2053 = vmatprep.mubr.bf16.mxu0 0
  %2054 = vmatmul.mubr.bf16.gmra.mrb[0].mxu0 %v2016
  %v2055 = vpop.f32.mrb[0].mxu0
  %v2056 = vadd.f32 0.0, %v2055
  %v2057 = vpop.f32.mrb[0].mxu0
  %v2058 = vpop.f32.mrb[0].mxu0
  %v2059 = vpop.f32.mrb[0].mxu0
  %2060 = vdwg.mxu0
  %v2061 = vsel %vm434, %v2010, -inf
  %2062 = vmax.xlane.f32.xlu0 %v2061
  %v2063 = vpop.xlane.xlu0 %2062
  %v2064 = vsel %vm434, %v2056, -inf
  %2065 = vmax.xlane.f32.xlu0 %v2064
  %v2066 = vpop.xlane.xlu0 %2065
  %v2067 = vsub.f32 %v2010, %v2063
  %v2068 = vsub.f32 %v2056, %v2066
  %v2069 = vmul.f32 %v2067, 1.442695
  %v2070 = vpow.pop %v2069
  %v2071 = vmul.f32 %v2068, 1.442695
  %v2072 = vpow.pop %v2071
  %v2073 = vsel %vm434, %v2070, 0.0
  %2074 = vadd.xlane.f32.xlu0 %v2073
  %v2075 = vpop.xlane.xlu0 %2074
  %v2076 = vsel %vm434, %v2072, 0.0
  %2077 = vadd.xlane.f32.xlu0 %v2076
  %v2078 = vpop.xlane.xlu0 %2077
  %v2079 = vrcp.pop %v2075
  %v2080 = vrcp.pop %v2078
  %v2081 = vmul.f32 %v2070, %v2079
  %v2082 = vmul.f32 %v2072, %v2080
  %v2083 = vpack.c.bf16 %v2081, %v2081
  %v2084 = vpack.c.bf16 %v2082, %v2082
  %v2086 = vsel %vm434, %v2083, 0
  %v2089 = vsel %vm554, %v1967, 0
  %2091 = vmatprep.subr.bf16.mxu0 0
  %2092 = vmatpush1.bf16.msra.mxu0 %v2089
  %2093 = vmatprep.subr.bf16.mxu0 0
  %2094 = vmatpush1.bf16.msra.mxu0 0
  %2095 = vmatprep.subr.bf16.mxu0 0
  %2096 = vmatpush1.bf16.msra.mxu0 0
  %2097 = vmatprep.subr.bf16.mxu0 0
  %2098 = vmatpush1.bf16.msra.mxu0 0
  %2099 = vmatprep.subr.bf16.mxu0 0
  %2100 = vmatpush1.bf16.msra.mxu0 0
  %2101 = vmatprep.subr.bf16.mxu0 0
  %2102 = vmatpush1.bf16.msra.mxu0 0
  %2103 = vmatprep.subr.bf16.mxu0 0
  %2104 = vmatpush1.bf16.msra.mxu0 0
  %2105 = vmatprep.subr.bf16.mxu0 0
  %2106 = vmatpush1.bf16.msra.mxu0 0
  %2107 = vmatprep.subr.bf16.mxu0 0
  %2108 = vmatpush1.bf16.msra.mxu0 0
  %2109 = vmatprep.subr.bf16.mxu0 0
  %2110 = vmatpush1.bf16.msra.mxu0 0
  %2111 = vmatprep.subr.bf16.mxu0 0
  %2112 = vmatpush1.bf16.msra.mxu0 0
  %2113 = vmatprep.subr.bf16.mxu0 0
  %2114 = vmatpush1.bf16.msra.mxu0 0
  %2115 = vmatprep.subr.bf16.mxu0 0
  %2116 = vmatpush1.bf16.msra.mxu0 0
  %2117 = vmatprep.subr.bf16.mxu0 0
  %2118 = vmatpush1.bf16.msra.mxu0 0
  %2119 = vmatprep.subr.bf16.mxu0 0
  %2120 = vmatpush1.bf16.msra.mxu0 0
  %2121 = vmatprep.subr.bf16.mxu0 0
  %2122 = vmatpush1.bf16.msra.mxu0 0
  %2123 = vmatprep.mubr.bf16.mxu0 0
  %2124 = vmatmul.mubr.bf16.gmra.mrb[0].mxu0 %v2086
  %v2125 = vpop.f32.mrb[0].mxu0
  %v2126 = vadd.f32 0.0, %v2125
  %v2127 = vpop.f32.mrb[0].mxu0
  %v2128 = vpop.f32.mrb[0].mxu0
  %v2129 = vpop.f32.mrb[0].mxu0
  %2130 = vdwg.mxu0
  %v2132 = vsel %vm434, %v2084, 0
  %v2135 = vsel %vm554, %v1968, 0
  %2137 = vmatprep.subr.bf16.mxu0 0
  %2138 = vmatpush1.bf16.msra.mxu0 %v2135
  %2139 = vmatprep.subr.bf16.mxu0 0
  %2140 = vmatpush1.bf16.msra.mxu0 0
  %2141 = vmatprep.subr.bf16.mxu0 0
  %2142 = vmatpush1.bf16.msra.mxu0 0
  %2143 = vmatprep.subr.bf16.mxu0 0
  %2144 = vmatpush1.bf16.msra.mxu0 0
  %2145 = vmatprep.subr.bf16.mxu0 0
  %2146 = vmatpush1.bf16.msra.mxu0 0
  %2147 = vmatprep.subr.bf16.mxu0 0
  %2148 = vmatpush1.bf16.msra.mxu0 0
  %2149 = vmatprep.subr.bf16.mxu0 0
  %2150 = vmatpush1.bf16.msra.mxu0 0
  %2151 = vmatprep.subr.bf16.mxu0 0
  %2152 = vmatpush1.bf16.msra.mxu0 0
  %2153 = vmatprep.subr.bf16.mxu0 0
  %2154 = vmatpush1.bf16.msra.mxu0 0
  %2155 = vmatprep.subr.bf16.mxu0 0
  %2156 = vmatpush1.bf16.msra.mxu0 0
  %2157 = vmatprep.subr.bf16.mxu0 0
  %2158 = vmatpush1.bf16.msra.mxu0 0
  %2159 = vmatprep.subr.bf16.mxu0 0
  %2160 = vmatpush1.bf16.msra.mxu0 0
  %2161 = vmatprep.subr.bf16.mxu0 0
  %2162 = vmatpush1.bf16.msra.mxu0 0
  %2163 = vmatprep.subr.bf16.mxu0 0
  %2164 = vmatpush1.bf16.msra.mxu0 0
  %2165 = vmatprep.subr.bf16.mxu0 0
  %2166 = vmatpush1.bf16.msra.mxu0 0
  %2167 = vmatprep.subr.bf16.mxu0 0
  %2168 = vmatpush1.bf16.msra.mxu0 0
  %2169 = vmatprep.mubr.bf16.mxu0 0
  %2170 = vmatmul.mubr.bf16.gmra.mrb[0].mxu0 %v2132
  %v2171 = vpop.f32.mrb[0].mxu0
  %v2172 = vadd.f32 0.0, %v2171
  %v2173 = vpop.f32.mrb[0].mxu0
  %v2174 = vpop.f32.mrb[0].mxu0
  %v2175 = vpop.f32.mrb[0].mxu0
  %2176 = vdwg.mxu0
  %v2177 = vpack.c.bf16 %v2172, %v2126
  %2178 = vrot.lane.b32.xlu0 %v1957, 120
  %v2179 = vpop.permute.xlu0 %2178
  %2180 = vrot.lane.b32.xlu0 %v1962, 120
  %v2181 = vpop.permute.xlu0 %2180
  %v2183 = vsel %vm434, %v2179, 0
  %v2186 = vsel %vm434, %v2181, 0
  %2188 = vmatprep.subr.bf16.mxu0 0
  %2189 = vmatpush1.bf16.xpose.msra.mxu0 %v2186
  %2190 = vmatprep.subr.bf16.mxu0 0
  %2191 = vmatpush1.bf16.xpose.msra.mxu0 0
  %2192 = vmatprep.subr.bf16.mxu0 0
  %2193 = vmatpush1.bf16.xpose.msra.mxu0 0
  %2194 = vmatprep.subr.bf16.mxu0 0
  %2195 = vmatpush1.bf16.xpose.msra.mxu0 0
  %2196 = vmatprep.subr.bf16.mxu0 0
  %2197 = vmatpush1.bf16.xpose.msra.mxu0 0
  %2198 = vmatprep.subr.bf16.mxu0 0
  %2199 = vmatpush1.bf16.xpose.msra.mxu0 0
  %2200 = vmatprep.subr.bf16.mxu0 0
  %2201 = vmatpush1.bf16.xpose.msra.mxu0 0
  %2202 = vmatprep.subr.bf16.mxu0 0
  %2203 = vmatpush1.bf16.xpose.msra.mxu0 0
  %2204 = vmatprep.subr.bf16.mxu0 0
  %2205 = vmatpush1.bf16.xpose.msra.mxu0 0
  %2206 = vmatprep.subr.bf16.mxu0 0
  %2207 = vmatpush1.bf16.xpose.msra.mxu0 0
  %2208 = vmatprep.subr.bf16.mxu0 0
  %2209 = vmatpush1.bf16.xpose.msra.mxu0 0
  %2210 = vmatprep.subr.bf16.mxu0 0
  %2211 = vmatpush1.bf16.xpose.msra.mxu0 0
  %2212 = vmatprep.subr.bf16.mxu0 0
  %2213 = vmatpush1.bf16.xpose.msra.mxu0 0
  %2214 = vmatprep.subr.bf16.mxu0 0
  %2215 = vmatpush1.bf16.xpose.msra.mxu0 0
  %2216 = vmatprep.subr.bf16.mxu0 0
  %2217 = vmatpush1.bf16.xpose.msra.mxu0 0
  %2218 = vmatprep.subr.bf16.mxu0 0
  %2219 = vmatpush1.bf16.xpose.msra.mxu0 0
  %2220 = vmatprep.mubr.bf16.mxu0 0
  %2221 = vmatmul.mubr.bf16.gmra.mrb[0].mxu0 %v2183
  %v2222 = vpop.f32.mrb[0].mxu0
  %v2223 = vadd.f32 0.0, %v2222
  %v2224 = vpop.f32.mrb[0].mxu0
  %v2225 = vpop.f32.mrb[0].mxu0
  %v2226 = vpop.f32.mrb[0].mxu0
  %2227 = vdwg.mxu0
  %2228 = vrot.lane.b32.xlu0 %v1958, 120
  %v2229 = vpop.permute.xlu0 %2228
  %2230 = vrot.lane.b32.xlu0 %v1963, 120
  %v2231 = vpop.permute.xlu0 %2230
  %v2233 = vsel %vm434, %v2229, 0
  %v2236 = vsel %vm434, %v2231, 0
  %2238 = vmatprep.subr.bf16.mxu0 0
  %2239 = vmatpush1.bf16.xpose.msra.mxu0 %v2236
  %2240 = vmatprep.subr.bf16.mxu0 0
  %2241 = vmatpush1.bf16.xpose.msra.mxu0 0
  %2242 = vmatprep.subr.bf16.mxu0 0
  %2243 = vmatpush1.bf16.xpose.msra.mxu0 0
  %2244 = vmatprep.subr.bf16.mxu0 0
  %2245 = vmatpush1.bf16.xpose.msra.mxu0 0
  %2246 = vmatprep.subr.bf16.mxu0 0
  %2247 = vmatpush1.bf16.xpose.msra.mxu0 0
  %2248 = vmatprep.subr.bf16.mxu0 0
  %2249 = vmatpush1.bf16.xpose.msra.mxu0 0
  %2250 = vmatprep.subr.bf16.mxu0 0
  %2251 = vmatpush1.bf16.xpose.msra.mxu0 0
  %2252 = vmatprep.subr.bf16.mxu0 0
  %2253 = vmatpush1.bf16.xpose.msra.mxu0 0
  %2254 = vmatprep.subr.bf16.mxu0 0
  %2255 = vmatpush1.bf16.xpose.msra.mxu0 0
  %2256 = vmatprep.subr.bf16.mxu0 0
  %2257 = vmatpush1.bf16.xpose.msra.mxu0 0
  %2258 = vmatprep.subr.bf16.mxu0 0
  %2259 = vmatpush1.bf16.xpose.msra.mxu0 0
  %2260 = vmatprep.subr.bf16.mxu0 0
  %2261 = vmatpush1.bf16.xpose.msra.mxu0 0
  %2262 = vmatprep.subr.bf16.mxu0 0
  %2263 = vmatpush1.bf16.xpose.msra.mxu0 0
  %2264 = vmatprep.subr.bf16.mxu0 0
  %2265 = vmatpush1.bf16.xpose.msra.mxu0 0
  %2266 = vmatprep.subr.bf16.mxu0 0
  %2267 = vmatpush1.bf16.xpose.msra.mxu0 0
  %2268 = vmatprep.subr.bf16.mxu0 0
  %2269 = vmatpush1.bf16.xpose.msra.mxu0 0
  %2270 = vmatprep.mubr.bf16.mxu0 0
  %2271 = vmatmul.mubr.bf16.gmra.mrb[0].mxu0 %v2233
  %v2272 = vpop.f32.mrb[0].mxu0
  %v2273 = vadd.f32 0.0, %v2272
  %v2274 = vpop.f32.mrb[0].mxu0
  %v2275 = vpop.f32.mrb[0].mxu0
  %v2276 = vpop.f32.mrb[0].mxu0
  %2277 = vdwg.mxu0
  %v2278 = vsel %vm434, %v2223, -inf
  %2279 = vmax.xlane.f32.xlu0 %v2278
  %v2280 = vpop.xlane.xlu0 %2279
  %v2281 = vsel %vm434, %v2273, -inf
  %2282 = vmax.xlane.f32.xlu0 %v2281
  %v2283 = vpop.xlane.xlu0 %2282
  %v2284 = vsub.f32 %v2223, %v2280
  %v2285 = vsub.f32 %v2273, %v2283
  %v2286 = vmul.f32 %v2284, 1.442695
  %v2287 = vpow.pop %v2286
  %v2288 = vmul.f32 %v2285, 1.442695
  %v2289 = vpow.pop %v2288
  %v2290 = vsel %vm434, %v2287, 0.0
  %2291 = vadd.xlane.f32.xlu0 %v2290
  %v2292 = vpop.xlane.xlu0 %2291
  %v2293 = vsel %vm434, %v2289, 0.0
  %2294 = vadd.xlane.f32.xlu0 %v2293
  %v2295 = vpop.xlane.xlu0 %2294
  %v2296 = vrcp.pop %v2292
  %v2297 = vrcp.pop %v2295
  %v2298 = vmul.f32 %v2287, %v2296
  %v2299 = vmul.f32 %v2289, %v2297
  %v2300 = vpack.c.bf16 %v2298, %v2298
  %v2301 = vpack.c.bf16 %v2299, %v2299
  %2302 = vrot.lane.b32.xlu0 %v1967, 120
  %v2303 = vpop.permute.xlu0 %2302
  %v2305 = vsel %vm434, %v2300, 0
  %v2308 = vsel %vm554, %v2303, 0
  %2310 = vmatprep.subr.bf16.mxu0 0
  %2311 = vmatpush1.bf16.msra.mxu0 %v2308
  %2312 = vmatprep.subr.bf16.mxu0 0
  %2313 = vmatpush1.bf16.msra.mxu0 0
  %2314 = vmatprep.subr.bf16.mxu0 0
  %2315 = vmatpush1.bf16.msra.mxu0 0
  %2316 = vmatprep.subr.bf16.mxu0 0
  %2317 = vmatpush1.bf16.msra.mxu0 0
  %2318 = vmatprep.subr.bf16.mxu0 0
  %2319 = vmatpush1.bf16.msra.mxu0 0
  %2320 = vmatprep.subr.bf16.mxu0 0
  %2321 = vmatpush1.bf16.msra.mxu0 0
  %2322 = vmatprep.subr.bf16.mxu0 0
  %2323 = vmatpush1.bf16.msra.mxu0 0
  %2324 = vmatprep.subr.bf16.mxu0 0
  %2325 = vmatpush1.bf16.msra.mxu0 0
  %2326 = vmatprep.subr.bf16.mxu0 0
  %2327 = vmatpush1.bf16.msra.mxu0 0
  %2328 = vmatprep.subr.bf16.mxu0 0
  %2329 = vmatpush1.bf16.msra.mxu0 0
  %2330 = vmatprep.subr.bf16.mxu0 0
  %2331 = vmatpush1.bf16.msra.mxu0 0
  %2332 = vmatprep.subr.bf16.mxu0 0
  %2333 = vmatpush1.bf16.msra.mxu0 0
  %2334 = vmatprep.subr.bf16.mxu0 0
  %2335 = vmatpush1.bf16.msra.mxu0 0
  %2336 = vmatprep.subr.bf16.mxu0 0
  %2337 = vmatpush1.bf16.msra.mxu0 0
  %2338 = vmatprep.subr.bf16.mxu0 0
  %2339 = vmatpush1.bf16.msra.mxu0 0
  %2340 = vmatprep.subr.bf16.mxu0 0
  %2341 = vmatpush1.bf16.msra.mxu0 0
  %2342 = vmatprep.mubr.bf16.mxu0 0
  %2343 = vmatmul.mubr.bf16.gmra.mrb[0].mxu0 %v2305
  %v2344 = vpop.f32.mrb[0].mxu0
  %v2345 = vadd.f32 0.0, %v2344
  %v2346 = vpop.f32.mrb[0].mxu0
  %v2347 = vpop.f32.mrb[0].mxu0
  %v2348 = vpop.f32.mrb[0].mxu0
  %2349 = vdwg.mxu0
  %2350 = vrot.lane.b32.xlu0 %v1968, 120
  %v2351 = vpop.permute.xlu0 %2350
  %v2353 = vsel %vm434, %v2301, 0
  %v2356 = vsel %vm554, %v2351, 0
  %2358 = vmatprep.subr.bf16.mxu0 0
  %2359 = vmatpush1.bf16.msra.mxu0 %v2356
  %2360 = vmatprep.subr.bf16.mxu0 0
  %2361 = vmatpush1.bf16.msra.mxu0 0
  %2362 = vmatprep.subr.bf16.mxu0 0
  %2363 = vmatpush1.bf16.msra.mxu0 0
  %2364 = vmatprep.subr.bf16.mxu0 0
  %2365 = vmatpush1.bf16.msra.mxu0 0
  %2366 = vmatprep.subr.bf16.mxu0 0
  %2367 = vmatpush1.bf16.msra.mxu0 0
  %2368 = vmatprep.subr.bf16.mxu0 0
  %2369 = vmatpush1.bf16.msra.mxu0 0
  %2370 = vmatprep.subr.bf16.mxu0 0
  %2371 = vmatpush1.bf16.msra.mxu0 0
  %2372 = vmatprep.subr.bf16.mxu0 0
  %2373 = vmatpush1.bf16.msra.mxu0 0
  %2374 = vmatprep.subr.bf16.mxu0 0
  %2375 = vmatpush1.bf16.msra.mxu0 0
  %2376 = vmatprep.subr.bf16.mxu0 0
  %2377 = vmatpush1.bf16.msra.mxu0 0
  %2378 = vmatprep.subr.bf16.mxu0 0
  %2379 = vmatpush1.bf16.msra.mxu0 0
  %2380 = vmatprep.subr.bf16.mxu0 0
  %2381 = vmatpush1.bf16.msra.mxu0 0
  %2382 = vmatprep.subr.bf16.mxu0 0
  %2383 = vmatpush1.bf16.msra.mxu0 0
  %2384 = vmatprep.subr.bf16.mxu0 0
  %2385 = vmatpush1.bf16.msra.mxu0 0
  %2386 = vmatprep.subr.bf16.mxu0 0
  %2387 = vmatpush1.bf16.msra.mxu0 0
  %2388 = vmatprep.subr.bf16.mxu0 0
  %2389 = vmatpush1.bf16.msra.mxu0 0
  %2390 = vmatprep.mubr.bf16.mxu0 0
  %2391 = vmatmul.mubr.bf16.gmra.mrb[0].mxu0 %v2353
  %v2392 = vpop.f32.mrb[0].mxu0
  %v2393 = vadd.f32 0.0, %v2392
  %v2394 = vpop.f32.mrb[0].mxu0
  %v2395 = vpop.f32.mrb[0].mxu0
  %v2396 = vpop.f32.mrb[0].mxu0
  %2397 = vdwg.mxu0
  %v2398 = vpack.c.bf16 %v2393, %v2345
  %v2400 = vsel %vm434, %v2398, 0
  %v2403 = vsel %vm554, %v1749, 0
  %2405 = vmatprep.subr.bf16.mxu0 0
  %2406 = vmatpush1.bf16.msra.mxu0 %v2403
  %2407 = vmatprep.subr.bf16.mxu0 0
  %2408 = vmatpush1.bf16.msra.mxu0 0
  %2409 = vmatprep.subr.bf16.mxu0 0
  %2410 = vmatpush1.bf16.msra.mxu0 0
  %2411 = vmatprep.subr.bf16.mxu0 0
  %2412 = vmatpush1.bf16.msra.mxu0 0
  %2413 = vmatprep.subr.bf16.mxu0 0
  %2414 = vmatpush1.bf16.msra.mxu0 0
  %2415 = vmatprep.subr.bf16.mxu0 0
  %2416 = vmatpush1.bf16.msra.mxu0 0
  %2417 = vmatprep.subr.bf16.mxu0 0
  %2418 = vmatpush1.bf16.msra.mxu0 0
  %2419 = vmatprep.subr.bf16.mxu0 0
  %2420 = vmatpush1.bf16.msra.mxu0 0
  %2421 = vmatprep.subr.bf16.mxu0 0
  %2422 = vmatpush1.bf16.msra.mxu0 0
  %2423 = vmatprep.subr.bf16.mxu0 0
  %2424 = vmatpush1.bf16.msra.mxu0 0
  %2425 = vmatprep.subr.bf16.mxu0 0
  %2426 = vmatpush1.bf16.msra.mxu0 0
  %2427 = vmatprep.subr.bf16.mxu0 0
  %2428 = vmatpush1.bf16.msra.mxu0 0
  %2429 = vmatprep.subr.bf16.mxu0 0
  %2430 = vmatpush1.bf16.msra.mxu0 0
  %2431 = vmatprep.subr.bf16.mxu0 0
  %2432 = vmatpush1.bf16.msra.mxu0 0
  %2433 = vmatprep.subr.bf16.mxu0 0
  %2434 = vmatpush1.bf16.msra.mxu0 0
  %2435 = vmatprep.subr.bf16.mxu0 0
  %2436 = vmatpush1.bf16.msra.mxu0 0
  %2437 = vmatprep.mubr.bf16.mxu0 0
  %2438 = vmatmul.mubr.bf16.gmra.mrb[0].mxu0 %v2400
  %v2439 = vpop.f32.mrb[0].mxu0
  %v2440 = vadd.f32 0.0, %v2439
  %v2441 = vpop.f32.mrb[0].mxu0
  %v2442 = vpop.f32.mrb[0].mxu0
  %v2443 = vadd.f32 0.0, %v2442
  %v2444 = vpop.f32.mrb[0].mxu0
  %2445 = vdwg.mxu0
  %v2447 = vsel %vm434, %v2177, 0
  %v2450 = vsel %vm554, %v1748, 0
  %2452 = vmatprep.subr.bf16.mxu0 0
  %2453 = vmatpush1.bf16.msra.mxu0 %v2450
  %2454 = vmatprep.subr.bf16.mxu0 0
  %2455 = vmatpush1.bf16.msra.mxu0 0
  %2456 = vmatprep.subr.bf16.mxu0 0
  %2457 = vmatpush1.bf16.msra.mxu0 0
  %2458 = vmatprep.subr.bf16.mxu0 0
  %2459 = vmatpush1.bf16.msra.mxu0 0
  %2460 = vmatprep.subr.bf16.mxu0 0
  %2461 = vmatpush1.bf16.msra.mxu0 0
  %2462 = vmatprep.subr.bf16.mxu0 0
  %2463 = vmatpush1.bf16.msra.mxu0 0
  %2464 = vmatprep.subr.bf16.mxu0 0
  %2465 = vmatpush1.bf16.msra.mxu0 0
  %2466 = vmatprep.subr.bf16.mxu0 0
  %2467 = vmatpush1.bf16.msra.mxu0 0
  %2468 = vmatprep.subr.bf16.mxu0 0
  %2469 = vmatpush1.bf16.msra.mxu0 0
  %2470 = vmatprep.subr.bf16.mxu0 0
  %2471 = vmatpush1.bf16.msra.mxu0 0
  %2472 = vmatprep.subr.bf16.mxu0 0
  %2473 = vmatpush1.bf16.msra.mxu0 0
  %2474 = vmatprep.subr.bf16.mxu0 0
  %2475 = vmatpush1.bf16.msra.mxu0 0
  %2476 = vmatprep.subr.bf16.mxu0 0
  %2477 = vmatpush1.bf16.msra.mxu0 0
  %2478 = vmatprep.subr.bf16.mxu0 0
  %2479 = vmatpush1.bf16.msra.mxu0 0
  %2480 = vmatprep.subr.bf16.mxu0 0
  %2481 = vmatpush1.bf16.msra.mxu0 0
  %2482 = vmatprep.subr.bf16.mxu0 0
  %2483 = vmatpush1.bf16.msra.mxu0 0
  %2484 = vmatprep.mubr.bf16.mxu0 0
  %2485 = vmatmul.mubr.bf16.gmra.mrb[0].mxu0 %v2447
  %v2486 = vpop.f32.mrb[0].mxu0
  %v2487 = vadd.f32 %v2440, %v2486
  %v2488 = vpop.f32.mrb[0].mxu0
  %v2489 = vpop.f32.mrb[0].mxu0
  %v2490 = vadd.f32 %v2443, %v2489
  %v2491 = vpop.f32.mrb[0].mxu0
  %2492 = vdwg.mxu0
  %2493 = vrot.lane.b32.xlu0 %v1957, 112
  %v2494 = vpop.permute.xlu0 %2493
  %2495 = vrot.lane.b32.xlu0 %v1962, 112
  %v2496 = vpop.permute.xlu0 %2495
  %v2498 = vsel %vm434, %v2494, 0
  %v2501 = vsel %vm434, %v2496, 0
  %2503 = vmatprep.subr.bf16.mxu0 0
  %2504 = vmatpush1.bf16.xpose.msra.mxu0 %v2501
  %2505 = vmatprep.subr.bf16.mxu0 0
  %2506 = vmatpush1.bf16.xpose.msra.mxu0 0
  %2507 = vmatprep.subr.bf16.mxu0 0
  %2508 = vmatpush1.bf16.xpose.msra.mxu0 0
  %2509 = vmatprep.subr.bf16.mxu0 0
  %2510 = vmatpush1.bf16.xpose.msra.mxu0 0
  %2511 = vmatprep.subr.bf16.mxu0 0
  %2512 = vmatpush1.bf16.xpose.msra.mxu0 0
  %2513 = vmatprep.subr.bf16.mxu0 0
  %2514 = vmatpush1.bf16.xpose.msra.mxu0 0
  %2515 = vmatprep.subr.bf16.mxu0 0
  %2516 = vmatpush1.bf16.xpose.msra.mxu0 0
  %2517 = vmatprep.subr.bf16.mxu0 0
  %2518 = vmatpush1.bf16.xpose.msra.mxu0 0
  %2519 = vmatprep.subr.bf16.mxu0 0
  %2520 = vmatpush1.bf16.xpose.msra.mxu0 0
  %2521 = vmatprep.subr.bf16.mxu0 0
  %2522 = vmatpush1.bf16.xpose.msra.mxu0 0
  %2523 = vmatprep.subr.bf16.mxu0 0
  %2524 = vmatpush1.bf16.xpose.msra.mxu0 0
  %2525 = vmatprep.subr.bf16.mxu0 0
  %2526 = vmatpush1.bf16.xpose.msra.mxu0 0
  %2527 = vmatprep.subr.bf16.mxu0 0
  %2528 = vmatpush1.bf16.xpose.msra.mxu0 0
  %2529 = vmatprep.subr.bf16.mxu0 0
  %2530 = vmatpush1.bf16.xpose.msra.mxu0 0
  %2531 = vmatprep.subr.bf16.mxu0 0
  %2532 = vmatpush1.bf16.xpose.msra.mxu0 0
  %2533 = vmatprep.subr.bf16.mxu0 0
  %2534 = vmatpush1.bf16.xpose.msra.mxu0 0
  %2535 = vmatprep.mubr.bf16.mxu0 0
  %2536 = vmatmul.mubr.bf16.gmra.mrb[0].mxu0 %v2498
  %v2537 = vpop.f32.mrb[0].mxu0
  %v2538 = vadd.f32 0.0, %v2537
  %v2539 = vpop.f32.mrb[0].mxu0
  %v2540 = vpop.f32.mrb[0].mxu0
  %v2541 = vpop.f32.mrb[0].mxu0
  %2542 = vdwg.mxu0
  %2543 = vrot.lane.b32.xlu0 %v1958, 112
  %v2544 = vpop.permute.xlu0 %2543
  %2545 = vrot.lane.b32.xlu0 %v1963, 112
  %v2546 = vpop.permute.xlu0 %2545
  %v2548 = vsel %vm434, %v2544, 0
  %v2551 = vsel %vm434, %v2546, 0
  %2553 = vmatprep.subr.bf16.mxu0 0
  %2554 = vmatpush1.bf16.xpose.msra.mxu0 %v2551
  %2555 = vmatprep.subr.bf16.mxu0 0
  %2556 = vmatpush1.bf16.xpose.msra.mxu0 0
  %2557 = vmatprep.subr.bf16.mxu0 0
  %2558 = vmatpush1.bf16.xpose.msra.mxu0 0
  %2559 = vmatprep.subr.bf16.mxu0 0
  %2560 = vmatpush1.bf16.xpose.msra.mxu0 0
  %2561 = vmatprep.subr.bf16.mxu0 0
  %2562 = vmatpush1.bf16.xpose.msra.mxu0 0
  %2563 = vmatprep.subr.bf16.mxu0 0
  %2564 = vmatpush1.bf16.xpose.msra.mxu0 0
  %2565 = vmatprep.subr.bf16.mxu0 0
  %2566 = vmatpush1.bf16.xpose.msra.mxu0 0
  %2567 = vmatprep.subr.bf16.mxu0 0
  %2568 = vmatpush1.bf16.xpose.msra.mxu0 0
  %2569 = vmatprep.subr.bf16.mxu0 0
  %2570 = vmatpush1.bf16.xpose.msra.mxu0 0
  %2571 = vmatprep.subr.bf16.mxu0 0
  %2572 = vmatpush1.bf16.xpose.msra.mxu0 0
  %2573 = vmatprep.subr.bf16.mxu0 0
  %2574 = vmatpush1.bf16.xpose.msra.mxu0 0
  %2575 = vmatprep.subr.bf16.mxu0 0
  %2576 = vmatpush1.bf16.xpose.msra.mxu0 0
  %2577 = vmatprep.subr.bf16.mxu0 0
  %2578 = vmatpush1.bf16.xpose.msra.mxu0 0
  %2579 = vmatprep.subr.bf16.mxu0 0
  %2580 = vmatpush1.bf16.xpose.msra.mxu0 0
  %2581 = vmatprep.subr.bf16.mxu0 0
  %2582 = vmatpush1.bf16.xpose.msra.mxu0 0
  %2583 = vmatprep.subr.bf16.mxu0 0
  %2584 = vmatpush1.bf16.xpose.msra.mxu0 0
  %2585 = vmatprep.mubr.bf16.mxu0 0
  %2586 = vmatmul.mubr.bf16.gmra.mrb[0].mxu0 %v2548
  %v2587 = vpop.f32.mrb[0].mxu0
  %v2588 = vadd.f32 0.0, %v2587
  %v2589 = vpop.f32.mrb[0].mxu0
  %v2590 = vpop.f32.mrb[0].mxu0
  %v2591 = vpop.f32.mrb[0].mxu0
  %2592 = vdwg.mxu0
  %v2593 = vsel %vm434, %v2538, -inf
  %2594 = vmax.xlane.f32.xlu0 %v2593
  %v2595 = vpop.xlane.xlu0 %2594
  %v2596 = vsel %vm434, %v2588, -inf
  %2597 = vmax.xlane.f32.xlu0 %v2596
  %v2598 = vpop.xlane.xlu0 %2597
  %v2599 = vsub.f32 %v2538, %v2595
  %v2600 = vsub.f32 %v2588, %v2598
  %v2601 = vmul.f32 %v2599, 1.442695
  %v2602 = vpow.pop %v2601
  %v2603 = vmul.f32 %v2600, 1.442695
  %v2604 = vpow.pop %v2603
  %v2605 = vsel %vm434, %v2602, 0.0
  %2606 = vadd.xlane.f32.xlu0 %v2605
  %v2607 = vpop.xlane.xlu0 %2606
  %v2608 = vsel %vm434, %v2604, 0.0
  %2609 = vadd.xlane.f32.xlu0 %v2608
  %v2610 = vpop.xlane.xlu0 %2609
  %v2611 = vrcp.pop %v2607
  %v2612 = vrcp.pop %v2610
  %v2613 = vmul.f32 %v2602, %v2611
  %v2614 = vmul.f32 %v2604, %v2612
  %v2615 = vpack.c.bf16 %v2613, %v2613
  %v2616 = vpack.c.bf16 %v2614, %v2614
  %2617 = vrot.lane.b32.xlu0 %v1967, 112
  %v2618 = vpop.permute.xlu0 %2617
  %v2620 = vsel %vm434, %v2615, 0
  %v2623 = vsel %vm554, %v2618, 0
  %2625 = vmatprep.subr.bf16.mxu0 0
  %2626 = vmatpush1.bf16.msra.mxu0 %v2623
  %2627 = vmatprep.subr.bf16.mxu0 0
  %2628 = vmatpush1.bf16.msra.mxu0 0
  %2629 = vmatprep.subr.bf16.mxu0 0
  %2630 = vmatpush1.bf16.msra.mxu0 0
  %2631 = vmatprep.subr.bf16.mxu0 0
  %2632 = vmatpush1.bf16.msra.mxu0 0
  %2633 = vmatprep.subr.bf16.mxu0 0
  %2634 = vmatpush1.bf16.msra.mxu0 0
  %2635 = vmatprep.subr.bf16.mxu0 0
  %2636 = vmatpush1.bf16.msra.mxu0 0
  %2637 = vmatprep.subr.bf16.mxu0 0
  %2638 = vmatpush1.bf16.msra.mxu0 0
  %2639 = vmatprep.subr.bf16.mxu0 0
  %2640 = vmatpush1.bf16.msra.mxu0 0
  %2641 = vmatprep.subr.bf16.mxu0 0
  %2642 = vmatpush1.bf16.msra.mxu0 0
  %2643 = vmatprep.subr.bf16.mxu0 0
  %2644 = vmatpush1.bf16.msra.mxu0 0
  %2645 = vmatprep.subr.bf16.mxu0 0
  %2646 = vmatpush1.bf16.msra.mxu0 0
  %2647 = vmatprep.subr.bf16.mxu0 0
  %2648 = vmatpush1.bf16.msra.mxu0 0
  %2649 = vmatprep.subr.bf16.mxu0 0
  %2650 = vmatpush1.bf16.msra.mxu0 0
  %2651 = vmatprep.subr.bf16.mxu0 0
  %2652 = vmatpush1.bf16.msra.mxu0 0
  %2653 = vmatprep.subr.bf16.mxu0 0
  %2654 = vmatpush1.bf16.msra.mxu0 0
  %2655 = vmatprep.subr.bf16.mxu0 0
  %2656 = vmatpush1.bf16.msra.mxu0 0
  %2657 = vmatprep.mubr.bf16.mxu0 0
  %2658 = vmatmul.mubr.bf16.gmra.mrb[0].mxu0 %v2620
  %v2659 = vpop.f32.mrb[0].mxu0
  %v2660 = vadd.f32 0.0, %v2659
  %v2661 = vpop.f32.mrb[0].mxu0
  %v2662 = vpop.f32.mrb[0].mxu0
  %v2663 = vpop.f32.mrb[0].mxu0
  %2664 = vdwg.mxu0
  %2665 = vrot.lane.b32.xlu0 %v1968, 112
  %v2666 = vpop.permute.xlu0 %2665
  %v2668 = vsel %vm434, %v2616, 0
  %v2671 = vsel %vm554, %v2666, 0
  %2673 = vmatprep.subr.bf16.mxu0 0
  %2674 = vmatpush1.bf16.msra.mxu0 %v2671
  %2675 = vmatprep.subr.bf16.mxu0 0
  %2676 = vmatpush1.bf16.msra.mxu0 0
  %2677 = vmatprep.subr.bf16.mxu0 0
  %2678 = vmatpush1.bf16.msra.mxu0 0
  %2679 = vmatprep.subr.bf16.mxu0 0
  %2680 = vmatpush1.bf16.msra.mxu0 0
  %2681 = vmatprep.subr.bf16.mxu0 0
  %2682 = vmatpush1.bf16.msra.mxu0 0
  %2683 = vmatprep.subr.bf16.mxu0 0
  %2684 = vmatpush1.bf16.msra.mxu0 0
  %2685 = vmatprep.subr.bf16.mxu0 0
  %2686 = vmatpush1.bf16.msra.mxu0 0
  %2687 = vmatprep.subr.bf16.mxu0 0
  %2688 = vmatpush1.bf16.msra.mxu0 0
  %2689 = vmatprep.subr.bf16.mxu0 0
  %2690 = vmatpush1.bf16.msra.mxu0 0
  %2691 = vmatprep.subr.bf16.mxu0 0
  %2692 = vmatpush1.bf16.msra.mxu0 0
  %2693 = vmatprep.subr.bf16.mxu0 0
  %2694 = vmatpush1.bf16.msra.mxu0 0
  %2695 = vmatprep.subr.bf16.mxu0 0
  %2696 = vmatpush1.bf16.msra.mxu0 0
  %2697 = vmatprep.subr.bf16.mxu0 0
  %2698 = vmatpush1.bf16.msra.mxu0 0
  %2699 = vmatprep.subr.bf16.mxu0 0
  %2700 = vmatpush1.bf16.msra.mxu0 0
  %2701 = vmatprep.subr.bf16.mxu0 0
  %2702 = vmatpush1.bf16.msra.mxu0 0
  %2703 = vmatprep.subr.bf16.mxu0 0
  %2704 = vmatpush1.bf16.msra.mxu0 0
  %2705 = vmatprep.mubr.bf16.mxu0 0
  %2706 = vmatmul.mubr.bf16.gmra.mrb[0].mxu0 %v2668
  %v2707 = vpop.f32.mrb[0].mxu0
  %v2708 = vadd.f32 0.0, %v2707
  %v2709 = vpop.f32.mrb[0].mxu0
  %v2710 = vpop.f32.mrb[0].mxu0
  %v2711 = vpop.f32.mrb[0].mxu0
  %2712 = vdwg.mxu0
  %v2713 = vpack.c.bf16 %v2708, %v2660
  %v2715 = vsel %vm434, %v2713, 0
  %v2718 = vsel %vm554, %v1750, 0
  %2720 = vmatprep.subr.bf16.mxu0 0
  %2721 = vmatpush1.bf16.msra.mxu0 %v2718
  %2722 = vmatprep.subr.bf16.mxu0 0
  %2723 = vmatpush1.bf16.msra.mxu0 0
  %2724 = vmatprep.subr.bf16.mxu0 0
  %2725 = vmatpush1.bf16.msra.mxu0 0
  %2726 = vmatprep.subr.bf16.mxu0 0
  %2727 = vmatpush1.bf16.msra.mxu0 0
  %2728 = vmatprep.subr.bf16.mxu0 0
  %2729 = vmatpush1.bf16.msra.mxu0 0
  %2730 = vmatprep.subr.bf16.mxu0 0
  %2731 = vmatpush1.bf16.msra.mxu0 0
  %2732 = vmatprep.subr.bf16.mxu0 0
  %2733 = vmatpush1.bf16.msra.mxu0 0
  %2734 = vmatprep.subr.bf16.mxu0 0
  %2735 = vmatpush1.bf16.msra.mxu0 0
  %2736 = vmatprep.subr.bf16.mxu0 0
  %2737 = vmatpush1.bf16.msra.mxu0 0
  %2738 = vmatprep.subr.bf16.mxu0 0
  %2739 = vmatpush1.bf16.msra.mxu0 0
  %2740 = vmatprep.subr.bf16.mxu0 0
  %2741 = vmatpush1.bf16.msra.mxu0 0
  %2742 = vmatprep.subr.bf16.mxu0 0
  %2743 = vmatpush1.bf16.msra.mxu0 0
  %2744 = vmatprep.subr.bf16.mxu0 0
  %2745 = vmatpush1.bf16.msra.mxu0 0
  %2746 = vmatprep.subr.bf16.mxu0 0
  %2747 = vmatpush1.bf16.msra.mxu0 0
  %2748 = vmatprep.subr.bf16.mxu0 0
  %2749 = vmatpush1.bf16.msra.mxu0 0
  %2750 = vmatprep.subr.bf16.mxu0 0
  %2751 = vmatpush1.bf16.msra.mxu0 0
  %2752 = vmatprep.mubr.bf16.mxu0 0
  %2753 = vmatmul.mubr.bf16.gmra.mrb[0].mxu0 %v2715
  %v2754 = vpop.f32.mrb[0].mxu0
  %v2755 = vadd.f32 0.0, %v2754
  %v2756 = vpop.f32.mrb[0].mxu0
  %v2757 = vpop.f32.mrb[0].mxu0
  %v2758 = vadd.f32 0.0, %v2757
  %v2759 = vpop.f32.mrb[0].mxu0
  %2760 = vdwg.mxu0
  %v2761 = vadd.f32 %v2487, %v2755
  %v2762 = vadd.f32 %v2490, %v2758
  %2763 = vrot.lane.b32.xlu0 %v1957, 104
  %v2764 = vpop.permute.xlu0 %2763
  %2765 = vrot.lane.b32.xlu0 %v1962, 104
  %v2766 = vpop.permute.xlu0 %2765
  %v2768 = vsel %vm434, %v2764, 0
  %v2771 = vsel %vm434, %v2766, 0
  %2773 = vmatprep.subr.bf16.mxu0 0
  %2774 = vmatpush1.bf16.xpose.msra.mxu0 %v2771
  %2775 = vmatprep.subr.bf16.mxu0 0
  %2776 = vmatpush1.bf16.xpose.msra.mxu0 0
  %2777 = vmatprep.subr.bf16.mxu0 0
  %2778 = vmatpush1.bf16.xpose.msra.mxu0 0
  %2779 = vmatprep.subr.bf16.mxu0 0
  %2780 = vmatpush1.bf16.xpose.msra.mxu0 0
  %2781 = vmatprep.subr.bf16.mxu0 0
  %2782 = vmatpush1.bf16.xpose.msra.mxu0 0
  %2783 = vmatprep.subr.bf16.mxu0 0
  %2784 = vmatpush1.bf16.xpose.msra.mxu0 0
  %2785 = vmatprep.subr.bf16.mxu0 0
  %2786 = vmatpush1.bf16.xpose.msra.mxu0 0
  %2787 = vmatprep.subr.bf16.mxu0 0
  %2788 = vmatpush1.bf16.xpose.msra.mxu0 0
  %2789 = vmatprep.subr.bf16.mxu0 0
  %2790 = vmatpush1.bf16.xpose.msra.mxu0 0
  %2791 = vmatprep.subr.bf16.mxu0 0
  %2792 = vmatpush1.bf16.xpose.msra.mxu0 0
  %2793 = vmatprep.subr.bf16.mxu0 0
  %2794 = vmatpush1.bf16.xpose.msra.mxu0 0
  %2795 = vmatprep.subr.bf16.mxu0 0
  %2796 = vmatpush1.bf16.xpose.msra.mxu0 0
  %2797 = vmatprep.subr.bf16.mxu0 0
  %2798 = vmatpush1.bf16.xpose.msra.mxu0 0
  %2799 = vmatprep.subr.bf16.mxu0 0
  %2800 = vmatpush1.bf16.xpose.msra.mxu0 0
  %2801 = vmatprep.subr.bf16.mxu0 0
  %2802 = vmatpush1.bf16.xpose.msra.mxu0 0
  %2803 = vmatprep.subr.bf16.mxu0 0
  %2804 = vmatpush1.bf16.xpose.msra.mxu0 0
  %2805 = vmatprep.mubr.bf16.mxu0 0
  %2806 = vmatmul.mubr.bf16.gmra.mrb[0].mxu0 %v2768
  %v2807 = vpop.f32.mrb[0].mxu0
  %v2808 = vadd.f32 0.0, %v2807
  %v2809 = vpop.f32.mrb[0].mxu0
  %v2810 = vpop.f32.mrb[0].mxu0
  %v2811 = vpop.f32.mrb[0].mxu0
  %2812 = vdwg.mxu0
  %2813 = vrot.lane.b32.xlu0 %v1958, 104
  %v2814 = vpop.permute.xlu0 %2813
  %2815 = vrot.lane.b32.xlu0 %v1963, 104
  %v2816 = vpop.permute.xlu0 %2815
  %v2818 = vsel %vm434, %v2814, 0
  %v2821 = vsel %vm434, %v2816, 0
  %2823 = vmatprep.subr.bf16.mxu0 0
  %2824 = vmatpush1.bf16.xpose.msra.mxu0 %v2821
  %2825 = vmatprep.subr.bf16.mxu0 0
  %2826 = vmatpush1.bf16.xpose.msra.mxu0 0
  %2827 = vmatprep.subr.bf16.mxu0 0
  %2828 = vmatpush1.bf16.xpose.msra.mxu0 0
  %2829 = vmatprep.subr.bf16.mxu0 0
  %2830 = vmatpush1.bf16.xpose.msra.mxu0 0
  %2831 = vmatprep.subr.bf16.mxu0 0
  %2832 = vmatpush1.bf16.xpose.msra.mxu0 0
  %2833 = vmatprep.subr.bf16.mxu0 0
  %2834 = vmatpush1.bf16.xpose.msra.mxu0 0
  %2835 = vmatprep.subr.bf16.mxu0 0
  %2836 = vmatpush1.bf16.xpose.msra.mxu0 0
  %2837 = vmatprep.subr.bf16.mxu0 0
  %2838 = vmatpush1.bf16.xpose.msra.mxu0 0
  %2839 = vmatprep.subr.bf16.mxu0 0
  %2840 = vmatpush1.bf16.xpose.msra.mxu0 0
  %2841 = vmatprep.subr.bf16.mxu0 0
  %2842 = vmatpush1.bf16.xpose.msra.mxu0 0
  %2843 = vmatprep.subr.bf16.mxu0 0
  %2844 = vmatpush1.bf16.xpose.msra.mxu0 0
  %2845 = vmatprep.subr.bf16.mxu0 0
  %2846 = vmatpush1.bf16.xpose.msra.mxu0 0
  %2847 = vmatprep.subr.bf16.mxu0 0
  %2848 = vmatpush1.bf16.xpose.msra.mxu0 0
  %2849 = vmatprep.subr.bf16.mxu0 0
  %2850 = vmatpush1.bf16.xpose.msra.mxu0 0
  %2851 = vmatprep.subr.bf16.mxu0 0
  %2852 = vmatpush1.bf16.xpose.msra.mxu0 0
  %2853 = vmatprep.subr.bf16.mxu0 0
  %2854 = vmatpush1.bf16.xpose.msra.mxu0 0
  %2855 = vmatprep.mubr.bf16.mxu0 0
  %2856 = vmatmul.mubr.bf16.gmra.mrb[0].mxu0 %v2818
  %v2857 = vpop.f32.mrb[0].mxu0
  %v2858 = vadd.f32 0.0, %v2857
  %v2859 = vpop.f32.mrb[0].mxu0
  %v2860 = vpop.f32.mrb[0].mxu0
  %v2861 = vpop.f32.mrb[0].mxu0
  %2862 = vdwg.mxu0
  %v2863 = vsel %vm434, %v2808, -inf
  %2864 = vmax.xlane.f32.xlu0 %v2863
  %v2865 = vpop.xlane.xlu0 %2864
  %v2866 = vsel %vm434, %v2858, -inf
  %2867 = vmax.xlane.f32.xlu0 %v2866
  %v2868 = vpop.xlane.xlu0 %2867
  %v2869 = vsub.f32 %v2808, %v2865
  %v2870 = vsub.f32 %v2858, %v2868
  %v2871 = vmul.f32 %v2869, 1.442695
  %v2872 = vpow.pop %v2871
  %v2873 = vmul.f32 %v2870, 1.442695
  %v2874 = vpow.pop %v2873
  %v2875 = vsel %vm434, %v2872, 0.0
  %2876 = vadd.xlane.f32.xlu0 %v2875
  %v2877 = vpop.xlane.xlu0 %2876
  %v2878 = vsel %vm434, %v2874, 0.0
  %2879 = vadd.xlane.f32.xlu0 %v2878
  %v2880 = vpop.xlane.xlu0 %2879
  %v2881 = vrcp.pop %v2877
  %v2882 = vrcp.pop %v2880
  %v2883 = vmul.f32 %v2872, %v2881
  %v2884 = vmul.f32 %v2874, %v2882
  %v2885 = vpack.c.bf16 %v2883, %v2883
  %v2886 = vpack.c.bf16 %v2884, %v2884
  %2887 = vrot.lane.b32.xlu0 %v1967, 104
  %v2888 = vpop.permute.xlu0 %2887
  %v2890 = vsel %vm434, %v2885, 0
  %v2893 = vsel %vm554, %v2888, 0
  %2895 = vmatprep.subr.bf16.mxu0 0
  %2896 = vmatpush1.bf16.msra.mxu0 %v2893
  %2897 = vmatprep.subr.bf16.mxu0 0
  %2898 = vmatpush1.bf16.msra.mxu0 0
  %2899 = vmatprep.subr.bf16.mxu0 0
  %2900 = vmatpush1.bf16.msra.mxu0 0
  %2901 = vmatprep.subr.bf16.mxu0 0
  %2902 = vmatpush1.bf16.msra.mxu0 0
  %2903 = vmatprep.subr.bf16.mxu0 0
  %2904 = vmatpush1.bf16.msra.mxu0 0
  %2905 = vmatprep.subr.bf16.mxu0 0
  %2906 = vmatpush1.bf16.msra.mxu0 0
  %2907 = vmatprep.subr.bf16.mxu0 0
  %2908 = vmatpush1.bf16.msra.mxu0 0
  %2909 = vmatprep.subr.bf16.mxu0 0
  %2910 = vmatpush1.bf16.msra.mxu0 0
  %2911 = vmatprep.subr.bf16.mxu0 0
  %2912 = vmatpush1.bf16.msra.mxu0 0
  %2913 = vmatprep.subr.bf16.mxu0 0
  %2914 = vmatpush1.bf16.msra.mxu0 0
  %2915 = vmatprep.subr.bf16.mxu0 0
  %2916 = vmatpush1.bf16.msra.mxu0 0
  %2917 = vmatprep.subr.bf16.mxu0 0
  %2918 = vmatpush1.bf16.msra.mxu0 0
  %2919 = vmatprep.subr.bf16.mxu0 0
  %2920 = vmatpush1.bf16.msra.mxu0 0
  %2921 = vmatprep.subr.bf16.mxu0 0
  %2922 = vmatpush1.bf16.msra.mxu0 0
  %2923 = vmatprep.subr.bf16.mxu0 0
  %2924 = vmatpush1.bf16.msra.mxu0 0
  %2925 = vmatprep.subr.bf16.mxu0 0
  %2926 = vmatpush1.bf16.msra.mxu0 0
  %2927 = vmatprep.mubr.bf16.mxu0 0
  %2928 = vmatmul.mubr.bf16.gmra.mrb[0].mxu0 %v2890
  %v2929 = vpop.f32.mrb[0].mxu0
  %v2930 = vadd.f32 0.0, %v2929
  %v2931 = vpop.f32.mrb[0].mxu0
  %v2932 = vpop.f32.mrb[0].mxu0
  %v2933 = vpop.f32.mrb[0].mxu0
  %2934 = vdwg.mxu0
  %2935 = vrot.lane.b32.xlu0 %v1968, 104
  %v2936 = vpop.permute.xlu0 %2935
  %v2938 = vsel %vm434, %v2886, 0
  %v2941 = vsel %vm554, %v2936, 0
  %2943 = vmatprep.subr.bf16.mxu0 0
  %2944 = vmatpush1.bf16.msra.mxu0 %v2941
  %2945 = vmatprep.subr.bf16.mxu0 0
  %2946 = vmatpush1.bf16.msra.mxu0 0
  %2947 = vmatprep.subr.bf16.mxu0 0
  %2948 = vmatpush1.bf16.msra.mxu0 0
  %2949 = vmatprep.subr.bf16.mxu0 0
  %2950 = vmatpush1.bf16.msra.mxu0 0
  %2951 = vmatprep.subr.bf16.mxu0 0
  %2952 = vmatpush1.bf16.msra.mxu0 0
  %2953 = vmatprep.subr.bf16.mxu0 0
  %2954 = vmatpush1.bf16.msra.mxu0 0
  %2955 = vmatprep.subr.bf16.mxu0 0
  %2956 = vmatpush1.bf16.msra.mxu0 0
  %2957 = vmatprep.subr.bf16.mxu0 0
  %2958 = vmatpush1.bf16.msra.mxu0 0
  %2959 = vmatprep.subr.bf16.mxu0 0
  %2960 = vmatpush1.bf16.msra.mxu0 0
  %2961 = vmatprep.subr.bf16.mxu0 0
  %2962 = vmatpush1.bf16.msra.mxu0 0
  %2963 = vmatprep.subr.bf16.mxu0 0
  %2964 = vmatpush1.bf16.msra.mxu0 0
  %2965 = vmatprep.subr.bf16.mxu0 0
  %2966 = vmatpush1.bf16.msra.mxu0 0
  %2967 = vmatprep.subr.bf16.mxu0 0
  %2968 = vmatpush1.bf16.msra.mxu0 0
  %2969 = vmatprep.subr.bf16.mxu0 0
  %2970 = vmatpush1.bf16.msra.mxu0 0
  %2971 = vmatprep.subr.bf16.mxu0 0
  %2972 = vmatpush1.bf16.msra.mxu0 0
  %2973 = vmatprep.subr.bf16.mxu0 0
  %2974 = vmatpush1.bf16.msra.mxu0 0
  %2975 = vmatprep.mubr.bf16.mxu0 0
  %2976 = vmatmul.mubr.bf16.gmra.mrb[0].mxu0 %v2938
  %v2977 = vpop.f32.mrb[0].mxu0
  %v2978 = vadd.f32 0.0, %v2977
  %v2979 = vpop.f32.mrb[0].mxu0
  %v2980 = vpop.f32.mrb[0].mxu0
  %v2981 = vpop.f32.mrb[0].mxu0
  %2982 = vdwg.mxu0
  %v2983 = vpack.c.bf16 %v2978, %v2930
  %v2985 = vsel %vm434, %v2983, 0
  %v2988 = vsel %vm554, %v1751, 0
  %2990 = vmatprep.subr.bf16.mxu0 0
  %2991 = vmatpush1.bf16.msra.mxu0 %v2988
  %2992 = vmatprep.subr.bf16.mxu0 0
  %2993 = vmatpush1.bf16.msra.mxu0 0
  %2994 = vmatprep.subr.bf16.mxu0 0
  %2995 = vmatpush1.bf16.msra.mxu0 0
  %2996 = vmatprep.subr.bf16.mxu0 0
  %2997 = vmatpush1.bf16.msra.mxu0 0
  %2998 = vmatprep.subr.bf16.mxu0 0
  %2999 = vmatpush1.bf16.msra.mxu0 0
  %3000 = vmatprep.subr.bf16.mxu0 0
  %3001 = vmatpush1.bf16.msra.mxu0 0
  %3002 = vmatprep.subr.bf16.mxu0 0
  %3003 = vmatpush1.bf16.msra.mxu0 0
  %3004 = vmatprep.subr.bf16.mxu0 0
  %3005 = vmatpush1.bf16.msra.mxu0 0
  %3006 = vmatprep.subr.bf16.mxu0 0
  %3007 = vmatpush1.bf16.msra.mxu0 0
  %3008 = vmatprep.subr.bf16.mxu0 0
  %3009 = vmatpush1.bf16.msra.mxu0 0
  %3010 = vmatprep.subr.bf16.mxu0 0
  %3011 = vmatpush1.bf16.msra.mxu0 0
  %3012 = vmatprep.subr.bf16.mxu0 0
  %3013 = vmatpush1.bf16.msra.mxu0 0
  %3014 = vmatprep.subr.bf16.mxu0 0
  %3015 = vmatpush1.bf16.msra.mxu0 0
  %3016 = vmatprep.subr.bf16.mxu0 0
  %3017 = vmatpush1.bf16.msra.mxu0 0
  %3018 = vmatprep.subr.bf16.mxu0 0
  %3019 = vmatpush1.bf16.msra.mxu0 0
  %3020 = vmatprep.subr.bf16.mxu0 0
  %3021 = vmatpush1.bf16.msra.mxu0 0
  %3022 = vmatprep.mubr.bf16.mxu0 0
  %3023 = vmatmul.mubr.bf16.gmra.mrb[0].mxu0 %v2985
  %v3024 = vpop.f32.mrb[0].mxu0
  %v3025 = vadd.f32 0.0, %v3024
  %v3026 = vpop.f32.mrb[0].mxu0
  %v3027 = vpop.f32.mrb[0].mxu0
  %v3028 = vadd.f32 0.0, %v3027
  %v3029 = vpop.f32.mrb[0].mxu0
  %3030 = vdwg.mxu0
  %v3031 = vadd.f32 %v2761, %v3025
  %v3032 = vadd.f32 %v2762, %v3028
  %v3033 = vlaneseq
  %v3034 = vshrl.u32 %v3033, 7
  %v3035 = vsub.s32 0, %v3034
  %v3036 = vrot.slane %v1769, %v3035
  %v3037 = vadd.f32 %v3031, %v3036
  %v3038 = vadd.f32 %v3032, %v3036
  %v3039 = vadd.f32 %v1730, %v3037
  %v3040 = vadd.f32 %v1731, %v3038
  %v3041 = vsel %vm257, %v3039, 0.0
  %3042 = vadd.xlane.f32.xlu0 %v3041
  %v3043 = vpop.xlane.xlu0 %3042
  %v3044 = vsel %vm257, %v3040, 0.0
  %3045 = vadd.xlane.f32.xlu0 %v3044
  %v3046 = vpop.xlane.xlu0 %3045
  %v3047 = vmul.f32 %v3043, %v1514
  %v3048 = vmul.f32 %v3046, %v1514
  %v3049 = vmul.f32 %v3039, %v3039
  %v3050 = vmul.f32 %v3040, %v3040
  %v3051 = vsel %vm257, %v3049, 0.0
  %3052 = vadd.xlane.f32.xlu0 %v3051
  %v3053 = vpop.xlane.xlu0 %3052
  %v3054 = vsel %vm257, %v3050, 0.0
  %3055 = vadd.xlane.f32.xlu0 %v3054
  %v3056 = vpop.xlane.xlu0 %3055
  %v3057 = vmul.f32 %v3053, %v1514
  %v3058 = vmul.f32 %v3056, %v1514
  %v3059 = vmul.f32 %v3047, %v3047
  %v3060 = vmul.f32 %v3048, %v3048
  %v3061 = vsub.f32 %v3057, %v3059
  %v3062 = vsub.f32 %v3058, %v3060
  %v3063 = vsub.f32 %v3039, %v3047
  %v3064 = vsub.f32 %v3040, %v3048
  %v3065 = vadd.f32 %v3061, 1e-05
  %v3066 = vadd.f32 %v3062, 1e-05
  %v3067 = vrsqrt.pop %v3065
  %v3068 = vrsqrt.pop %v3066
  %v3069 = vmul.f32 %v3063, %v3067
  %v3070 = vmul.f32 %v3064, %v3068
  %v3071 = vlaneseq
  %v3072 = vshrl.u32 %v3071, 7
  %v3073 = vsub.s32 0, %v3072
  %v3074 = vrot.slane %v1772, %v3073
  %v3075 = vmul.f32 %v3069, %v3074
  %v3076 = vmul.f32 %v3070, %v3074
  %v3077 = vlaneseq
  %v3078 = vshrl.u32 %v3077, 7
  %v3079 = vsub.s32 0, %v3078
  %v3080 = vrot.slane %v1773, %v3079
  %v3081 = vadd.f32 %v3075, %v3080
  %v3082 = vadd.f32 %v3076, %v3080
  %v3083 = vpack.c.bf16 %v3082, %v3081
  %v3084 = vlaneseq
  %v3085 = vshrl.u32 %v3084, 7
  %v3086 = vsub.s32 0, %v3085
  %v3087 = vrot.slane %v1770, %v3086
  %v3092 = vunpack.c.l.b16 %v1753
  %v3093 = vunpack.c.l.b16 %v1754
  %v3094 = vunpack.c.l.b16 %v1755
  %v3095 = vunpack.c.l.b16 %v1756
  %v3096 = vpack.c.b16 %v3093, %v3092
  %v3097 = vpack.c.b16 %v3095, %v3094
  %v3101 = vsel %vm257, %v3083, 0
  %3103 = vmatprep.subr.bf16.mxu0 0
  %3104 = vmatpush1.bf16.msra.mxu0 %v3096
  %3105 = vmatprep.subr.bf16.mxu0 0
  %3106 = vmatpush1.bf16.msra.mxu0 %v3097
  %3107 = vmatprep.subr.bf16.mxu0 0
  %3108 = vmatpush1.bf16.msra.mxu0 0
  %3109 = vmatprep.subr.bf16.mxu0 0
  %3110 = vmatpush1.bf16.msra.mxu0 0
  %3111 = vmatprep.subr.bf16.mxu0 0
  %3112 = vmatpush1.bf16.msra.mxu0 0
  %3113 = vmatprep.subr.bf16.mxu0 0
  %3114 = vmatpush1.bf16.msra.mxu0 0
  %3115 = vmatprep.subr.bf16.mxu0 0
  %3116 = vmatpush1.bf16.msra.mxu0 0
  %3117 = vmatprep.subr.bf16.mxu0 0
  %3118 = vmatpush1.bf16.msra.mxu0 0
  %3119 = vmatprep.subr.bf16.mxu0 0
  %3120 = vmatpush1.bf16.msra.mxu0 0
  %3121 = vmatprep.subr.bf16.mxu0 0
  %3122 = vmatpush1.bf16.msra.mxu0 0
  %3123 = vmatprep.subr.bf16.mxu0 0
  %3124 = vmatpush1.bf16.msra.mxu0 0
  %3125 = vmatprep.subr.bf16.mxu0 0
  %3126 = vmatpush1.bf16.msra.mxu0 0
  %3127 = vmatprep.subr.bf16.mxu0 0
  %3128 = vmatpush1.bf16.msra.mxu0 0
  %3129 = vmatprep.subr.bf16.mxu0 0
  %3130 = vmatpush1.bf16.msra.mxu0 0
  %3131 = vmatprep.subr.bf16.mxu0 0
  %3132 = vmatpush1.bf16.msra.mxu0 0
  %3133 = vmatprep.subr.bf16.mxu0 0
  %3134 = vmatpush1.bf16.msra.mxu0 0
  %3135 = vmatprep.mubr.bf16.mxu0 0
  %3136 = vmatmul.mubr.bf16.gmra.mrb[0].mxu0 %v3101
  %v3137 = vpop.f32.mrb[0].mxu0
  %v3138 = vadd.f32 %v3087, %v3137
  %v3139 = vpop.f32.mrb[0].mxu0
  %v3140 = vpop.f32.mrb[0].mxu0
  %v3141 = vadd.f32 %v3087, %v3140
  %v3142 = vpop.f32.mrb[0].mxu0
  %3143 = vdwg.mxu0
  %v3144 = vmax.f32 %v3138, 0.0
  %v3145 = vmax.f32 %v3141, 0.0
  %v3146 = vpack.c.bf16 %v3145, %v3144
  %v3147 = vlaneseq
  %v3148 = vshrl.u32 %v3147, 7
  %v3149 = vsub.s32 0, %v3148
  %v3150 = vrot.slane %v1771, %v3149
  %v3159 = vunpack.c.l.b16 %v1758
  %v3160 = vunpack.c.l.b16 %v1759
  %v3161 = vunpack.c.l.b16 %v1760
  %v3162 = vunpack.c.l.b16 %v1761
  %v3163 = vunpack.c.l.b16 %v1762
  %v3164 = vunpack.c.l.b16 %v1763
  %v3165 = vunpack.c.l.b16 %v1764
  %v3166 = vunpack.c.l.b16 %v1765
  %v3167 = vpack.c.b16 %v3160, %v3159
  %v3168 = vpack.c.b16 %v3162, %v3161
  %v3169 = vpack.c.b16 %v3164, %v3163
  %v3170 = vpack.c.b16 %v3166, %v3165
  %v3176 = vsel %vm1643, %v3146, 0
  %3178 = vmatprep.subr.bf16.mxu0 0
  %3179 = vmatpush1.bf16.msra.mxu0 %v3167
  %3180 = vmatprep.subr.bf16.mxu0 0
  %3181 = vmatpush1.bf16.msra.mxu0 %v3168
  %3182 = vmatprep.subr.bf16.mxu0 0
  %3183 = vmatpush1.bf16.msra.mxu0 %v3169
  %3184 = vmatprep.subr.bf16.mxu0 0
  %3185 = vmatpush1.bf16.msra.mxu0 %v3170
  %3186 = vmatprep.subr.bf16.mxu0 0
  %3187 = vmatpush1.bf16.msra.mxu0 0
  %3188 = vmatprep.subr.bf16.mxu0 0
  %3189 = vmatpush1.bf16.msra.mxu0 0
  %3190 = vmatprep.subr.bf16.mxu0 0
  %3191 = vmatpush1.bf16.msra.mxu0 0
  %3192 = vmatprep.subr.bf16.mxu0 0
  %3193 = vmatpush1.bf16.msra.mxu0 0
  %3194 = vmatprep.subr.bf16.mxu0 0
  %3195 = vmatpush1.bf16.msra.mxu0 0
  %3196 = vmatprep.subr.bf16.mxu0 0
  %3197 = vmatpush1.bf16.msra.mxu0 0
  %3198 = vmatprep.subr.bf16.mxu0 0
  %3199 = vmatpush1.bf16.msra.mxu0 0
  %3200 = vmatprep.subr.bf16.mxu0 0
  %3201 = vmatpush1.bf16.msra.mxu0 0
  %3202 = vmatprep.subr.bf16.mxu0 0
  %3203 = vmatpush1.bf16.msra.mxu0 0
  %3204 = vmatprep.subr.bf16.mxu0 0
  %3205 = vmatpush1.bf16.msra.mxu0 0
  %3206 = vmatprep.subr.bf16.mxu0 0
  %3207 = vmatpush1.bf16.msra.mxu0 0
  %3208 = vmatprep.subr.bf16.mxu0 0
  %3209 = vmatpush1.bf16.msra.mxu0 0
  %3210 = vmatprep.mubr.bf16.mxu0 0
  %3211 = vmatmul.mubr.bf16.gmra.mrb[0].mxu0 %v3176
  %v3212 = vpop.f32.mrb[0].mxu0
  %v3213 = vadd.f32 %v3150, %v3212
  %v3214 = vpop.f32.mrb[0].mxu0
  %v3215 = vpop.f32.mrb[0].mxu0
  %v3216 = vadd.f32 %v3150, %v3215
  %v3217 = vpop.f32.mrb[0].mxu0
  %3218 = vdwg.mxu0
  %v3219 = vadd.f32 %v3081, %v3213
  %v3220 = vadd.f32 %v3082, %v3216
  %v3221 = vsel %vm257, %v3219, 0.0
  %3222 = vadd.xlane.f32.xlu0 %v3221
  %v3223 = vpop.xlane.xlu0 %3222
  %v3224 = vsel %vm257, %v3220, 0.0
  %3225 = vadd.xlane.f32.xlu0 %v3224
  %v3226 = vpop.xlane.xlu0 %3225
  %v3227 = vmul.f32 %v3223, %v1514
  %v3228 = vmul.f32 %v3226, %v1514
  %v3229 = vmul.f32 %v3219, %v3219
  %v3230 = vmul.f32 %v3220, %v3220
  %v3231 = vsel %vm257, %v3229, 0.0
  %3232 = vadd.xlane.f32.xlu0 %v3231
  %v3233 = vpop.xlane.xlu0 %3232
  %v3234 = vsel %vm257, %v3230, 0.0
  %3235 = vadd.xlane.f32.xlu0 %v3234
  %v3236 = vpop.xlane.xlu0 %3235
  %v3237 = vmul.f32 %v3233, %v1514
  %v3238 = vmul.f32 %v3236, %v1514
  %v3239 = vmul.f32 %v3227, %v3227
  %v3240 = vmul.f32 %v3228, %v3228
  %v3241 = vsub.f32 %v3237, %v3239
  %v3242 = vsub.f32 %v3238, %v3240
  %v3243 = vsub.f32 %v3219, %v3227
  %v3244 = vsub.f32 %v3220, %v3228
  %v3245 = vadd.f32 %v3241, 1e-05
  %v3246 = vadd.f32 %v3242, 1e-05
  %v3247 = vrsqrt.pop %v3245
  %v3248 = vrsqrt.pop %v3246
  %v3249 = vmul.f32 %v3243, %v3247
  %v3250 = vmul.f32 %v3244, %v3248
  %v3251 = vlaneseq
  %v3252 = vshrl.u32 %v3251, 7
  %v3253 = vsub.s32 0, %v3252
  %v3254 = vrot.slane %v1774, %v3253
  %v3255 = vmul.f32 %v3249, %v3254
  %v3256 = vmul.f32 %v3250, %v3254
  %v3257 = vlaneseq
  %v3258 = vshrl.u32 %v3257, 7
  %v3259 = vsub.s32 0, %v3258
  %v3260 = vrot.slane %v1775, %v3259
  %v3261 = vadd.f32 %v3255, %v3260
  %v3262 = vadd.f32 %v3256, %v3260
  %v3263 = vsel %vm257, %v3261, 0.0
  %v3264 = vrot.slane %v3263, 4
  %v3265 = vadd.f32 %v3263, %v3264
  %v3266 = vrot.slane %v3265, 2
  %v3267 = vadd.f32 %v3265, %v3266
  %v3268 = vrot.slane %v3267, 1
  %v3269 = vadd.f32 %v3267, %v3268
  %v3270 = vsel %vm257, %v3262, 0.0
  %v3271 = vrot.slane %v3270, 4
  %v3272 = vadd.f32 %v3270, %v3271
  %v3273 = vrot.slane %v3272, 2
  %v3274 = vadd.f32 %v3272, %v3273
  %v3275 = vrot.slane %v3274, 1
  %v3276 = vadd.f32 %v3274, %v3275
  %v3277 = vrcp.pop 8.0
  %v3278 = vmul.f32 %v3269, %v3277
  %v3279 = vmul.f32 %v3276, %v3277
  %v3280 = vld [vmem:[%s19] sm:$0xff]
  %v3281 = vld [vmem:[%s19 + $0x8] sm:$0xff]
  %v3282 = vld [vmem:[%s19 + $0x10] sm:$0xff]
  %v3283 = vld [vmem:[%s19 + $0x18] sm:$0xff]
  %v3284 = vld [vmem:[%s20] sm:$0x1]
  %v3286 = vlaneseq
  %v3287 = vshrl.u32 %v3286, 7
  %v3288 = vsub.s32 0, %v3287
  %v3289 = vrot.slane %v3284, %v3288
  %vm3293 = vcmask 1041409
  %v3294 = vsel %vm3293, %v3279, %v3278
  %v3295 = vsel %vm257, %v3294, 0
  %3297 = vmatprep.subr.mxu0 0.0
  %3298 = vmatpush1.msra.mxu0 %v3280
  %3299 = vmatprep.subr.mxu0 0.0
  %3300 = vmatpush1.msra.mxu0 %v3281
  %3301 = vmatprep.subr.mxu0 0.0
  %3302 = vmatpush1.msra.mxu0 %v3282
  %3303 = vmatprep.subr.mxu0 0.0
  %3304 = vmatpush1.msra.mxu0 %v3283
  %3305 = vmatprep.subr.mxu0 0.0
  %3306 = vmatpush1.msra.mxu0 0.0
  %3307 = vmatprep.subr.mxu0 0.0
  %3308 = vmatpush1.msra.mxu0 0.0
  %3309 = vmatprep.subr.mxu0 0.0
  %3310 = vmatpush1.msra.mxu0 0.0
  %3311 = vmatprep.subr.mxu0 0.0
  %3312 = vmatpush1.msra.mxu0 0.0
  %3313 = vmatprep.subr.mxu0 0.0
  %3314 = vmatpush1.msra.mxu0 0.0
  %3315 = vmatprep.subr.mxu0 0.0
  %3316 = vmatpush1.msra.mxu0 0.0
  %3317 = vmatprep.subr.mxu0 0.0
  %3318 = vmatpush1.msra.mxu0 0.0
  %3319 = vmatprep.subr.mxu0 0.0
  %3320 = vmatpush1.msra.mxu0 0.0
  %3321 = vmatprep.subr.mxu0 0.0
  %3322 = vmatpush1.msra.mxu0 0.0
  %3323 = vmatprep.subr.mxu0 0.0
  %3324 = vmatpush1.msra.mxu0 0.0
  %3325 = vmatprep.subr.mxu0 0.0
  %3326 = vmatpush1.msra.mxu0 0.0
  %3327 = vmatprep.subr.mxu0 0.0
  %3328 = vmatpush1.msra.mxu0 0.0
  %3329 = vmatprep.subr.mxu0 0.0
  %3330 = vmatpush1.msra.mxu0 0.0
  %3331 = vmatprep.subr.mxu0 0.0
  %3332 = vmatpush1.msra.mxu0 0.0
  %3333 = vmatprep.subr.mxu0 0.0
  %3334 = vmatpush1.msra.mxu0 0.0
  %3335 = vmatprep.subr.mxu0 0.0
  %3336 = vmatpush1.msra.mxu0 0.0
  %3337 = vmatprep.subr.mxu0 0.0
  %3338 = vmatpush1.msra.mxu0 0.0
  %3339 = vmatprep.subr.mxu0 0.0
  %3340 = vmatpush1.msra.mxu0 0.0
  %3341 = vmatprep.subr.mxu0 0.0
  %3342 = vmatpush1.msra.mxu0 0.0
  %3343 = vmatprep.subr.mxu0 0.0
  %3344 = vmatpush1.msra.mxu0 0.0
  %3345 = vmatprep.subr.mxu0 0.0
  %3346 = vmatpush1.msra.mxu0 0.0
  %3347 = vmatprep.subr.mxu0 0.0
  %3348 = vmatpush1.msra.mxu0 0.0
  %3349 = vmatprep.subr.mxu0 0.0
  %3350 = vmatpush1.msra.mxu0 0.0
  %3351 = vmatprep.subr.mxu0 0.0
  %3352 = vmatpush1.msra.mxu0 0.0
  %3353 = vmatprep.subr.mxu0 0.0
  %3354 = vmatpush1.msra.mxu0 0.0
  %3355 = vmatprep.subr.mxu0 0.0
  %3356 = vmatpush1.msra.mxu0 0.0
  %3357 = vmatprep.subr.mxu0 0.0
  %3358 = vmatpush1.msra.mxu0 0.0
  %3359 = vmatprep.subr.mxu0 0.0
  %3360 = vmatpush1.msra.mxu0 0.0
  %3361 = vmatprep.mubr.f32.mxu0 0.0
  %3362 = vmatmul.mubr.f32.gmra.mrb[0].mxu0 %v3295
  %v3363 = vpop.f32.mrb[0].mxu0
  %v3364 = vadd.f32 %v3289, %v3363
  %v3365 = vpop.f32.mrb[0].mxu0
  %3366 = vdwg.mxu0
  %vm3367 = vcmask 254976
  %3368 = vst.msk [vmem:[%s21] sm:$0x3] %vm3367, %v3364
  // Predicated region
  $region86: #{transformer_forward.1} parent=0 // pred_check
    _
  $region87: #{transformer_forward.1} parent=0 // pred_check_branch
    %3370 = sbr.rel (0) target = $region89
  $region88: #{transformer_forward.1} parent=0 // pred_region
    _
  $region89: #{transformer_forward.1} parent=0 // pred_fallthru
    _
  // Predicated region
  $region90: #{transformer_forward.1} parent=0 // pred_check
    _
  $region91: #{transformer_forward.1} parent=0 // pred_check_branch
    %3372 = sbr.rel (0) target = $region93
  $region92: #{transformer_forward.1} parent=0 // pred_region
    _
  $region93: #{transformer_forward.1} parent=0 // pred_fallthru
    _

</llo_original>
